<compile_context>
chip_gen: v6e
topology: v6e:2x2x1
jax: 0.10.0
libtpu: 0.0.40
codegen_flags: <defaults>
</compile_context>

<pallas_src>
import functools

import jax
import jax.numpy as jnp
from jax import lax
from jax.experimental import pallas as pl
from jax.experimental.pallas import tpu as pltpu


# ----------------------------------------------------------------------------
# Fused Pallas kernel: the entire RND forward pass
# ----------------------------------------------------------------------------
def _rnd_kernel(
    ids_ref,      # (T*B, 1) int32  token ids, row index = t*B + b (time-major)
    emb_ref,      # (2, V, H)       embedding tables [rnd, imitate]
    w_ih_ref,     # (2*L, H, 4H)    input->gate weights (transposed), gates [i,f,g,o]
    w_hh_ref,     # (2*L, H, 4H)    hidden->gate weights (transposed)
    b_ref,        # (2*L, 1, 4H)    b_ih + b_hh
    rnd_rw_ref,   # (H, 1)          rnd regressor weight (transposed)
    rnd_rb_ref,   # (1, 1)
    im_w1_ref,    # (H, M)          imitate MLP layer 0
    im_b1_ref,    # (1, M)
    im_w2_ref,    # (M, M)          imitate MLP layer 1
    im_b2_ref,    # (1, M)
    im_rw_ref,    # (M, 1)          imitate regressor
    im_rb_ref,    # (1, 1)
    diff_ref,     # (B, 1) out: y1 - y2
    y1_ref,       # (B, 1) out
    y2_ref,       # (B, 1) out
    slab_a,       # (T*B, H) f32 VMEM scratch (sequence slab, ping)
    slab_b,       # (T*B, H) f32 VMEM scratch (sequence slab, pong)
    *, T, B, H, V, L,
):
    EPS = 1e-12  # F.normalize default eps

    # In-kernel embedding lookup as a one-hot matmul (token ids shared by both
    # encoders; each encoder has its own table).
    ids = ids_ref[...]                                            # (T*B, 1)
    iota = lax.broadcasted_iota(jnp.int32, (T * B, V), 1)
    onehot = (iota == ids).astype(jnp.float32)                    # (T*B, V)

    def l2_normalize(x):
        nrm = jnp.sqrt(jnp.sum(x * x, axis=-1, keepdims=True))
        return x / jnp.maximum(nrm, EPS)

    def lstm_layer(gx, w_hh, out_ref):
        """gx: (T*B, 4H) precomputed x @ W_ih + b (input projection hoisted).
        Only h @ W_hh stays inside the (fully unrolled) recurrence."""
        h = jnp.zeros((B, H), jnp.float32)
        c = jnp.zeros((B, H), jnp.float32)
        for t in range(T):                       # static unroll (T is small)
            r0 = t * B
            gates = gx[r0:r0 + B, :] + jnp.dot(
                h, w_hh, preferred_element_type=jnp.float32)      # (B, 4H)
            sig = jax.nn.sigmoid(gates)          # one EUP pass covers i, f, o
            i = sig[:, 0 * H:1 * H]
            f = sig[:, 1 * H:2 * H]
            o = sig[:, 3 * H:4 * H]
            g = jnp.tanh(gates[:, 2 * H:3 * H])
            c = f * c + i * g
            h = o * jnp.tanh(c)
            out_ref[pl.ds(r0, B), :] = h

    def encoder_seq_emb(enc):
        """Embedding -> L stacked LSTM layers -> normalize -> mean_t -> normalize."""
        slab_a[...] = jnp.dot(onehot, emb_ref[enc],
                              preferred_element_type=jnp.float32)  # (T*B, H)
        src, dst = slab_a, slab_b
        for layer in range(L):
            k = enc * L + layer
            # Hoisted input projection: one big matmul per layer (+ bias once).
            gx = jnp.dot(src[...], w_ih_ref[k],
                         preferred_element_type=jnp.float32) + b_ref[k]
            lstm_layer(gx, w_hh_ref[k], dst)
            src, dst = dst, src
        hs = l2_normalize(src[...])                                # (T*B, H)
        acc = jnp.zeros((B, H), jnp.float32)
        for t in range(T):                        # mean over time (static slices)
            acc = acc + hs[t * B:(t + 1) * B, :]
        return l2_normalize(acc * (1.0 / T))                       # (B, H)

    # Encoder 0 ("rnd"): mlp_layers=0 -> regressor Linear(H, 1) + sigmoid.
    se0 = encoder_seq_emb(0)
    y1 = jax.nn.sigmoid(
        jnp.dot(se0, rnd_rw_ref[...], preferred_element_type=jnp.float32)
        + rnd_rb_ref[...])

    # Encoder 1 ("imitate"): MLP Linear(H,M) -> Linear(M,M) (no activation,
    # dropout p=0), then regressor Linear(M, 1) + sigmoid.
    se1 = encoder_seq_emb(1)
    m = jnp.dot(se1, im_w1_ref[...], preferred_element_type=jnp.float32) + im_b1_ref[...]
    m = jnp.dot(m, im_w2_ref[...], preferred_element_type=jnp.float32) + im_b2_ref[...]
    y2 = jax.nn.sigmoid(
        jnp.dot(m, im_rw_ref[...], preferred_element_type=jnp.float32)
        + im_rb_ref[...])

    y1_ref[...] = y1
    y2_ref[...] = y2
    diff_ref[...] = y1 - y2


# ----------------------------------------------------------------------------
# Wrapper
# ----------------------------------------------------------------------------
_VMEM = pl.BlockSpec(memory_space=pltpu.MemorySpace.VMEM)


def rnd_forward(ids_bt, params, *, hidden_dim, vocab, layers):
    """Equivalent of RND.forward. ids_bt: (B, T) int32 token ids.
    Returns (y1 - y2, y1, y2), each (B, 1) float32."""
    B, T = ids_bt.shape
    ids_tm = jnp.transpose(ids_bt).reshape(T * B, 1).astype(jnp.int32)
    kernel = functools.partial(_rnd_kernel, T=T, B=B, H=hidden_dim,
                               V=vocab, L=layers)
    out_shape = (jax.ShapeDtypeStruct((B, 1), jnp.float32),) * 3
    return pl.pallas_call(
        kernel,
        out_shape=out_shape,
        in_specs=[_VMEM] * 13,
        out_specs=(_VMEM, _VMEM, _VMEM),
        scratch_shapes=[pltpu.VMEM((T * B, hidden_dim), jnp.float32),
                        pltpu.VMEM((T * B, hidden_dim), jnp.float32)],
    )(ids_tm, params["emb"], params["w_ih"], params["w_hh"], params["b"],
      params["rnd_rw"], params["rnd_rb"],
      params["im_w1"], params["im_b1"], params["im_w2"], params["im_b2"],
      params["im_rw"], params["im_rb"])


# ----------------------------------------------------------------------------
# Deterministic parameter init (matches the PyTorch module's shapes).
# NOTE: RND.__init__'s scaled-orthogonal re-init of the LSTM weight matrices is
# parameter surgery at construction time, not forward-pass semantics; any
# deterministic weights exercise the same forward path.
# ----------------------------------------------------------------------------
def init_params(key, vocab, hidden_dim, mlp_hidden, layers):
    H, M, V, L = hidden_dim, mlp_hidden, vocab, layers

    def uniform(k, shape, bound):
        return jax.random.uniform(k, shape, jnp.float32, -bound, bound)

    lstm_bound = 1.0 / (H ** 0.5)
    emb, w_ih, w_hh, b = [], [], [], []
    for _enc in range(2):                       # enc 0 = rnd, enc 1 = imitate
        key, ek = jax.random.split(key)
        emb.append(jax.random.normal(ek, (V, H), jnp.float32))
        for _layer in range(L):
            key, k1, k2, k3, k4 = jax.random.split(key, 5)
            w_ih.append(uniform(k1, (4 * H, H), lstm_bound).T)   # (H, 4H)
            w_hh.append(uniform(k2, (4 * H, H), lstm_bound).T)   # (H, 4H)
            b.append((uniform(k3, (4 * H,), lstm_bound)
                      + uniform(k4, (4 * H,), lstm_bound)).reshape(1, 4 * H))

    key, k1, k2, k3, k4, k5, k6, k7, k8 = jax.random.split(key, 9)
    h_bound = 1.0 / (H ** 0.5)
    m_bound = 1.0 / (M ** 0.5)
    return dict(
        emb=jnp.stack(emb),                 # (2, V, H)
        w_ih=jnp.stack(w_ih),               # (2L, H, 4H)
        w_hh=jnp.stack(w_hh),               # (2L, H, 4H)
        b=jnp.stack(b),                     # (2L, 1, 4H)
        # rnd head: regressor Linear(H, 1) (weight ~ N(0,1) like the module)
        rnd_rw=jnp.transpose(jax.random.normal(k1, (1, H), jnp.float32)),   # (H, 1)
        rnd_rb=uniform(k2, (1, 1), h_bound),
        # imitate head: MLP Linear(H, M), Linear(M, M); regressor Linear(M, 1)
        im_w1=jnp.transpose(uniform(k3, (M, H), h_bound)),                  # (H, M)
        im_b1=uniform(k4, (1, M), h_bound),
        im_w2=jnp.transpose(uniform(k5, (M, M), m_bound)),                  # (M, M)
        im_b2=uniform(k6, (1, M), m_bound),
        im_rw=jnp.transpose(jax.random.normal(k7, (1, M), jnp.float32)),    # (M, 1)
        im_rb=uniform(k8, (1, 1), m_bound),
    )


# ----------------------------------------------------------------------------
# Pure-JAX reference (correctness check for the fused Pallas kernel)
# ----------------------------------------------------------------------------
def _ref_l2_normalize(x, eps=1e-12):
    n = jnp.sqrt(jnp.sum(x * x, axis=-1, keepdims=True))
    return x / jnp.maximum(n, eps)


def _ref_lstm_layer(x_tbh, w_ih_t, w_hh_t, b, H):
    Bsz = x_tbh.shape[1]

    def step(carry, x_t):
        h, c = carry
        gates = x_t @ w_ih_t + h @ w_hh_t + b
        i = jax.nn.sigmoid(gates[:, 0 * H:1 * H])
        f = jax.nn.sigmoid(gates[:, 1 * H:2 * H])
        g = jnp.tanh(gates[:, 2 * H:3 * H])
        o = jax.nn.sigmoid(gates[:, 3 * H:4 * H])
        c = f * c + i * g
        h = o * jnp.tanh(c)
        return (h, c), h

    init = (jnp.zeros((Bsz, H), jnp.float32), jnp.zeros((Bsz, H), jnp.float32))
    _, hs = lax.scan(step, init, x_tbh)
    return hs


def ref_forward(ids_bt, params, hidden_dim, layers):
    H, L = hidden_dim, layers
    outs = []
    for enc in range(2):
        x = params["emb"][enc][ids_bt]                           # (B, T, H)
        x = jnp.transpose(x, (1, 0, 2)).astype(jnp.float32)      # (T, B, H)
        for layer in range(L):
            k = enc * L + layer
            x = _ref_lstm_layer(x, params["w_ih"][k], params["w_hh"][k],
                                params["b"][k], H)
        out = _ref_l2_normalize(x)                               # (T, B, H)
        seq_emb = _ref_l2_normalize(jnp.mean(out, axis=0))       # (B, H)
        if enc == 0:
            y = jax.nn.sigmoid(seq_emb @ params["rnd_rw"] + params["rnd_rb"])
        else:
            m = seq_emb @ params["im_w1"] + params["im_b1"]
            m = m @ params["im_w2"] + params["im_b2"]
            y = jax.nn.sigmoid(m @ params["im_rw"] + params["im_rb"])
        outs.append(y)
    return outs[0] - outs[1], outs[0], outs[1]


# ----------------------------------------------------------------------------
if __name__ == "__main__":
    VOCAB = 12
    HIDDEN_DIM = 16      # config.hidden_dim
    MLP_HIDDEN = 8       # config.hidden_dim_1
    LAYERS = 2           # config.layers_num
    BATCH = 2
    SEQ = 8

    key = jax.random.PRNGKey(0)
    key, pkey, xkey = jax.random.split(key, 3)

    params = init_params(pkey, VOCAB, HIDDEN_DIM, MLP_HIDDEN, LAYERS)
    ids = jax.random.randint(xkey, (BATCH, SEQ), 0, VOCAB, dtype=jnp.int32)

    diff, y1, y2 = rnd_forward(ids, params, hidden_dim=HIDDEN_DIM,
                               vocab=VOCAB, layers=LAYERS)
    diff, y1, y2 = jax.block_until_ready((diff, y1, y2))

    d_ref, y1_ref, y2_ref = ref_forward(ids, params, HIDDEN_DIM, LAYERS)

    assert diff.shape == (BATCH, 1)
    assert y1.shape == (BATCH, 1) and y2.shape == (BATCH, 1)
    assert jnp.allclose(y1, y1_ref, atol=1e-4, rtol=1e-4)
    assert jnp.allclose(y2, y2_ref, atol=1e-4, rtol=1e-4)
    assert jnp.allclose(diff, d_ref, atol=1e-4, rtol=1e-4)

    print("KERNEL_OK")
</pallas_src>

<mosaic_0001>
module attributes {stable_mosaic.version = 11 : i64} {
  func.func @_rnd_kernel(%arg0: memref<16x1xi32, #tpu.memory_space<vmem>>, %arg1: memref<2x12x16xf32, #tpu.memory_space<vmem>>, %arg2: memref<4x16x64xf32, #tpu.memory_space<vmem>>, %arg3: memref<4x16x64xf32, #tpu.memory_space<vmem>>, %arg4: memref<4x1x64xf32, #tpu.memory_space<vmem>>, %arg5: memref<16x1xf32, #tpu.memory_space<vmem>>, %arg6: memref<1x1xf32, #tpu.memory_space<vmem>>, %arg7: memref<16x8xf32, #tpu.memory_space<vmem>>, %arg8: memref<1x8xf32, #tpu.memory_space<vmem>>, %arg9: memref<8x8xf32, #tpu.memory_space<vmem>>, %arg10: memref<1x8xf32, #tpu.memory_space<vmem>>, %arg11: memref<8x1xf32, #tpu.memory_space<vmem>>, %arg12: memref<1x1xf32, #tpu.memory_space<vmem>>, %arg13: memref<2x1xf32, #tpu.memory_space<vmem>>, %arg14: memref<2x1xf32, #tpu.memory_space<vmem>>, %arg15: memref<2x1xf32, #tpu.memory_space<vmem>>, %arg16: memref<16x16xf32, #tpu.memory_space<vmem>>, %arg17: memref<16x16xf32, #tpu.memory_space<vmem>>) attributes {dimension_semantics = [], scalar_prefetch = 0 : i64, scratch_operands = 2 : i64, tpu.core_type = #tpu.core_type<tc>} {
    %c0 = arith.constant 0 : index
    %c0_0 = arith.constant 0 : index
    %0 = vector.load %arg0[%c0, %c0_0] : memref<16x1xi32, #tpu.memory_space<vmem>>, vector<16x1xi32>
    %1 = tpu.iota {dimensions = array<i32: 1>} : vector<16x12xi32>
    %2 = vector.broadcast %0 : vector<16x1xi32> to vector<16x12xi32>
    %3 = arith.cmpi eq, %1, %2 : vector<16x12xi32>
    %4 = arith.extui %3 : vector<16x12xi1> to vector<16x12xi32>
    %5 = arith.sitofp %4 : vector<16x12xi32> to vector<16x12xf32>
    %c0_1 = arith.constant 0 : index
    %c0_2 = arith.constant 0 : index
    %c0_3 = arith.constant 0 : index
    %6 = vector.load %arg1[%c0_1, %c0_2, %c0_3] : memref<2x12x16xf32, #tpu.memory_space<vmem>>, vector<1x12x16xf32>
    %7 = vector.shape_cast %6 : vector<1x12x16xf32> to vector<12x16xf32>
    %cst = arith.constant dense<0.000000e+00> : vector<16x16xf32>
    %8 = tpu.matmul %5, %7, %cst {dimension_numbers = #tpu.dot_dimension_numbers<[1], [0], [0], [1], [0, 0, 1, 1], [], []>} : vector<16x12xf32>, vector<12x16xf32>, vector<16x16xf32> -> vector<16x16xf32>
    %c0_4 = arith.constant 0 : index
    %c0_5 = arith.constant 0 : index
    %9 = vector.load %arg16[%c0_4, %c0_5] : memref<16x16xf32, #tpu.memory_space<vmem>>, vector<16x16xf32>
    tpu.vector_store %arg16[%c0_4, %c0_5], %8 {strides = array<i32>} : memref<16x16xf32, #tpu.memory_space<vmem>>, vector<16x16xf32>,
    %c0_6 = arith.constant 0 : index
    %c0_7 = arith.constant 0 : index
    %10 = vector.load %arg16[%c0_6, %c0_7] : memref<16x16xf32, #tpu.memory_space<vmem>>, vector<16x16xf32>
    %c0_8 = arith.constant 0 : index
    %c0_9 = arith.constant 0 : index
    %c0_10 = arith.constant 0 : index
    %11 = vector.load %arg2[%c0_8, %c0_9, %c0_10] : memref<4x16x64xf32, #tpu.memory_space<vmem>>, vector<1x16x64xf32>
    %12 = vector.shape_cast %11 : vector<1x16x64xf32> to vector<16x64xf32>
    %cst_11 = arith.constant dense<0.000000e+00> : vector<16x64xf32>
    %13 = tpu.matmul %10, %12, %cst_11 {dimension_numbers = #tpu.dot_dimension_numbers<[1], [0], [0], [1], [0, 0, 1, 1], [], []>} : vector<16x16xf32>, vector<16x64xf32>, vector<16x64xf32> -> vector<16x64xf32>
    %c0_12 = arith.constant 0 : index
    %c0_13 = arith.constant 0 : index
    %c0_14 = arith.constant 0 : index
    %14 = vector.load %arg4[%c0_12, %c0_13, %c0_14] : memref<4x1x64xf32, #tpu.memory_space<vmem>>, vector<1x1x64xf32>
    %15 = vector.shape_cast %14 : vector<1x1x64xf32> to vector<1x64xf32>
    %16 = vector.broadcast %15 : vector<1x64xf32> to vector<16x64xf32>
    %17 = arith.addf %13, %16 : vector<16x64xf32>
    %c0_15 = arith.constant 0 : index
    %c0_16 = arith.constant 0 : index
    %c0_17 = arith.constant 0 : index
    %18 = vector.load %arg3[%c0_15, %c0_16, %c0_17] : memref<4x16x64xf32, #tpu.memory_space<vmem>>, vector<1x16x64xf32>
    %19 = vector.shape_cast %18 : vector<1x16x64xf32> to vector<16x64xf32>
    %cst_18 = arith.constant 0.000000e+00 : f32
    %20 = vector.broadcast %cst_18 : f32 to vector<2x16xf32>
    %cst_19 = arith.constant 0.000000e+00 : f32
    %21 = vector.broadcast %cst_19 : f32 to vector<2x16xf32>
    %22 = vector.extract_strided_slice %17 {offsets = [0, 0], sizes = [2, 64], strides = [1, 1]} : vector<16x64xf32> to vector<2x64xf32>
    %cst_20 = arith.constant dense<0.000000e+00> : vector<2x64xf32>
    %23 = tpu.matmul %20, %19, %cst_20 {dimension_numbers = #tpu.dot_dimension_numbers<[1], [0], [0], [1], [0, 0, 1, 1], [], []>} : vector<2x16xf32>, vector<16x64xf32>, vector<2x64xf32> -> vector<2x64xf32>
    %24 = arith.addf %22, %23 : vector<2x64xf32>
    %25 = arith.negf %24 : vector<2x64xf32>
    %26 = math.exp %25 : vector<2x64xf32>
    %cst_21 = arith.constant 1.000000e+00 : f32
    %27 = vector.broadcast %cst_21 : f32 to vector<2x64xf32>
    %28 = arith.addf %27, %26 : vector<2x64xf32>
    %29 = arith.divf %27, %28 : vector<2x64xf32>
    %30 = vector.extract_strided_slice %29 {offsets = [0, 0], sizes = [2, 16], strides = [1, 1]} : vector<2x64xf32> to vector<2x16xf32>
    %31 = vector.extract_strided_slice %29 {offsets = [0, 16], sizes = [2, 16], strides = [1, 1]} : vector<2x64xf32> to vector<2x16xf32>
    %32 = vector.extract_strided_slice %29 {offsets = [0, 48], sizes = [2, 16], strides = [1, 1]} : vector<2x64xf32> to vector<2x16xf32>
    %33 = vector.extract_strided_slice %24 {offsets = [0, 32], sizes = [2, 16], strides = [1, 1]} : vector<2x64xf32> to vector<2x16xf32>
    %34 = math.tanh %33 : vector<2x16xf32>
    %35 = arith.mulf %31, %21 : vector<2x16xf32>
    %36 = arith.mulf %30, %34 : vector<2x16xf32>
    %37 = arith.addf %35, %36 : vector<2x16xf32>
    %38 = math.tanh %37 : vector<2x16xf32>
    %39 = arith.mulf %32, %38 : vector<2x16xf32>
    %c0_22 = arith.constant 0 : index
    %c0_23 = arith.constant 0 : index
    %40 = vector.load %arg17[%c0_22, %c0_23] : memref<16x16xf32, #tpu.memory_space<vmem>>, vector<2x16xf32>
    tpu.vector_store %arg17[%c0_22, %c0_23], %39 {strides = array<i32>} : memref<16x16xf32, #tpu.memory_space<vmem>>, vector<2x16xf32>,
    %41 = vector.extract_strided_slice %17 {offsets = [2, 0], sizes = [2, 64], strides = [1, 1]} : vector<16x64xf32> to vector<2x64xf32>
    %cst_24 = arith.constant dense<0.000000e+00> : vector<2x64xf32>
    %42 = tpu.matmul %39, %19, %cst_24 {dimension_numbers = #tpu.dot_dimension_numbers<[1], [0], [0], [1], [0, 0, 1, 1], [], []>} : vector<2x16xf32>, vector<16x64xf32>, vector<2x64xf32> -> vector<2x64xf32>
    %43 = arith.addf %41, %42 : vector<2x64xf32>
    %44 = arith.negf %43 : vector<2x64xf32>
    %45 = math.exp %44 : vector<2x64xf32>
    %cst_25 = arith.constant 1.000000e+00 : f32
    %46 = vector.broadcast %cst_25 : f32 to vector<2x64xf32>
    %47 = arith.addf %46, %45 : vector<2x64xf32>
    %48 = arith.divf %46, %47 : vector<2x64xf32>
    %49 = vector.extract_strided_slice %48 {offsets = [0, 0], sizes = [2, 16], strides = [1, 1]} : vector<2x64xf32> to vector<2x16xf32>
    %50 = vector.extract_strided_slice %48 {offsets = [0, 16], sizes = [2, 16], strides = [1, 1]} : vector<2x64xf32> to vector<2x16xf32>
    %51 = vector.extract_strided_slice %48 {offsets = [0, 48], sizes = [2, 16], strides = [1, 1]} : vector<2x64xf32> to vector<2x16xf32>
    %52 = vector.extract_strided_slice %43 {offsets = [0, 32], sizes = [2, 16], strides = [1, 1]} : vector<2x64xf32> to vector<2x16xf32>
    %53 = math.tanh %52 : vector<2x16xf32>
    %54 = arith.mulf %50, %37 : vector<2x16xf32>
    %55 = arith.mulf %49, %53 : vector<2x16xf32>
    %56 = arith.addf %54, %55 : vector<2x16xf32>
    %57 = math.tanh %56 : vector<2x16xf32>
    %58 = arith.mulf %51, %57 : vector<2x16xf32>
    %c2 = arith.constant 2 : index
    %c0_26 = arith.constant 0 : index
    %59 = vector.load %arg17[%c2, %c0_26] : memref<16x16xf32, #tpu.memory_space<vmem>>, vector<2x16xf32>
    tpu.vector_store %arg17[%c2, %c0_26], %58 {strides = array<i32>} : memref<16x16xf32, #tpu.memory_space<vmem>>, vector<2x16xf32>,
    %60 = vector.extract_strided_slice %17 {offsets = [4, 0], sizes = [2, 64], strides = [1, 1]} : vector<16x64xf32> to vector<2x64xf32>
    %cst_27 = arith.constant dense<0.000000e+00> : vector<2x64xf32>
    %61 = tpu.matmul %58, %19, %cst_27 {dimension_numbers = #tpu.dot_dimension_numbers<[1], [0], [0], [1], [0, 0, 1, 1], [], []>} : vector<2x16xf32>, vector<16x64xf32>, vector<2x64xf32> -> vector<2x64xf32>
    %62 = arith.addf %60, %61 : vector<2x64xf32>
    %63 = arith.negf %62 : vector<2x64xf32>
    %64 = math.exp %63 : vector<2x64xf32>
    %cst_28 = arith.constant 1.000000e+00 : f32
    %65 = vector.broadcast %cst_28 : f32 to vector<2x64xf32>
    %66 = arith.addf %65, %64 : vector<2x64xf32>
    %67 = arith.divf %65, %66 : vector<2x64xf32>
    %68 = vector.extract_strided_slice %67 {offsets = [0, 0], sizes = [2, 16], strides = [1, 1]} : vector<2x64xf32> to vector<2x16xf32>
    %69 = vector.extract_strided_slice %67 {offsets = [0, 16], sizes = [2, 16], strides = [1, 1]} : vector<2x64xf32> to vector<2x16xf32>
    %70 = vector.extract_strided_slice %67 {offsets = [0, 48], sizes = [2, 16], strides = [1, 1]} : vector<2x64xf32> to vector<2x16xf32>
    %71 = vector.extract_strided_slice %62 {offsets = [0, 32], sizes = [2, 16], strides = [1, 1]} : vector<2x64xf32> to vector<2x16xf32>
    %72 = math.tanh %71 : vector<2x16xf32>
    %73 = arith.mulf %69, %56 : vector<2x16xf32>
    %74 = arith.mulf %68, %72 : vector<2x16xf32>
    %75 = arith.addf %73, %74 : vector<2x16xf32>
    %76 = math.tanh %75 : vector<2x16xf32>
    %77 = arith.mulf %70, %76 : vector<2x16xf32>
    %c4 = arith.constant 4 : index
    %c0_29 = arith.constant 0 : index
    %78 = vector.load %arg17[%c4, %c0_29] : memref<16x16xf32, #tpu.memory_space<vmem>>, vector<2x16xf32>
    tpu.vector_store %arg17[%c4, %c0_29], %77 {strides = array<i32>} : memref<16x16xf32, #tpu.memory_space<vmem>>, vector<2x16xf32>,
    %79 = vector.extract_strided_slice %17 {offsets = [6, 0], sizes = [2, 64], strides = [1, 1]} : vector<16x64xf32> to vector<2x64xf32>
    %cst_30 = arith.constant dense<0.000000e+00> : vector<2x64xf32>
    %80 = tpu.matmul %77, %19, %cst_30 {dimension_numbers = #tpu.dot_dimension_numbers<[1], [0], [0], [1], [0, 0, 1, 1], [], []>} : vector<2x16xf32>, vector<16x64xf32>, vector<2x64xf32> -> vector<2x64xf32>
    %81 = arith.addf %79, %80 : vector<2x64xf32>
    %82 = arith.negf %81 : vector<2x64xf32>
    %83 = math.exp %82 : vector<2x64xf32>
    %cst_31 = arith.constant 1.000000e+00 : f32
    %84 = vector.broadcast %cst_31 : f32 to vector<2x64xf32>
    %85 = arith.addf %84, %83 : vector<2x64xf32>
    %86 = arith.divf %84, %85 : vector<2x64xf32>
    %87 = vector.extract_strided_slice %86 {offsets = [0, 0], sizes = [2, 16], strides = [1, 1]} : vector<2x64xf32> to vector<2x16xf32>
    %88 = vector.extract_strided_slice %86 {offsets = [0, 16], sizes = [2, 16], strides = [1, 1]} : vector<2x64xf32> to vector<2x16xf32>
    %89 = vector.extract_strided_slice %86 {offsets = [0, 48], sizes = [2, 16], strides = [1, 1]} : vector<2x64xf32> to vector<2x16xf32>
    %90 = vector.extract_strided_slice %81 {offsets = [0, 32], sizes = [2, 16], strides = [1, 1]} : vector<2x64xf32> to vector<2x16xf32>
    %91 = math.tanh %90 : vector<2x16xf32>
    %92 = arith.mulf %88, %75 : vector<2x16xf32>
    %93 = arith.mulf %87, %91 : vector<2x16xf32>
    %94 = arith.addf %92, %93 : vector<2x16xf32>
    %95 = math.tanh %94 : vector<2x16xf32>
    %96 = arith.mulf %89, %95 : vector<2x16xf32>
    %c6 = arith.constant 6 : index
    %c0_32 = arith.constant 0 : index
    %97 = vector.load %arg17[%c6, %c0_32] : memref<16x16xf32, #tpu.memory_space<vmem>>, vector<2x16xf32>
    tpu.vector_store %arg17[%c6, %c0_32], %96 {strides = array<i32>} : memref<16x16xf32, #tpu.memory_space<vmem>>, vector<2x16xf32>,
    %98 = vector.extract_strided_slice %17 {offsets = [8, 0], sizes = [2, 64], strides = [1, 1]} : vector<16x64xf32> to vector<2x64xf32>
    %cst_33 = arith.constant dense<0.000000e+00> : vector<2x64xf32>
    %99 = tpu.matmul %96, %19, %cst_33 {dimension_numbers = #tpu.dot_dimension_numbers<[1], [0], [0], [1], [0, 0, 1, 1], [], []>} : vector<2x16xf32>, vector<16x64xf32>, vector<2x64xf32> -> vector<2x64xf32>
    %100 = arith.addf %98, %99 : vector<2x64xf32>
    %101 = arith.negf %100 : vector<2x64xf32>
    %102 = math.exp %101 : vector<2x64xf32>
    %cst_34 = arith.constant 1.000000e+00 : f32
    %103 = vector.broadcast %cst_34 : f32 to vector<2x64xf32>
    %104 = arith.addf %103, %102 : vector<2x64xf32>
    %105 = arith.divf %103, %104 : vector<2x64xf32>
    %106 = vector.extract_strided_slice %105 {offsets = [0, 0], sizes = [2, 16], strides = [1, 1]} : vector<2x64xf32> to vector<2x16xf32>
    %107 = vector.extract_strided_slice %105 {offsets = [0, 16], sizes = [2, 16], strides = [1, 1]} : vector<2x64xf32> to vector<2x16xf32>
    %108 = vector.extract_strided_slice %105 {offsets = [0, 48], sizes = [2, 16], strides = [1, 1]} : vector<2x64xf32> to vector<2x16xf32>
    %109 = vector.extract_strided_slice %100 {offsets = [0, 32], sizes = [2, 16], strides = [1, 1]} : vector<2x64xf32> to vector<2x16xf32>
    %110 = math.tanh %109 : vector<2x16xf32>
    %111 = arith.mulf %107, %94 : vector<2x16xf32>
    %112 = arith.mulf %106, %110 : vector<2x16xf32>
    %113 = arith.addf %111, %112 : vector<2x16xf32>
    %114 = math.tanh %113 : vector<2x16xf32>
    %115 = arith.mulf %108, %114 : vector<2x16xf32>
    %c8 = arith.constant 8 : index
    %c0_35 = arith.constant 0 : index
    %116 = vector.load %arg17[%c8, %c0_35] : memref<16x16xf32, #tpu.memory_space<vmem>>, vector<2x16xf32>
    tpu.vector_store %arg17[%c8, %c0_35], %115 {strides = array<i32>} : memref<16x16xf32, #tpu.memory_space<vmem>>, vector<2x16xf32>,
    %117 = vector.extract_strided_slice %17 {offsets = [10, 0], sizes = [2, 64], strides = [1, 1]} : vector<16x64xf32> to vector<2x64xf32>
    %cst_36 = arith.constant dense<0.000000e+00> : vector<2x64xf32>
    %118 = tpu.matmul %115, %19, %cst_36 {dimension_numbers = #tpu.dot_dimension_numbers<[1], [0], [0], [1], [0, 0, 1, 1], [], []>} : vector<2x16xf32>, vector<16x64xf32>, vector<2x64xf32> -> vector<2x64xf32>
    %119 = arith.addf %117, %118 : vector<2x64xf32>
    %120 = arith.negf %119 : vector<2x64xf32>
    %121 = math.exp %120 : vector<2x64xf32>
    %cst_37 = arith.constant 1.000000e+00 : f32
    %122 = vector.broadcast %cst_37 : f32 to vector<2x64xf32>
    %123 = arith.addf %122, %121 : vector<2x64xf32>
    %124 = arith.divf %122, %123 : vector<2x64xf32>
    %125 = vector.extract_strided_slice %124 {offsets = [0, 0], sizes = [2, 16], strides = [1, 1]} : vector<2x64xf32> to vector<2x16xf32>
    %126 = vector.extract_strided_slice %124 {offsets = [0, 16], sizes = [2, 16], strides = [1, 1]} : vector<2x64xf32> to vector<2x16xf32>
    %127 = vector.extract_strided_slice %124 {offsets = [0, 48], sizes = [2, 16], strides = [1, 1]} : vector<2x64xf32> to vector<2x16xf32>
    %128 = vector.extract_strided_slice %119 {offsets = [0, 32], sizes = [2, 16], strides = [1, 1]} : vector<2x64xf32> to vector<2x16xf32>
    %129 = math.tanh %128 : vector<2x16xf32>
    %130 = arith.mulf %126, %113 : vector<2x16xf32>
    %131 = arith.mulf %125, %129 : vector<2x16xf32>
    %132 = arith.addf %130, %131 : vector<2x16xf32>
    %133 = math.tanh %132 : vector<2x16xf32>
    %134 = arith.mulf %127, %133 : vector<2x16xf32>
    %c10 = arith.constant 10 : index
    %c0_38 = arith.constant 0 : index
    %135 = vector.load %arg17[%c10, %c0_38] : memref<16x16xf32, #tpu.memory_space<vmem>>, vector<2x16xf32>
    tpu.vector_store %arg17[%c10, %c0_38], %134 {strides = array<i32>} : memref<16x16xf32, #tpu.memory_space<vmem>>, vector<2x16xf32>,
    %136 = vector.extract_strided_slice %17 {offsets = [12, 0], sizes = [2, 64], strides = [1, 1]} : vector<16x64xf32> to vector<2x64xf32>
    %cst_39 = arith.constant dense<0.000000e+00> : vector<2x64xf32>
    %137 = tpu.matmul %134, %19, %cst_39 {dimension_numbers = #tpu.dot_dimension_numbers<[1], [0], [0], [1], [0, 0, 1, 1], [], []>} : vector<2x16xf32>, vector<16x64xf32>, vector<2x64xf32> -> vector<2x64xf32>
    %138 = arith.addf %136, %137 : vector<2x64xf32>
    %139 = arith.negf %138 : vector<2x64xf32>
    %140 = math.exp %139 : vector<2x64xf32>
    %cst_40 = arith.constant 1.000000e+00 : f32
    %141 = vector.broadcast %cst_40 : f32 to vector<2x64xf32>
    %142 = arith.addf %141, %140 : vector<2x64xf32>
    %143 = arith.divf %141, %142 : vector<2x64xf32>
    %144 = vector.extract_strided_slice %143 {offsets = [0, 0], sizes = [2, 16], strides = [1, 1]} : vector<2x64xf32> to vector<2x16xf32>
    %145 = vector.extract_strided_slice %143 {offsets = [0, 16], sizes = [2, 16], strides = [1, 1]} : vector<2x64xf32> to vector<2x16xf32>
    %146 = vector.extract_strided_slice %143 {offsets = [0, 48], sizes = [2, 16], strides = [1, 1]} : vector<2x64xf32> to vector<2x16xf32>
    %147 = vector.extract_strided_slice %138 {offsets = [0, 32], sizes = [2, 16], strides = [1, 1]} : vector<2x64xf32> to vector<2x16xf32>
    %148 = math.tanh %147 : vector<2x16xf32>
    %149 = arith.mulf %145, %132 : vector<2x16xf32>
    %150 = arith.mulf %144, %148 : vector<2x16xf32>
    %151 = arith.addf %149, %150 : vector<2x16xf32>
    %152 = math.tanh %151 : vector<2x16xf32>
    %153 = arith.mulf %146, %152 : vector<2x16xf32>
    %c12 = arith.constant 12 : index
    %c0_41 = arith.constant 0 : index
    %154 = vector.load %arg17[%c12, %c0_41] : memref<16x16xf32, #tpu.memory_space<vmem>>, vector<2x16xf32>
    tpu.vector_store %arg17[%c12, %c0_41], %153 {strides = array<i32>} : memref<16x16xf32, #tpu.memory_space<vmem>>, vector<2x16xf32>,
    %155 = vector.extract_strided_slice %17 {offsets = [14, 0], sizes = [2, 64], strides = [1, 1]} : vector<16x64xf32> to vector<2x64xf32>
    %cst_42 = arith.constant dense<0.000000e+00> : vector<2x64xf32>
    %156 = tpu.matmul %153, %19, %cst_42 {dimension_numbers = #tpu.dot_dimension_numbers<[1], [0], [0], [1], [0, 0, 1, 1], [], []>} : vector<2x16xf32>, vector<16x64xf32>, vector<2x64xf32> -> vector<2x64xf32>
    %157 = arith.addf %155, %156 : vector<2x64xf32>
    %158 = arith.negf %157 : vector<2x64xf32>
    %159 = math.exp %158 : vector<2x64xf32>
    %cst_43 = arith.constant 1.000000e+00 : f32
    %160 = vector.broadcast %cst_43 : f32 to vector<2x64xf32>
    %161 = arith.addf %160, %159 : vector<2x64xf32>
    %162 = arith.divf %160, %161 : vector<2x64xf32>
    %163 = vector.extract_strided_slice %162 {offsets = [0, 0], sizes = [2, 16], strides = [1, 1]} : vector<2x64xf32> to vector<2x16xf32>
    %164 = vector.extract_strided_slice %162 {offsets = [0, 16], sizes = [2, 16], strides = [1, 1]} : vector<2x64xf32> to vector<2x16xf32>
    %165 = vector.extract_strided_slice %162 {offsets = [0, 48], sizes = [2, 16], strides = [1, 1]} : vector<2x64xf32> to vector<2x16xf32>
    %166 = vector.extract_strided_slice %157 {offsets = [0, 32], sizes = [2, 16], strides = [1, 1]} : vector<2x64xf32> to vector<2x16xf32>
    %167 = math.tanh %166 : vector<2x16xf32>
    %168 = arith.mulf %164, %151 : vector<2x16xf32>
    %169 = arith.mulf %163, %167 : vector<2x16xf32>
    %170 = arith.addf %168, %169 : vector<2x16xf32>
    %171 = math.tanh %170 : vector<2x16xf32>
    %172 = arith.mulf %165, %171 : vector<2x16xf32>
    %c14 = arith.constant 14 : index
    %c0_44 = arith.constant 0 : index
    %173 = vector.load %arg17[%c14, %c0_44] : memref<16x16xf32, #tpu.memory_space<vmem>>, vector<2x16xf32>
    tpu.vector_store %arg17[%c14, %c0_44], %172 {strides = array<i32>} : memref<16x16xf32, #tpu.memory_space<vmem>>, vector<2x16xf32>,
    %c0_45 = arith.constant 0 : index
    %c0_46 = arith.constant 0 : index
    %174 = vector.load %arg17[%c0_45, %c0_46] : memref<16x16xf32, #tpu.memory_space<vmem>>, vector<16x16xf32>
    %c1 = arith.constant 1 : index
    %c0_47 = arith.constant 0 : index
    %c0_48 = arith.constant 0 : index
    %175 = vector.load %arg2[%c1, %c0_47, %c0_48] : memref<4x16x64xf32, #tpu.memory_space<vmem>>, vector<1x16x64xf32>
    %176 = vector.shape_cast %175 : vector<1x16x64xf32> to vector<16x64xf32>
    %cst_49 = arith.constant dense<0.000000e+00> : vector<16x64xf32>
    %177 = tpu.matmul %174, %176, %cst_49 {dimension_numbers = #tpu.dot_dimension_numbers<[1], [0], [0], [1], [0, 0, 1, 1], [], []>} : vector<16x16xf32>, vector<16x64xf32>, vector<16x64xf32> -> vector<16x64xf32>
    %c1_50 = arith.constant 1 : index
    %c0_51 = arith.constant 0 : index
    %c0_52 = arith.constant 0 : index
    %178 = vector.load %arg4[%c1_50, %c0_51, %c0_52] : memref<4x1x64xf32, #tpu.memory_space<vmem>>, vector<1x1x64xf32>
    %179 = vector.shape_cast %178 : vector<1x1x64xf32> to vector<1x64xf32>
    %180 = vector.broadcast %179 : vector<1x64xf32> to vector<16x64xf32>
    %181 = arith.addf %177, %180 : vector<16x64xf32>
    %c1_53 = arith.constant 1 : index
    %c0_54 = arith.constant 0 : index
    %c0_55 = arith.constant 0 : index
    %182 = vector.load %arg3[%c1_53, %c0_54, %c0_55] : memref<4x16x64xf32, #tpu.memory_space<vmem>>, vector<1x16x64xf32>
    %183 = vector.shape_cast %182 : vector<1x16x64xf32> to vector<16x64xf32>
    %cst_56 = arith.constant 0.000000e+00 : f32
    %184 = vector.broadcast %cst_56 : f32 to vector<2x16xf32>
    %cst_57 = arith.constant 0.000000e+00 : f32
    %185 = vector.broadcast %cst_57 : f32 to vector<2x16xf32>
    %186 = vector.extract_strided_slice %181 {offsets = [0, 0], sizes = [2, 64], strides = [1, 1]} : vector<16x64xf32> to vector<2x64xf32>
    %cst_58 = arith.constant dense<0.000000e+00> : vector<2x64xf32>
    %187 = tpu.matmul %184, %183, %cst_58 {dimension_numbers = #tpu.dot_dimension_numbers<[1], [0], [0], [1], [0, 0, 1, 1], [], []>} : vector<2x16xf32>, vector<16x64xf32>, vector<2x64xf32> -> vector<2x64xf32>
    %188 = arith.addf %186, %187 : vector<2x64xf32>
    %189 = arith.negf %188 : vector<2x64xf32>
    %190 = math.exp %189 : vector<2x64xf32>
    %cst_59 = arith.constant 1.000000e+00 : f32
    %191 = vector.broadcast %cst_59 : f32 to vector<2x64xf32>
    %192 = arith.addf %191, %190 : vector<2x64xf32>
    %193 = arith.divf %191, %192 : vector<2x64xf32>
    %194 = vector.extract_strided_slice %193 {offsets = [0, 0], sizes = [2, 16], strides = [1, 1]} : vector<2x64xf32> to vector<2x16xf32>
    %195 = vector.extract_strided_slice %193 {offsets = [0, 16], sizes = [2, 16], strides = [1, 1]} : vector<2x64xf32> to vector<2x16xf32>
    %196 = vector.extract_strided_slice %193 {offsets = [0, 48], sizes = [2, 16], strides = [1, 1]} : vector<2x64xf32> to vector<2x16xf32>
    %197 = vector.extract_strided_slice %188 {offsets = [0, 32], sizes = [2, 16], strides = [1, 1]} : vector<2x64xf32> to vector<2x16xf32>
    %198 = math.tanh %197 : vector<2x16xf32>
    %199 = arith.mulf %195, %185 : vector<2x16xf32>
    %200 = arith.mulf %194, %198 : vector<2x16xf32>
    %201 = arith.addf %199, %200 : vector<2x16xf32>
    %202 = math.tanh %201 : vector<2x16xf32>
    %203 = arith.mulf %196, %202 : vector<2x16xf32>
    %c0_60 = arith.constant 0 : index
    %c0_61 = arith.constant 0 : index
    %204 = vector.load %arg16[%c0_60, %c0_61] : memref<16x16xf32, #tpu.memory_space<vmem>>, vector<2x16xf32>
    tpu.vector_store %arg16[%c0_60, %c0_61], %203 {strides = array<i32>} : memref<16x16xf32, #tpu.memory_space<vmem>>, vector<2x16xf32>,
    %205 = vector.extract_strided_slice %181 {offsets = [2, 0], sizes = [2, 64], strides = [1, 1]} : vector<16x64xf32> to vector<2x64xf32>
    %cst_62 = arith.constant dense<0.000000e+00> : vector<2x64xf32>
    %206 = tpu.matmul %203, %183, %cst_62 {dimension_numbers = #tpu.dot_dimension_numbers<[1], [0], [0], [1], [0, 0, 1, 1], [], []>} : vector<2x16xf32>, vector<16x64xf32>, vector<2x64xf32> -> vector<2x64xf32>
    %207 = arith.addf %205, %206 : vector<2x64xf32>
    %208 = arith.negf %207 : vector<2x64xf32>
    %209 = math.exp %208 : vector<2x64xf32>
    %cst_63 = arith.constant 1.000000e+00 : f32
    %210 = vector.broadcast %cst_63 : f32 to vector<2x64xf32>
    %211 = arith.addf %210, %209 : vector<2x64xf32>
    %212 = arith.divf %210, %211 : vector<2x64xf32>
    %213 = vector.extract_strided_slice %212 {offsets = [0, 0], sizes = [2, 16], strides = [1, 1]} : vector<2x64xf32> to vector<2x16xf32>
    %214 = vector.extract_strided_slice %212 {offsets = [0, 16], sizes = [2, 16], strides = [1, 1]} : vector<2x64xf32> to vector<2x16xf32>
    %215 = vector.extract_strided_slice %212 {offsets = [0, 48], sizes = [2, 16], strides = [1, 1]} : vector<2x64xf32> to vector<2x16xf32>
    %216 = vector.extract_strided_slice %207 {offsets = [0, 32], sizes = [2, 16], strides = [1, 1]} : vector<2x64xf32> to vector<2x16xf32>
    %217 = math.tanh %216 : vector<2x16xf32>
    %218 = arith.mulf %214, %201 : vector<2x16xf32>
    %219 = arith.mulf %213, %217 : vector<2x16xf32>
    %220 = arith.addf %218, %219 : vector<2x16xf32>
    %221 = math.tanh %220 : vector<2x16xf32>
    %222 = arith.mulf %215, %221 : vector<2x16xf32>
    %c2_64 = arith.constant 2 : index
    %c0_65 = arith.constant 0 : index
    %223 = vector.load %arg16[%c2_64, %c0_65] : memref<16x16xf32, #tpu.memory_space<vmem>>, vector<2x16xf32>
    tpu.vector_store %arg16[%c2_64, %c0_65], %222 {strides = array<i32>} : memref<16x16xf32, #tpu.memory_space<vmem>>, vector<2x16xf32>,
    %224 = vector.extract_strided_slice %181 {offsets = [4, 0], sizes = [2, 64], strides = [1, 1]} : vector<16x64xf32> to vector<2x64xf32>
    %cst_66 = arith.constant dense<0.000000e+00> : vector<2x64xf32>
    %225 = tpu.matmul %222, %183, %cst_66 {dimension_numbers = #tpu.dot_dimension_numbers<[1], [0], [0], [1], [0, 0, 1, 1], [], []>} : vector<2x16xf32>, vector<16x64xf32>, vector<2x64xf32> -> vector<2x64xf32>
    %226 = arith.addf %224, %225 : vector<2x64xf32>
    %227 = arith.negf %226 : vector<2x64xf32>
    %228 = math.exp %227 : vector<2x64xf32>
    %cst_67 = arith.constant 1.000000e+00 : f32
    %229 = vector.broadcast %cst_67 : f32 to vector<2x64xf32>
    %230 = arith.addf %229, %228 : vector<2x64xf32>
    %231 = arith.divf %229, %230 : vector<2x64xf32>
    %232 = vector.extract_strided_slice %231 {offsets = [0, 0], sizes = [2, 16], strides = [1, 1]} : vector<2x64xf32> to vector<2x16xf32>
    %233 = vector.extract_strided_slice %231 {offsets = [0, 16], sizes = [2, 16], strides = [1, 1]} : vector<2x64xf32> to vector<2x16xf32>
    %234 = vector.extract_strided_slice %231 {offsets = [0, 48], sizes = [2, 16], strides = [1, 1]} : vector<2x64xf32> to vector<2x16xf32>
    %235 = vector.extract_strided_slice %226 {offsets = [0, 32], sizes = [2, 16], strides = [1, 1]} : vector<2x64xf32> to vector<2x16xf32>
    %236 = math.tanh %235 : vector<2x16xf32>
    %237 = arith.mulf %233, %220 : vector<2x16xf32>
    %238 = arith.mulf %232, %236 : vector<2x16xf32>
    %239 = arith.addf %237, %238 : vector<2x16xf32>
    %240 = math.tanh %239 : vector<2x16xf32>
    %241 = arith.mulf %234, %240 : vector<2x16xf32>
    %c4_68 = arith.constant 4 : index
    %c0_69 = arith.constant 0 : index
    %242 = vector.load %arg16[%c4_68, %c0_69] : memref<16x16xf32, #tpu.memory_space<vmem>>, vector<2x16xf32>
    tpu.vector_store %arg16[%c4_68, %c0_69], %241 {strides = array<i32>} : memref<16x16xf32, #tpu.memory_space<vmem>>, vector<2x16xf32>,
    %243 = vector.extract_strided_slice %181 {offsets = [6, 0], sizes = [2, 64], strides = [1, 1]} : vector<16x64xf32> to vector<2x64xf32>
    %cst_70 = arith.constant dense<0.000000e+00> : vector<2x64xf32>
    %244 = tpu.matmul %241, %183, %cst_70 {dimension_numbers = #tpu.dot_dimension_numbers<[1], [0], [0], [1], [0, 0, 1, 1], [], []>} : vector<2x16xf32>, vector<16x64xf32>, vector<2x64xf32> -> vector<2x64xf32>
    %245 = arith.addf %243, %244 : vector<2x64xf32>
    %246 = arith.negf %245 : vector<2x64xf32>
    %247 = math.exp %246 : vector<2x64xf32>
    %cst_71 = arith.constant 1.000000e+00 : f32
    %248 = vector.broadcast %cst_71 : f32 to vector<2x64xf32>
    %249 = arith.addf %248, %247 : vector<2x64xf32>
    %250 = arith.divf %248, %249 : vector<2x64xf32>
    %251 = vector.extract_strided_slice %250 {offsets = [0, 0], sizes = [2, 16], strides = [1, 1]} : vector<2x64xf32> to vector<2x16xf32>
    %252 = vector.extract_strided_slice %250 {offsets = [0, 16], sizes = [2, 16], strides = [1, 1]} : vector<2x64xf32> to vector<2x16xf32>
    %253 = vector.extract_strided_slice %250 {offsets = [0, 48], sizes = [2, 16], strides = [1, 1]} : vector<2x64xf32> to vector<2x16xf32>
    %254 = vector.extract_strided_slice %245 {offsets = [0, 32], sizes = [2, 16], strides = [1, 1]} : vector<2x64xf32> to vector<2x16xf32>
    %255 = math.tanh %254 : vector<2x16xf32>
    %256 = arith.mulf %252, %239 : vector<2x16xf32>
    %257 = arith.mulf %251, %255 : vector<2x16xf32>
    %258 = arith.addf %256, %257 : vector<2x16xf32>
    %259 = math.tanh %258 : vector<2x16xf32>
    %260 = arith.mulf %253, %259 : vector<2x16xf32>
    %c6_72 = arith.constant 6 : index
    %c0_73 = arith.constant 0 : index
    %261 = vector.load %arg16[%c6_72, %c0_73] : memref<16x16xf32, #tpu.memory_space<vmem>>, vector<2x16xf32>
    tpu.vector_store %arg16[%c6_72, %c0_73], %260 {strides = array<i32>} : memref<16x16xf32, #tpu.memory_space<vmem>>, vector<2x16xf32>,
    %262 = vector.extract_strided_slice %181 {offsets = [8, 0], sizes = [2, 64], strides = [1, 1]} : vector<16x64xf32> to vector<2x64xf32>
    %cst_74 = arith.constant dense<0.000000e+00> : vector<2x64xf32>
    %263 = tpu.matmul %260, %183, %cst_74 {dimension_numbers = #tpu.dot_dimension_numbers<[1], [0], [0], [1], [0, 0, 1, 1], [], []>} : vector<2x16xf32>, vector<16x64xf32>, vector<2x64xf32> -> vector<2x64xf32>
    %264 = arith.addf %262, %263 : vector<2x64xf32>
    %265 = arith.negf %264 : vector<2x64xf32>
    %266 = math.exp %265 : vector<2x64xf32>
    %cst_75 = arith.constant 1.000000e+00 : f32
    %267 = vector.broadcast %cst_75 : f32 to vector<2x64xf32>
    %268 = arith.addf %267, %266 : vector<2x64xf32>
    %269 = arith.divf %267, %268 : vector<2x64xf32>
    %270 = vector.extract_strided_slice %269 {offsets = [0, 0], sizes = [2, 16], strides = [1, 1]} : vector<2x64xf32> to vector<2x16xf32>
    %271 = vector.extract_strided_slice %269 {offsets = [0, 16], sizes = [2, 16], strides = [1, 1]} : vector<2x64xf32> to vector<2x16xf32>
    %272 = vector.extract_strided_slice %269 {offsets = [0, 48], sizes = [2, 16], strides = [1, 1]} : vector<2x64xf32> to vector<2x16xf32>
    %273 = vector.extract_strided_slice %264 {offsets = [0, 32], sizes = [2, 16], strides = [1, 1]} : vector<2x64xf32> to vector<2x16xf32>
    %274 = math.tanh %273 : vector<2x16xf32>
    %275 = arith.mulf %271, %258 : vector<2x16xf32>
    %276 = arith.mulf %270, %274 : vector<2x16xf32>
    %277 = arith.addf %275, %276 : vector<2x16xf32>
    %278 = math.tanh %277 : vector<2x16xf32>
    %279 = arith.mulf %272, %278 : vector<2x16xf32>
    %c8_76 = arith.constant 8 : index
    %c0_77 = arith.constant 0 : index
    %280 = vector.load %arg16[%c8_76, %c0_77] : memref<16x16xf32, #tpu.memory_space<vmem>>, vector<2x16xf32>
    tpu.vector_store %arg16[%c8_76, %c0_77], %279 {strides = array<i32>} : memref<16x16xf32, #tpu.memory_space<vmem>>, vector<2x16xf32>,
    %281 = vector.extract_strided_slice %181 {offsets = [10, 0], sizes = [2, 64], strides = [1, 1]} : vector<16x64xf32> to vector<2x64xf32>
    %cst_78 = arith.constant dense<0.000000e+00> : vector<2x64xf32>
    %282 = tpu.matmul %279, %183, %cst_78 {dimension_numbers = #tpu.dot_dimension_numbers<[1], [0], [0], [1], [0, 0, 1, 1], [], []>} : vector<2x16xf32>, vector<16x64xf32>, vector<2x64xf32> -> vector<2x64xf32>
    %283 = arith.addf %281, %282 : vector<2x64xf32>
    %284 = arith.negf %283 : vector<2x64xf32>
    %285 = math.exp %284 : vector<2x64xf32>
    %cst_79 = arith.constant 1.000000e+00 : f32
    %286 = vector.broadcast %cst_79 : f32 to vector<2x64xf32>
    %287 = arith.addf %286, %285 : vector<2x64xf32>
    %288 = arith.divf %286, %287 : vector<2x64xf32>
    %289 = vector.extract_strided_slice %288 {offsets = [0, 0], sizes = [2, 16], strides = [1, 1]} : vector<2x64xf32> to vector<2x16xf32>
    %290 = vector.extract_strided_slice %288 {offsets = [0, 16], sizes = [2, 16], strides = [1, 1]} : vector<2x64xf32> to vector<2x16xf32>
    %291 = vector.extract_strided_slice %288 {offsets = [0, 48], sizes = [2, 16], strides = [1, 1]} : vector<2x64xf32> to vector<2x16xf32>
    %292 = vector.extract_strided_slice %283 {offsets = [0, 32], sizes = [2, 16], strides = [1, 1]} : vector<2x64xf32> to vector<2x16xf32>
    %293 = math.tanh %292 : vector<2x16xf32>
    %294 = arith.mulf %290, %277 : vector<2x16xf32>
    %295 = arith.mulf %289, %293 : vector<2x16xf32>
    %296 = arith.addf %294, %295 : vector<2x16xf32>
    %297 = math.tanh %296 : vector<2x16xf32>
    %298 = arith.mulf %291, %297 : vector<2x16xf32>
    %c10_80 = arith.constant 10 : index
    %c0_81 = arith.constant 0 : index
    %299 = vector.load %arg16[%c10_80, %c0_81] : memref<16x16xf32, #tpu.memory_space<vmem>>, vector<2x16xf32>
    tpu.vector_store %arg16[%c10_80, %c0_81], %298 {strides = array<i32>} : memref<16x16xf32, #tpu.memory_space<vmem>>, vector<2x16xf32>,
    %300 = vector.extract_strided_slice %181 {offsets = [12, 0], sizes = [2, 64], strides = [1, 1]} : vector<16x64xf32> to vector<2x64xf32>
    %cst_82 = arith.constant dense<0.000000e+00> : vector<2x64xf32>
    %301 = tpu.matmul %298, %183, %cst_82 {dimension_numbers = #tpu.dot_dimension_numbers<[1], [0], [0], [1], [0, 0, 1, 1], [], []>} : vector<2x16xf32>, vector<16x64xf32>, vector<2x64xf32> -> vector<2x64xf32>
    %302 = arith.addf %300, %301 : vector<2x64xf32>
    %303 = arith.negf %302 : vector<2x64xf32>
    %304 = math.exp %303 : vector<2x64xf32>
    %cst_83 = arith.constant 1.000000e+00 : f32
    %305 = vector.broadcast %cst_83 : f32 to vector<2x64xf32>
    %306 = arith.addf %305, %304 : vector<2x64xf32>
    %307 = arith.divf %305, %306 : vector<2x64xf32>
    %308 = vector.extract_strided_slice %307 {offsets = [0, 0], sizes = [2, 16], strides = [1, 1]} : vector<2x64xf32> to vector<2x16xf32>
    %309 = vector.extract_strided_slice %307 {offsets = [0, 16], sizes = [2, 16], strides = [1, 1]} : vector<2x64xf32> to vector<2x16xf32>
    %310 = vector.extract_strided_slice %307 {offsets = [0, 48], sizes = [2, 16], strides = [1, 1]} : vector<2x64xf32> to vector<2x16xf32>
    %311 = vector.extract_strided_slice %302 {offsets = [0, 32], sizes = [2, 16], strides = [1, 1]} : vector<2x64xf32> to vector<2x16xf32>
    %312 = math.tanh %311 : vector<2x16xf32>
    %313 = arith.mulf %309, %296 : vector<2x16xf32>
    %314 = arith.mulf %308, %312 : vector<2x16xf32>
    %315 = arith.addf %313, %314 : vector<2x16xf32>
    %316 = math.tanh %315 : vector<2x16xf32>
    %317 = arith.mulf %310, %316 : vector<2x16xf32>
    %c12_84 = arith.constant 12 : index
    %c0_85 = arith.constant 0 : index
    %318 = vector.load %arg16[%c12_84, %c0_85] : memref<16x16xf32, #tpu.memory_space<vmem>>, vector<2x16xf32>
    tpu.vector_store %arg16[%c12_84, %c0_85], %317 {strides = array<i32>} : memref<16x16xf32, #tpu.memory_space<vmem>>, vector<2x16xf32>,
    %319 = vector.extract_strided_slice %181 {offsets = [14, 0], sizes = [2, 64], strides = [1, 1]} : vector<16x64xf32> to vector<2x64xf32>
    %cst_86 = arith.constant dense<0.000000e+00> : vector<2x64xf32>
    %320 = tpu.matmul %317, %183, %cst_86 {dimension_numbers = #tpu.dot_dimension_numbers<[1], [0], [0], [1], [0, 0, 1, 1], [], []>} : vector<2x16xf32>, vector<16x64xf32>, vector<2x64xf32> -> vector<2x64xf32>
    %321 = arith.addf %319, %320 : vector<2x64xf32>
    %322 = arith.negf %321 : vector<2x64xf32>
    %323 = math.exp %322 : vector<2x64xf32>
    %cst_87 = arith.constant 1.000000e+00 : f32
    %324 = vector.broadcast %cst_87 : f32 to vector<2x64xf32>
    %325 = arith.addf %324, %323 : vector<2x64xf32>
    %326 = arith.divf %324, %325 : vector<2x64xf32>
    %327 = vector.extract_strided_slice %326 {offsets = [0, 0], sizes = [2, 16], strides = [1, 1]} : vector<2x64xf32> to vector<2x16xf32>
    %328 = vector.extract_strided_slice %326 {offsets = [0, 16], sizes = [2, 16], strides = [1, 1]} : vector<2x64xf32> to vector<2x16xf32>
    %329 = vector.extract_strided_slice %326 {offsets = [0, 48], sizes = [2, 16], strides = [1, 1]} : vector<2x64xf32> to vector<2x16xf32>
    %330 = vector.extract_strided_slice %321 {offsets = [0, 32], sizes = [2, 16], strides = [1, 1]} : vector<2x64xf32> to vector<2x16xf32>
    %331 = math.tanh %330 : vector<2x16xf32>
    %332 = arith.mulf %328, %315 : vector<2x16xf32>
    %333 = arith.mulf %327, %331 : vector<2x16xf32>
    %334 = arith.addf %332, %333 : vector<2x16xf32>
    %335 = math.tanh %334 : vector<2x16xf32>
    %336 = arith.mulf %329, %335 : vector<2x16xf32>
    %c14_88 = arith.constant 14 : index
    %c0_89 = arith.constant 0 : index
    %337 = vector.load %arg16[%c14_88, %c0_89] : memref<16x16xf32, #tpu.memory_space<vmem>>, vector<2x16xf32>
    tpu.vector_store %arg16[%c14_88, %c0_89], %336 {strides = array<i32>} : memref<16x16xf32, #tpu.memory_space<vmem>>, vector<2x16xf32>,
    %c0_90 = arith.constant 0 : index
    %c0_91 = arith.constant 0 : index
    %338 = vector.load %arg16[%c0_90, %c0_91] : memref<16x16xf32, #tpu.memory_space<vmem>>, vector<16x16xf32>
    %339 = arith.mulf %338, %338 : vector<16x16xf32>
    %cst_92 = arith.constant dense<0.000000e+00> : vector<16xf32>
    %340 = vector.multi_reduction <add>, %339, %cst_92 [1] : vector<16x16xf32> to vector<16xf32>
    %341 = vector.shape_cast %340 : vector<16xf32> to vector<16x1xf32>
    %342 = math.sqrt %341 : vector<16x1xf32>
    %cst_93 = arith.constant 9.99999996E-13 : f32
    %343 = vector.broadcast %cst_93 : f32 to vector<16x1xf32>
    %344 = arith.maximumf %342, %343 : vector<16x1xf32>
    %345 = vector.broadcast %344 : vector<16x1xf32> to vector<16x16xf32>
    %346 = arith.divf %338, %345 : vector<16x16xf32>
    %cst_94 = arith.constant 0.000000e+00 : f32
    %347 = vector.broadcast %cst_94 : f32 to vector<2x16xf32>
    %348 = vector.extract_strided_slice %346 {offsets = [0, 0], sizes = [2, 16], strides = [1, 1]} : vector<16x16xf32> to vector<2x16xf32>
    %349 = arith.addf %347, %348 : vector<2x16xf32>
    %350 = vector.extract_strided_slice %346 {offsets = [2, 0], sizes = [2, 16], strides = [1, 1]} : vector<16x16xf32> to vector<2x16xf32>
    %351 = arith.addf %349, %350 : vector<2x16xf32>
    %352 = vector.extract_strided_slice %346 {offsets = [4, 0], sizes = [2, 16], strides = [1, 1]} : vector<16x16xf32> to vector<2x16xf32>
    %353 = arith.addf %351, %352 : vector<2x16xf32>
    %354 = vector.extract_strided_slice %346 {offsets = [6, 0], sizes = [2, 16], strides = [1, 1]} : vector<16x16xf32> to vector<2x16xf32>
    %355 = arith.addf %353, %354 : vector<2x16xf32>
    %356 = vector.extract_strided_slice %346 {offsets = [8, 0], sizes = [2, 16], strides = [1, 1]} : vector<16x16xf32> to vector<2x16xf32>
    %357 = arith.addf %355, %356 : vector<2x16xf32>
    %358 = vector.extract_strided_slice %346 {offsets = [10, 0], sizes = [2, 16], strides = [1, 1]} : vector<16x16xf32> to vector<2x16xf32>
    %359 = arith.addf %357, %358 : vector<2x16xf32>
    %360 = vector.extract_strided_slice %346 {offsets = [12, 0], sizes = [2, 16], strides = [1, 1]} : vector<16x16xf32> to vector<2x16xf32>
    %361 = arith.addf %359, %360 : vector<2x16xf32>
    %362 = vector.extract_strided_slice %346 {offsets = [14, 0], sizes = [2, 16], strides = [1, 1]} : vector<16x16xf32> to vector<2x16xf32>
    %363 = arith.addf %361, %362 : vector<2x16xf32>
    %cst_95 = arith.constant 1.250000e-01 : f32
    %364 = vector.broadcast %cst_95 : f32 to vector<2x16xf32>
    %365 = arith.mulf %363, %364 : vector<2x16xf32>
    %366 = arith.mulf %365, %365 : vector<2x16xf32>
    %cst_96 = arith.constant dense<0.000000e+00> : vector<2xf32>
    %367 = vector.multi_reduction <add>, %366, %cst_96 [1] : vector<2x16xf32> to vector<2xf32>
    %368 = vector.shape_cast %367 : vector<2xf32> to vector<2x1xf32>
    %369 = math.sqrt %368 : vector<2x1xf32>
    %cst_97 = arith.constant 9.99999996E-13 : f32
    %370 = vector.broadcast %cst_97 : f32 to vector<2x1xf32>
    %371 = arith.maximumf %369, %370 : vector<2x1xf32>
    %372 = vector.broadcast %371 : vector<2x1xf32> to vector<2x16xf32>
    %373 = arith.divf %365, %372 : vector<2x16xf32>
    %c0_98 = arith.constant 0 : index
    %c0_99 = arith.constant 0 : index
    %374 = vector.load %arg5[%c0_98, %c0_99] : memref<16x1xf32, #tpu.memory_space<vmem>>, vector<16x1xf32>
    %cst_100 = arith.constant dense<0.000000e+00> : vector<2x1xf32>
    %375 = tpu.matmul %373, %374, %cst_100 {dimension_numbers = #tpu.dot_dimension_numbers<[1], [0], [0], [1], [0, 0, 1, 1], [], []>} : vector<2x16xf32>, vector<16x1xf32>, vector<2x1xf32> -> vector<2x1xf32>
    %c0_101 = arith.constant 0 : index
    %c0_102 = arith.constant 0 : index
    %376 = vector.load %arg6[%c0_101, %c0_102] : memref<1x1xf32, #tpu.memory_space<vmem>>, vector<1x1xf32>
    %377 = vector.broadcast %376 : vector<1x1xf32> to vector<2x1xf32>
    %378 = arith.addf %375, %377 : vector<2x1xf32>
    %379 = arith.negf %378 : vector<2x1xf32>
    %380 = math.exp %379 : vector<2x1xf32>
    %cst_103 = arith.constant 1.000000e+00 : f32
    %381 = vector.broadcast %cst_103 : f32 to vector<2x1xf32>
    %382 = arith.addf %381, %380 : vector<2x1xf32>
    %383 = arith.divf %381, %382 : vector<2x1xf32>
    %c1_104 = arith.constant 1 : index
    %c0_105 = arith.constant 0 : index
    %c0_106 = arith.constant 0 : index
    %384 = vector.load %arg1[%c1_104, %c0_105, %c0_106] : memref<2x12x16xf32, #tpu.memory_space<vmem>>, vector<1x12x16xf32>
    %385 = vector.shape_cast %384 : vector<1x12x16xf32> to vector<12x16xf32>
    %cst_107 = arith.constant dense<0.000000e+00> : vector<16x16xf32>
    %386 = tpu.matmul %5, %385, %cst_107 {dimension_numbers = #tpu.dot_dimension_numbers<[1], [0], [0], [1], [0, 0, 1, 1], [], []>} : vector<16x12xf32>, vector<12x16xf32>, vector<16x16xf32> -> vector<16x16xf32>
    %c0_108 = arith.constant 0 : index
    %c0_109 = arith.constant 0 : index
    %387 = vector.load %arg16[%c0_108, %c0_109] : memref<16x16xf32, #tpu.memory_space<vmem>>, vector<16x16xf32>
    tpu.vector_store %arg16[%c0_108, %c0_109], %386 {strides = array<i32>} : memref<16x16xf32, #tpu.memory_space<vmem>>, vector<16x16xf32>,
    %c0_110 = arith.constant 0 : index
    %c0_111 = arith.constant 0 : index
    %388 = vector.load %arg16[%c0_110, %c0_111] : memref<16x16xf32, #tpu.memory_space<vmem>>, vector<16x16xf32>
    %c2_112 = arith.constant 2 : index
    %c0_113 = arith.constant 0 : index
    %c0_114 = arith.constant 0 : index
    %389 = vector.load %arg2[%c2_112, %c0_113, %c0_114] : memref<4x16x64xf32, #tpu.memory_space<vmem>>, vector<1x16x64xf32>
    %390 = vector.shape_cast %389 : vector<1x16x64xf32> to vector<16x64xf32>
    %cst_115 = arith.constant dense<0.000000e+00> : vector<16x64xf32>
    %391 = tpu.matmul %388, %390, %cst_115 {dimension_numbers = #tpu.dot_dimension_numbers<[1], [0], [0], [1], [0, 0, 1, 1], [], []>} : vector<16x16xf32>, vector<16x64xf32>, vector<16x64xf32> -> vector<16x64xf32>
    %c2_116 = arith.constant 2 : index
    %c0_117 = arith.constant 0 : index
    %c0_118 = arith.constant 0 : index
    %392 = vector.load %arg4[%c2_116, %c0_117, %c0_118] : memref<4x1x64xf32, #tpu.memory_space<vmem>>, vector<1x1x64xf32>
    %393 = vector.shape_cast %392 : vector<1x1x64xf32> to vector<1x64xf32>
    %394 = vector.broadcast %393 : vector<1x64xf32> to vector<16x64xf32>
    %395 = arith.addf %391, %394 : vector<16x64xf32>
    %c2_119 = arith.constant 2 : index
    %c0_120 = arith.constant 0 : index
    %c0_121 = arith.constant 0 : index
    %396 = vector.load %arg3[%c2_119, %c0_120, %c0_121] : memref<4x16x64xf32, #tpu.memory_space<vmem>>, vector<1x16x64xf32>
    %397 = vector.shape_cast %396 : vector<1x16x64xf32> to vector<16x64xf32>
    %cst_122 = arith.constant 0.000000e+00 : f32
    %398 = vector.broadcast %cst_122 : f32 to vector<2x16xf32>
    %cst_123 = arith.constant 0.000000e+00 : f32
    %399 = vector.broadcast %cst_123 : f32 to vector<2x16xf32>
    %400 = vector.extract_strided_slice %395 {offsets = [0, 0], sizes = [2, 64], strides = [1, 1]} : vector<16x64xf32> to vector<2x64xf32>
    %cst_124 = arith.constant dense<0.000000e+00> : vector<2x64xf32>
    %401 = tpu.matmul %398, %397, %cst_124 {dimension_numbers = #tpu.dot_dimension_numbers<[1], [0], [0], [1], [0, 0, 1, 1], [], []>} : vector<2x16xf32>, vector<16x64xf32>, vector<2x64xf32> -> vector<2x64xf32>
    %402 = arith.addf %400, %401 : vector<2x64xf32>
    %403 = arith.negf %402 : vector<2x64xf32>
    %404 = math.exp %403 : vector<2x64xf32>
    %cst_125 = arith.constant 1.000000e+00 : f32
    %405 = vector.broadcast %cst_125 : f32 to vector<2x64xf32>
    %406 = arith.addf %405, %404 : vector<2x64xf32>
    %407 = arith.divf %405, %406 : vector<2x64xf32>
    %408 = vector.extract_strided_slice %407 {offsets = [0, 0], sizes = [2, 16], strides = [1, 1]} : vector<2x64xf32> to vector<2x16xf32>
    %409 = vector.extract_strided_slice %407 {offsets = [0, 16], sizes = [2, 16], strides = [1, 1]} : vector<2x64xf32> to vector<2x16xf32>
    %410 = vector.extract_strided_slice %407 {offsets = [0, 48], sizes = [2, 16], strides = [1, 1]} : vector<2x64xf32> to vector<2x16xf32>
    %411 = vector.extract_strided_slice %402 {offsets = [0, 32], sizes = [2, 16], strides = [1, 1]} : vector<2x64xf32> to vector<2x16xf32>
    %412 = math.tanh %411 : vector<2x16xf32>
    %413 = arith.mulf %409, %399 : vector<2x16xf32>
    %414 = arith.mulf %408, %412 : vector<2x16xf32>
    %415 = arith.addf %413, %414 : vector<2x16xf32>
    %416 = math.tanh %415 : vector<2x16xf32>
    %417 = arith.mulf %410, %416 : vector<2x16xf32>
    %c0_126 = arith.constant 0 : index
    %c0_127 = arith.constant 0 : index
    %418 = vector.load %arg17[%c0_126, %c0_127] : memref<16x16xf32, #tpu.memory_space<vmem>>, vector<2x16xf32>
    tpu.vector_store %arg17[%c0_126, %c0_127], %417 {strides = array<i32>} : memref<16x16xf32, #tpu.memory_space<vmem>>, vector<2x16xf32>,
    %419 = vector.extract_strided_slice %395 {offsets = [2, 0], sizes = [2, 64], strides = [1, 1]} : vector<16x64xf32> to vector<2x64xf32>
    %cst_128 = arith.constant dense<0.000000e+00> : vector<2x64xf32>
    %420 = tpu.matmul %417, %397, %cst_128 {dimension_numbers = #tpu.dot_dimension_numbers<[1], [0], [0], [1], [0, 0, 1, 1], [], []>} : vector<2x16xf32>, vector<16x64xf32>, vector<2x64xf32> -> vector<2x64xf32>
    %421 = arith.addf %419, %420 : vector<2x64xf32>
    %422 = arith.negf %421 : vector<2x64xf32>
    %423 = math.exp %422 : vector<2x64xf32>
    %cst_129 = arith.constant 1.000000e+00 : f32
    %424 = vector.broadcast %cst_129 : f32 to vector<2x64xf32>
    %425 = arith.addf %424, %423 : vector<2x64xf32>
    %426 = arith.divf %424, %425 : vector<2x64xf32>
    %427 = vector.extract_strided_slice %426 {offsets = [0, 0], sizes = [2, 16], strides = [1, 1]} : vector<2x64xf32> to vector<2x16xf32>
    %428 = vector.extract_strided_slice %426 {offsets = [0, 16], sizes = [2, 16], strides = [1, 1]} : vector<2x64xf32> to vector<2x16xf32>
    %429 = vector.extract_strided_slice %426 {offsets = [0, 48], sizes = [2, 16], strides = [1, 1]} : vector<2x64xf32> to vector<2x16xf32>
    %430 = vector.extract_strided_slice %421 {offsets = [0, 32], sizes = [2, 16], strides = [1, 1]} : vector<2x64xf32> to vector<2x16xf32>
    %431 = math.tanh %430 : vector<2x16xf32>
    %432 = arith.mulf %428, %415 : vector<2x16xf32>
    %433 = arith.mulf %427, %431 : vector<2x16xf32>
    %434 = arith.addf %432, %433 : vector<2x16xf32>
    %435 = math.tanh %434 : vector<2x16xf32>
    %436 = arith.mulf %429, %435 : vector<2x16xf32>
    %c2_130 = arith.constant 2 : index
    %c0_131 = arith.constant 0 : index
    %437 = vector.load %arg17[%c2_130, %c0_131] : memref<16x16xf32, #tpu.memory_space<vmem>>, vector<2x16xf32>
    tpu.vector_store %arg17[%c2_130, %c0_131], %436 {strides = array<i32>} : memref<16x16xf32, #tpu.memory_space<vmem>>, vector<2x16xf32>,
    %438 = vector.extract_strided_slice %395 {offsets = [4, 0], sizes = [2, 64], strides = [1, 1]} : vector<16x64xf32> to vector<2x64xf32>
    %cst_132 = arith.constant dense<0.000000e+00> : vector<2x64xf32>
    %439 = tpu.matmul %436, %397, %cst_132 {dimension_numbers = #tpu.dot_dimension_numbers<[1], [0], [0], [1], [0, 0, 1, 1], [], []>} : vector<2x16xf32>, vector<16x64xf32>, vector<2x64xf32> -> vector<2x64xf32>
    %440 = arith.addf %438, %439 : vector<2x64xf32>
    %441 = arith.negf %440 : vector<2x64xf32>
    %442 = math.exp %441 : vector<2x64xf32>
    %cst_133 = arith.constant 1.000000e+00 : f32
    %443 = vector.broadcast %cst_133 : f32 to vector<2x64xf32>
    %444 = arith.addf %443, %442 : vector<2x64xf32>
    %445 = arith.divf %443, %444 : vector<2x64xf32>
    %446 = vector.extract_strided_slice %445 {offsets = [0, 0], sizes = [2, 16], strides = [1, 1]} : vector<2x64xf32> to vector<2x16xf32>
    %447 = vector.extract_strided_slice %445 {offsets = [0, 16], sizes = [2, 16], strides = [1, 1]} : vector<2x64xf32> to vector<2x16xf32>
    %448 = vector.extract_strided_slice %445 {offsets = [0, 48], sizes = [2, 16], strides = [1, 1]} : vector<2x64xf32> to vector<2x16xf32>
    %449 = vector.extract_strided_slice %440 {offsets = [0, 32], sizes = [2, 16], strides = [1, 1]} : vector<2x64xf32> to vector<2x16xf32>
    %450 = math.tanh %449 : vector<2x16xf32>
    %451 = arith.mulf %447, %434 : vector<2x16xf32>
    %452 = arith.mulf %446, %450 : vector<2x16xf32>
    %453 = arith.addf %451, %452 : vector<2x16xf32>
    %454 = math.tanh %453 : vector<2x16xf32>
    %455 = arith.mulf %448, %454 : vector<2x16xf32>
    %c4_134 = arith.constant 4 : index
    %c0_135 = arith.constant 0 : index
    %456 = vector.load %arg17[%c4_134, %c0_135] : memref<16x16xf32, #tpu.memory_space<vmem>>, vector<2x16xf32>
    tpu.vector_store %arg17[%c4_134, %c0_135], %455 {strides = array<i32>} : memref<16x16xf32, #tpu.memory_space<vmem>>, vector<2x16xf32>,
    %457 = vector.extract_strided_slice %395 {offsets = [6, 0], sizes = [2, 64], strides = [1, 1]} : vector<16x64xf32> to vector<2x64xf32>
    %cst_136 = arith.constant dense<0.000000e+00> : vector<2x64xf32>
    %458 = tpu.matmul %455, %397, %cst_136 {dimension_numbers = #tpu.dot_dimension_numbers<[1], [0], [0], [1], [0, 0, 1, 1], [], []>} : vector<2x16xf32>, vector<16x64xf32>, vector<2x64xf32> -> vector<2x64xf32>
    %459 = arith.addf %457, %458 : vector<2x64xf32>
    %460 = arith.negf %459 : vector<2x64xf32>
    %461 = math.exp %460 : vector<2x64xf32>
    %cst_137 = arith.constant 1.000000e+00 : f32
    %462 = vector.broadcast %cst_137 : f32 to vector<2x64xf32>
    %463 = arith.addf %462, %461 : vector<2x64xf32>
    %464 = arith.divf %462, %463 : vector<2x64xf32>
    %465 = vector.extract_strided_slice %464 {offsets = [0, 0], sizes = [2, 16], strides = [1, 1]} : vector<2x64xf32> to vector<2x16xf32>
    %466 = vector.extract_strided_slice %464 {offsets = [0, 16], sizes = [2, 16], strides = [1, 1]} : vector<2x64xf32> to vector<2x16xf32>
    %467 = vector.extract_strided_slice %464 {offsets = [0, 48], sizes = [2, 16], strides = [1, 1]} : vector<2x64xf32> to vector<2x16xf32>
    %468 = vector.extract_strided_slice %459 {offsets = [0, 32], sizes = [2, 16], strides = [1, 1]} : vector<2x64xf32> to vector<2x16xf32>
    %469 = math.tanh %468 : vector<2x16xf32>
    %470 = arith.mulf %466, %453 : vector<2x16xf32>
    %471 = arith.mulf %465, %469 : vector<2x16xf32>
    %472 = arith.addf %470, %471 : vector<2x16xf32>
    %473 = math.tanh %472 : vector<2x16xf32>
    %474 = arith.mulf %467, %473 : vector<2x16xf32>
    %c6_138 = arith.constant 6 : index
    %c0_139 = arith.constant 0 : index
    %475 = vector.load %arg17[%c6_138, %c0_139] : memref<16x16xf32, #tpu.memory_space<vmem>>, vector<2x16xf32>
    tpu.vector_store %arg17[%c6_138, %c0_139], %474 {strides = array<i32>} : memref<16x16xf32, #tpu.memory_space<vmem>>, vector<2x16xf32>,
    %476 = vector.extract_strided_slice %395 {offsets = [8, 0], sizes = [2, 64], strides = [1, 1]} : vector<16x64xf32> to vector<2x64xf32>
    %cst_140 = arith.constant dense<0.000000e+00> : vector<2x64xf32>
    %477 = tpu.matmul %474, %397, %cst_140 {dimension_numbers = #tpu.dot_dimension_numbers<[1], [0], [0], [1], [0, 0, 1, 1], [], []>} : vector<2x16xf32>, vector<16x64xf32>, vector<2x64xf32> -> vector<2x64xf32>
    %478 = arith.addf %476, %477 : vector<2x64xf32>
    %479 = arith.negf %478 : vector<2x64xf32>
    %480 = math.exp %479 : vector<2x64xf32>
    %cst_141 = arith.constant 1.000000e+00 : f32
    %481 = vector.broadcast %cst_141 : f32 to vector<2x64xf32>
    %482 = arith.addf %481, %480 : vector<2x64xf32>
    %483 = arith.divf %481, %482 : vector<2x64xf32>
    %484 = vector.extract_strided_slice %483 {offsets = [0, 0], sizes = [2, 16], strides = [1, 1]} : vector<2x64xf32> to vector<2x16xf32>
    %485 = vector.extract_strided_slice %483 {offsets = [0, 16], sizes = [2, 16], strides = [1, 1]} : vector<2x64xf32> to vector<2x16xf32>
    %486 = vector.extract_strided_slice %483 {offsets = [0, 48], sizes = [2, 16], strides = [1, 1]} : vector<2x64xf32> to vector<2x16xf32>
    %487 = vector.extract_strided_slice %478 {offsets = [0, 32], sizes = [2, 16], strides = [1, 1]} : vector<2x64xf32> to vector<2x16xf32>
    %488 = math.tanh %487 : vector<2x16xf32>
    %489 = arith.mulf %485, %472 : vector<2x16xf32>
    %490 = arith.mulf %484, %488 : vector<2x16xf32>
    %491 = arith.addf %489, %490 : vector<2x16xf32>
    %492 = math.tanh %491 : vector<2x16xf32>
    %493 = arith.mulf %486, %492 : vector<2x16xf32>
    %c8_142 = arith.constant 8 : index
    %c0_143 = arith.constant 0 : index
    %494 = vector.load %arg17[%c8_142, %c0_143] : memref<16x16xf32, #tpu.memory_space<vmem>>, vector<2x16xf32>
    tpu.vector_store %arg17[%c8_142, %c0_143], %493 {strides = array<i32>} : memref<16x16xf32, #tpu.memory_space<vmem>>, vector<2x16xf32>,
    %495 = vector.extract_strided_slice %395 {offsets = [10, 0], sizes = [2, 64], strides = [1, 1]} : vector<16x64xf32> to vector<2x64xf32>
    %cst_144 = arith.constant dense<0.000000e+00> : vector<2x64xf32>
    %496 = tpu.matmul %493, %397, %cst_144 {dimension_numbers = #tpu.dot_dimension_numbers<[1], [0], [0], [1], [0, 0, 1, 1], [], []>} : vector<2x16xf32>, vector<16x64xf32>, vector<2x64xf32> -> vector<2x64xf32>
    %497 = arith.addf %495, %496 : vector<2x64xf32>
    %498 = arith.negf %497 : vector<2x64xf32>
    %499 = math.exp %498 : vector<2x64xf32>
    %cst_145 = arith.constant 1.000000e+00 : f32
    %500 = vector.broadcast %cst_145 : f32 to vector<2x64xf32>
    %501 = arith.addf %500, %499 : vector<2x64xf32>
    %502 = arith.divf %500, %501 : vector<2x64xf32>
    %503 = vector.extract_strided_slice %502 {offsets = [0, 0], sizes = [2, 16], strides = [1, 1]} : vector<2x64xf32> to vector<2x16xf32>
    %504 = vector.extract_strided_slice %502 {offsets = [0, 16], sizes = [2, 16], strides = [1, 1]} : vector<2x64xf32> to vector<2x16xf32>
    %505 = vector.extract_strided_slice %502 {offsets = [0, 48], sizes = [2, 16], strides = [1, 1]} : vector<2x64xf32> to vector<2x16xf32>
    %506 = vector.extract_strided_slice %497 {offsets = [0, 32], sizes = [2, 16], strides = [1, 1]} : vector<2x64xf32> to vector<2x16xf32>
    %507 = math.tanh %506 : vector<2x16xf32>
    %508 = arith.mulf %504, %491 : vector<2x16xf32>
    %509 = arith.mulf %503, %507 : vector<2x16xf32>
    %510 = arith.addf %508, %509 : vector<2x16xf32>
    %511 = math.tanh %510 : vector<2x16xf32>
    %512 = arith.mulf %505, %511 : vector<2x16xf32>
    %c10_146 = arith.constant 10 : index
    %c0_147 = arith.constant 0 : index
    %513 = vector.load %arg17[%c10_146, %c0_147] : memref<16x16xf32, #tpu.memory_space<vmem>>, vector<2x16xf32>
    tpu.vector_store %arg17[%c10_146, %c0_147], %512 {strides = array<i32>} : memref<16x16xf32, #tpu.memory_space<vmem>>, vector<2x16xf32>,
    %514 = vector.extract_strided_slice %395 {offsets = [12, 0], sizes = [2, 64], strides = [1, 1]} : vector<16x64xf32> to vector<2x64xf32>
    %cst_148 = arith.constant dense<0.000000e+00> : vector<2x64xf32>
    %515 = tpu.matmul %512, %397, %cst_148 {dimension_numbers = #tpu.dot_dimension_numbers<[1], [0], [0], [1], [0, 0, 1, 1], [], []>} : vector<2x16xf32>, vector<16x64xf32>, vector<2x64xf32> -> vector<2x64xf32>
    %516 = arith.addf %514, %515 : vector<2x64xf32>
    %517 = arith.negf %516 : vector<2x64xf32>
    %518 = math.exp %517 : vector<2x64xf32>
    %cst_149 = arith.constant 1.000000e+00 : f32
    %519 = vector.broadcast %cst_149 : f32 to vector<2x64xf32>
    %520 = arith.addf %519, %518 : vector<2x64xf32>
    %521 = arith.divf %519, %520 : vector<2x64xf32>
    %522 = vector.extract_strided_slice %521 {offsets = [0, 0], sizes = [2, 16], strides = [1, 1]} : vector<2x64xf32> to vector<2x16xf32>
    %523 = vector.extract_strided_slice %521 {offsets = [0, 16], sizes = [2, 16], strides = [1, 1]} : vector<2x64xf32> to vector<2x16xf32>
    %524 = vector.extract_strided_slice %521 {offsets = [0, 48], sizes = [2, 16], strides = [1, 1]} : vector<2x64xf32> to vector<2x16xf32>
    %525 = vector.extract_strided_slice %516 {offsets = [0, 32], sizes = [2, 16], strides = [1, 1]} : vector<2x64xf32> to vector<2x16xf32>
    %526 = math.tanh %525 : vector<2x16xf32>
    %527 = arith.mulf %523, %510 : vector<2x16xf32>
    %528 = arith.mulf %522, %526 : vector<2x16xf32>
    %529 = arith.addf %527, %528 : vector<2x16xf32>
    %530 = math.tanh %529 : vector<2x16xf32>
    %531 = arith.mulf %524, %530 : vector<2x16xf32>
    %c12_150 = arith.constant 12 : index
    %c0_151 = arith.constant 0 : index
    %532 = vector.load %arg17[%c12_150, %c0_151] : memref<16x16xf32, #tpu.memory_space<vmem>>, vector<2x16xf32>
    tpu.vector_store %arg17[%c12_150, %c0_151], %531 {strides = array<i32>} : memref<16x16xf32, #tpu.memory_space<vmem>>, vector<2x16xf32>,
    %533 = vector.extract_strided_slice %395 {offsets = [14, 0], sizes = [2, 64], strides = [1, 1]} : vector<16x64xf32> to vector<2x64xf32>
    %cst_152 = arith.constant dense<0.000000e+00> : vector<2x64xf32>
    %534 = tpu.matmul %531, %397, %cst_152 {dimension_numbers = #tpu.dot_dimension_numbers<[1], [0], [0], [1], [0, 0, 1, 1], [], []>} : vector<2x16xf32>, vector<16x64xf32>, vector<2x64xf32> -> vector<2x64xf32>
    %535 = arith.addf %533, %534 : vector<2x64xf32>
    %536 = arith.negf %535 : vector<2x64xf32>
    %537 = math.exp %536 : vector<2x64xf32>
    %cst_153 = arith.constant 1.000000e+00 : f32
    %538 = vector.broadcast %cst_153 : f32 to vector<2x64xf32>
    %539 = arith.addf %538, %537 : vector<2x64xf32>
    %540 = arith.divf %538, %539 : vector<2x64xf32>
    %541 = vector.extract_strided_slice %540 {offsets = [0, 0], sizes = [2, 16], strides = [1, 1]} : vector<2x64xf32> to vector<2x16xf32>
    %542 = vector.extract_strided_slice %540 {offsets = [0, 16], sizes = [2, 16], strides = [1, 1]} : vector<2x64xf32> to vector<2x16xf32>
    %543 = vector.extract_strided_slice %540 {offsets = [0, 48], sizes = [2, 16], strides = [1, 1]} : vector<2x64xf32> to vector<2x16xf32>
    %544 = vector.extract_strided_slice %535 {offsets = [0, 32], sizes = [2, 16], strides = [1, 1]} : vector<2x64xf32> to vector<2x16xf32>
    %545 = math.tanh %544 : vector<2x16xf32>
    %546 = arith.mulf %542, %529 : vector<2x16xf32>
    %547 = arith.mulf %541, %545 : vector<2x16xf32>
    %548 = arith.addf %546, %547 : vector<2x16xf32>
    %549 = math.tanh %548 : vector<2x16xf32>
    %550 = arith.mulf %543, %549 : vector<2x16xf32>
    %c14_154 = arith.constant 14 : index
    %c0_155 = arith.constant 0 : index
    %551 = vector.load %arg17[%c14_154, %c0_155] : memref<16x16xf32, #tpu.memory_space<vmem>>, vector<2x16xf32>
    tpu.vector_store %arg17[%c14_154, %c0_155], %550 {strides = array<i32>} : memref<16x16xf32, #tpu.memory_space<vmem>>, vector<2x16xf32>,
    %c0_156 = arith.constant 0 : index
    %c0_157 = arith.constant 0 : index
    %552 = vector.load %arg17[%c0_156, %c0_157] : memref<16x16xf32, #tpu.memory_space<vmem>>, vector<16x16xf32>
    %c3 = arith.constant 3 : index
    %c0_158 = arith.constant 0 : index
    %c0_159 = arith.constant 0 : index
    %553 = vector.load %arg2[%c3, %c0_158, %c0_159] : memref<4x16x64xf32, #tpu.memory_space<vmem>>, vector<1x16x64xf32>
    %554 = vector.shape_cast %553 : vector<1x16x64xf32> to vector<16x64xf32>
    %cst_160 = arith.constant dense<0.000000e+00> : vector<16x64xf32>
    %555 = tpu.matmul %552, %554, %cst_160 {dimension_numbers = #tpu.dot_dimension_numbers<[1], [0], [0], [1], [0, 0, 1, 1], [], []>} : vector<16x16xf32>, vector<16x64xf32>, vector<16x64xf32> -> vector<16x64xf32>
    %c3_161 = arith.constant 3 : index
    %c0_162 = arith.constant 0 : index
    %c0_163 = arith.constant 0 : index
    %556 = vector.load %arg4[%c3_161, %c0_162, %c0_163] : memref<4x1x64xf32, #tpu.memory_space<vmem>>, vector<1x1x64xf32>
    %557 = vector.shape_cast %556 : vector<1x1x64xf32> to vector<1x64xf32>
    %558 = vector.broadcast %557 : vector<1x64xf32> to vector<16x64xf32>
    %559 = arith.addf %555, %558 : vector<16x64xf32>
    %c3_164 = arith.constant 3 : index
    %c0_165 = arith.constant 0 : index
    %c0_166 = arith.constant 0 : index
    %560 = vector.load %arg3[%c3_164, %c0_165, %c0_166] : memref<4x16x64xf32, #tpu.memory_space<vmem>>, vector<1x16x64xf32>
    %561 = vector.shape_cast %560 : vector<1x16x64xf32> to vector<16x64xf32>
    %cst_167 = arith.constant 0.000000e+00 : f32
    %562 = vector.broadcast %cst_167 : f32 to vector<2x16xf32>
    %cst_168 = arith.constant 0.000000e+00 : f32
    %563 = vector.broadcast %cst_168 : f32 to vector<2x16xf32>
    %564 = vector.extract_strided_slice %559 {offsets = [0, 0], sizes = [2, 64], strides = [1, 1]} : vector<16x64xf32> to vector<2x64xf32>
    %cst_169 = arith.constant dense<0.000000e+00> : vector<2x64xf32>
    %565 = tpu.matmul %562, %561, %cst_169 {dimension_numbers = #tpu.dot_dimension_numbers<[1], [0], [0], [1], [0, 0, 1, 1], [], []>} : vector<2x16xf32>, vector<16x64xf32>, vector<2x64xf32> -> vector<2x64xf32>
    %566 = arith.addf %564, %565 : vector<2x64xf32>
    %567 = arith.negf %566 : vector<2x64xf32>
    %568 = math.exp %567 : vector<2x64xf32>
    %cst_170 = arith.constant 1.000000e+00 : f32
    %569 = vector.broadcast %cst_170 : f32 to vector<2x64xf32>
    %570 = arith.addf %569, %568 : vector<2x64xf32>
    %571 = arith.divf %569, %570 : vector<2x64xf32>
    %572 = vector.extract_strided_slice %571 {offsets = [0, 0], sizes = [2, 16], strides = [1, 1]} : vector<2x64xf32> to vector<2x16xf32>
    %573 = vector.extract_strided_slice %571 {offsets = [0, 16], sizes = [2, 16], strides = [1, 1]} : vector<2x64xf32> to vector<2x16xf32>
    %574 = vector.extract_strided_slice %571 {offsets = [0, 48], sizes = [2, 16], strides = [1, 1]} : vector<2x64xf32> to vector<2x16xf32>
    %575 = vector.extract_strided_slice %566 {offsets = [0, 32], sizes = [2, 16], strides = [1, 1]} : vector<2x64xf32> to vector<2x16xf32>
    %576 = math.tanh %575 : vector<2x16xf32>
    %577 = arith.mulf %573, %563 : vector<2x16xf32>
    %578 = arith.mulf %572, %576 : vector<2x16xf32>
    %579 = arith.addf %577, %578 : vector<2x16xf32>
    %580 = math.tanh %579 : vector<2x16xf32>
    %581 = arith.mulf %574, %580 : vector<2x16xf32>
    %c0_171 = arith.constant 0 : index
    %c0_172 = arith.constant 0 : index
    %582 = vector.load %arg16[%c0_171, %c0_172] : memref<16x16xf32, #tpu.memory_space<vmem>>, vector<2x16xf32>
    tpu.vector_store %arg16[%c0_171, %c0_172], %581 {strides = array<i32>} : memref<16x16xf32, #tpu.memory_space<vmem>>, vector<2x16xf32>,
    %583 = vector.extract_strided_slice %559 {offsets = [2, 0], sizes = [2, 64], strides = [1, 1]} : vector<16x64xf32> to vector<2x64xf32>
    %cst_173 = arith.constant dense<0.000000e+00> : vector<2x64xf32>
    %584 = tpu.matmul %581, %561, %cst_173 {dimension_numbers = #tpu.dot_dimension_numbers<[1], [0], [0], [1], [0, 0, 1, 1], [], []>} : vector<2x16xf32>, vector<16x64xf32>, vector<2x64xf32> -> vector<2x64xf32>
    %585 = arith.addf %583, %584 : vector<2x64xf32>
    %586 = arith.negf %585 : vector<2x64xf32>
    %587 = math.exp %586 : vector<2x64xf32>
    %cst_174 = arith.constant 1.000000e+00 : f32
    %588 = vector.broadcast %cst_174 : f32 to vector<2x64xf32>
    %589 = arith.addf %588, %587 : vector<2x64xf32>
    %590 = arith.divf %588, %589 : vector<2x64xf32>
    %591 = vector.extract_strided_slice %590 {offsets = [0, 0], sizes = [2, 16], strides = [1, 1]} : vector<2x64xf32> to vector<2x16xf32>
    %592 = vector.extract_strided_slice %590 {offsets = [0, 16], sizes = [2, 16], strides = [1, 1]} : vector<2x64xf32> to vector<2x16xf32>
    %593 = vector.extract_strided_slice %590 {offsets = [0, 48], sizes = [2, 16], strides = [1, 1]} : vector<2x64xf32> to vector<2x16xf32>
    %594 = vector.extract_strided_slice %585 {offsets = [0, 32], sizes = [2, 16], strides = [1, 1]} : vector<2x64xf32> to vector<2x16xf32>
    %595 = math.tanh %594 : vector<2x16xf32>
    %596 = arith.mulf %592, %579 : vector<2x16xf32>
    %597 = arith.mulf %591, %595 : vector<2x16xf32>
    %598 = arith.addf %596, %597 : vector<2x16xf32>
    %599 = math.tanh %598 : vector<2x16xf32>
    %600 = arith.mulf %593, %599 : vector<2x16xf32>
    %c2_175 = arith.constant 2 : index
    %c0_176 = arith.constant 0 : index
    %601 = vector.load %arg16[%c2_175, %c0_176] : memref<16x16xf32, #tpu.memory_space<vmem>>, vector<2x16xf32>
    tpu.vector_store %arg16[%c2_175, %c0_176], %600 {strides = array<i32>} : memref<16x16xf32, #tpu.memory_space<vmem>>, vector<2x16xf32>,
    %602 = vector.extract_strided_slice %559 {offsets = [4, 0], sizes = [2, 64], strides = [1, 1]} : vector<16x64xf32> to vector<2x64xf32>
    %cst_177 = arith.constant dense<0.000000e+00> : vector<2x64xf32>
    %603 = tpu.matmul %600, %561, %cst_177 {dimension_numbers = #tpu.dot_dimension_numbers<[1], [0], [0], [1], [0, 0, 1, 1], [], []>} : vector<2x16xf32>, vector<16x64xf32>, vector<2x64xf32> -> vector<2x64xf32>
    %604 = arith.addf %602, %603 : vector<2x64xf32>
    %605 = arith.negf %604 : vector<2x64xf32>
    %606 = math.exp %605 : vector<2x64xf32>
    %cst_178 = arith.constant 1.000000e+00 : f32
    %607 = vector.broadcast %cst_178 : f32 to vector<2x64xf32>
    %608 = arith.addf %607, %606 : vector<2x64xf32>
    %609 = arith.divf %607, %608 : vector<2x64xf32>
    %610 = vector.extract_strided_slice %609 {offsets = [0, 0], sizes = [2, 16], strides = [1, 1]} : vector<2x64xf32> to vector<2x16xf32>
    %611 = vector.extract_strided_slice %609 {offsets = [0, 16], sizes = [2, 16], strides = [1, 1]} : vector<2x64xf32> to vector<2x16xf32>
    %612 = vector.extract_strided_slice %609 {offsets = [0, 48], sizes = [2, 16], strides = [1, 1]} : vector<2x64xf32> to vector<2x16xf32>
    %613 = vector.extract_strided_slice %604 {offsets = [0, 32], sizes = [2, 16], strides = [1, 1]} : vector<2x64xf32> to vector<2x16xf32>
    %614 = math.tanh %613 : vector<2x16xf32>
    %615 = arith.mulf %611, %598 : vector<2x16xf32>
    %616 = arith.mulf %610, %614 : vector<2x16xf32>
    %617 = arith.addf %615, %616 : vector<2x16xf32>
    %618 = math.tanh %617 : vector<2x16xf32>
    %619 = arith.mulf %612, %618 : vector<2x16xf32>
    %c4_179 = arith.constant 4 : index
    %c0_180 = arith.constant 0 : index
    %620 = vector.load %arg16[%c4_179, %c0_180] : memref<16x16xf32, #tpu.memory_space<vmem>>, vector<2x16xf32>
    tpu.vector_store %arg16[%c4_179, %c0_180], %619 {strides = array<i32>} : memref<16x16xf32, #tpu.memory_space<vmem>>, vector<2x16xf32>,
    %621 = vector.extract_strided_slice %559 {offsets = [6, 0], sizes = [2, 64], strides = [1, 1]} : vector<16x64xf32> to vector<2x64xf32>
    %cst_181 = arith.constant dense<0.000000e+00> : vector<2x64xf32>
    %622 = tpu.matmul %619, %561, %cst_181 {dimension_numbers = #tpu.dot_dimension_numbers<[1], [0], [0], [1], [0, 0, 1, 1], [], []>} : vector<2x16xf32>, vector<16x64xf32>, vector<2x64xf32> -> vector<2x64xf32>
    %623 = arith.addf %621, %622 : vector<2x64xf32>
    %624 = arith.negf %623 : vector<2x64xf32>
    %625 = math.exp %624 : vector<2x64xf32>
    %cst_182 = arith.constant 1.000000e+00 : f32
    %626 = vector.broadcast %cst_182 : f32 to vector<2x64xf32>
    %627 = arith.addf %626, %625 : vector<2x64xf32>
    %628 = arith.divf %626, %627 : vector<2x64xf32>
    %629 = vector.extract_strided_slice %628 {offsets = [0, 0], sizes = [2, 16], strides = [1, 1]} : vector<2x64xf32> to vector<2x16xf32>
    %630 = vector.extract_strided_slice %628 {offsets = [0, 16], sizes = [2, 16], strides = [1, 1]} : vector<2x64xf32> to vector<2x16xf32>
    %631 = vector.extract_strided_slice %628 {offsets = [0, 48], sizes = [2, 16], strides = [1, 1]} : vector<2x64xf32> to vector<2x16xf32>
    %632 = vector.extract_strided_slice %623 {offsets = [0, 32], sizes = [2, 16], strides = [1, 1]} : vector<2x64xf32> to vector<2x16xf32>
    %633 = math.tanh %632 : vector<2x16xf32>
    %634 = arith.mulf %630, %617 : vector<2x16xf32>
    %635 = arith.mulf %629, %633 : vector<2x16xf32>
    %636 = arith.addf %634, %635 : vector<2x16xf32>
    %637 = math.tanh %636 : vector<2x16xf32>
    %638 = arith.mulf %631, %637 : vector<2x16xf32>
    %c6_183 = arith.constant 6 : index
    %c0_184 = arith.constant 0 : index
    %639 = vector.load %arg16[%c6_183, %c0_184] : memref<16x16xf32, #tpu.memory_space<vmem>>, vector<2x16xf32>
    tpu.vector_store %arg16[%c6_183, %c0_184], %638 {strides = array<i32>} : memref<16x16xf32, #tpu.memory_space<vmem>>, vector<2x16xf32>,
    %640 = vector.extract_strided_slice %559 {offsets = [8, 0], sizes = [2, 64], strides = [1, 1]} : vector<16x64xf32> to vector<2x64xf32>
    %cst_185 = arith.constant dense<0.000000e+00> : vector<2x64xf32>
    %641 = tpu.matmul %638, %561, %cst_185 {dimension_numbers = #tpu.dot_dimension_numbers<[1], [0], [0], [1], [0, 0, 1, 1], [], []>} : vector<2x16xf32>, vector<16x64xf32>, vector<2x64xf32> -> vector<2x64xf32>
    %642 = arith.addf %640, %641 : vector<2x64xf32>
    %643 = arith.negf %642 : vector<2x64xf32>
    %644 = math.exp %643 : vector<2x64xf32>
    %cst_186 = arith.constant 1.000000e+00 : f32
    %645 = vector.broadcast %cst_186 : f32 to vector<2x64xf32>
    %646 = arith.addf %645, %644 : vector<2x64xf32>
    %647 = arith.divf %645, %646 : vector<2x64xf32>
    %648 = vector.extract_strided_slice %647 {offsets = [0, 0], sizes = [2, 16], strides = [1, 1]} : vector<2x64xf32> to vector<2x16xf32>
    %649 = vector.extract_strided_slice %647 {offsets = [0, 16], sizes = [2, 16], strides = [1, 1]} : vector<2x64xf32> to vector<2x16xf32>
    %650 = vector.extract_strided_slice %647 {offsets = [0, 48], sizes = [2, 16], strides = [1, 1]} : vector<2x64xf32> to vector<2x16xf32>
    %651 = vector.extract_strided_slice %642 {offsets = [0, 32], sizes = [2, 16], strides = [1, 1]} : vector<2x64xf32> to vector<2x16xf32>
    %652 = math.tanh %651 : vector<2x16xf32>
    %653 = arith.mulf %649, %636 : vector<2x16xf32>
    %654 = arith.mulf %648, %652 : vector<2x16xf32>
    %655 = arith.addf %653, %654 : vector<2x16xf32>
    %656 = math.tanh %655 : vector<2x16xf32>
    %657 = arith.mulf %650, %656 : vector<2x16xf32>
    %c8_187 = arith.constant 8 : index
    %c0_188 = arith.constant 0 : index
    %658 = vector.load %arg16[%c8_187, %c0_188] : memref<16x16xf32, #tpu.memory_space<vmem>>, vector<2x16xf32>
    tpu.vector_store %arg16[%c8_187, %c0_188], %657 {strides = array<i32>} : memref<16x16xf32, #tpu.memory_space<vmem>>, vector<2x16xf32>,
    %659 = vector.extract_strided_slice %559 {offsets = [10, 0], sizes = [2, 64], strides = [1, 1]} : vector<16x64xf32> to vector<2x64xf32>
    %cst_189 = arith.constant dense<0.000000e+00> : vector<2x64xf32>
    %660 = tpu.matmul %657, %561, %cst_189 {dimension_numbers = #tpu.dot_dimension_numbers<[1], [0], [0], [1], [0, 0, 1, 1], [], []>} : vector<2x16xf32>, vector<16x64xf32>, vector<2x64xf32> -> vector<2x64xf32>
    %661 = arith.addf %659, %660 : vector<2x64xf32>
    %662 = arith.negf %661 : vector<2x64xf32>
    %663 = math.exp %662 : vector<2x64xf32>
    %cst_190 = arith.constant 1.000000e+00 : f32
    %664 = vector.broadcast %cst_190 : f32 to vector<2x64xf32>
    %665 = arith.addf %664, %663 : vector<2x64xf32>
    %666 = arith.divf %664, %665 : vector<2x64xf32>
    %667 = vector.extract_strided_slice %666 {offsets = [0, 0], sizes = [2, 16], strides = [1, 1]} : vector<2x64xf32> to vector<2x16xf32>
    %668 = vector.extract_strided_slice %666 {offsets = [0, 16], sizes = [2, 16], strides = [1, 1]} : vector<2x64xf32> to vector<2x16xf32>
    %669 = vector.extract_strided_slice %666 {offsets = [0, 48], sizes = [2, 16], strides = [1, 1]} : vector<2x64xf32> to vector<2x16xf32>
    %670 = vector.extract_strided_slice %661 {offsets = [0, 32], sizes = [2, 16], strides = [1, 1]} : vector<2x64xf32> to vector<2x16xf32>
    %671 = math.tanh %670 : vector<2x16xf32>
    %672 = arith.mulf %668, %655 : vector<2x16xf32>
    %673 = arith.mulf %667, %671 : vector<2x16xf32>
    %674 = arith.addf %672, %673 : vector<2x16xf32>
    %675 = math.tanh %674 : vector<2x16xf32>
    %676 = arith.mulf %669, %675 : vector<2x16xf32>
    %c10_191 = arith.constant 10 : index
    %c0_192 = arith.constant 0 : index
    %677 = vector.load %arg16[%c10_191, %c0_192] : memref<16x16xf32, #tpu.memory_space<vmem>>, vector<2x16xf32>
    tpu.vector_store %arg16[%c10_191, %c0_192], %676 {strides = array<i32>} : memref<16x16xf32, #tpu.memory_space<vmem>>, vector<2x16xf32>,
    %678 = vector.extract_strided_slice %559 {offsets = [12, 0], sizes = [2, 64], strides = [1, 1]} : vector<16x64xf32> to vector<2x64xf32>
    %cst_193 = arith.constant dense<0.000000e+00> : vector<2x64xf32>
    %679 = tpu.matmul %676, %561, %cst_193 {dimension_numbers = #tpu.dot_dimension_numbers<[1], [0], [0], [1], [0, 0, 1, 1], [], []>} : vector<2x16xf32>, vector<16x64xf32>, vector<2x64xf32> -> vector<2x64xf32>
    %680 = arith.addf %678, %679 : vector<2x64xf32>
    %681 = arith.negf %680 : vector<2x64xf32>
    %682 = math.exp %681 : vector<2x64xf32>
    %cst_194 = arith.constant 1.000000e+00 : f32
    %683 = vector.broadcast %cst_194 : f32 to vector<2x64xf32>
    %684 = arith.addf %683, %682 : vector<2x64xf32>
    %685 = arith.divf %683, %684 : vector<2x64xf32>
    %686 = vector.extract_strided_slice %685 {offsets = [0, 0], sizes = [2, 16], strides = [1, 1]} : vector<2x64xf32> to vector<2x16xf32>
    %687 = vector.extract_strided_slice %685 {offsets = [0, 16], sizes = [2, 16], strides = [1, 1]} : vector<2x64xf32> to vector<2x16xf32>
    %688 = vector.extract_strided_slice %685 {offsets = [0, 48], sizes = [2, 16], strides = [1, 1]} : vector<2x64xf32> to vector<2x16xf32>
    %689 = vector.extract_strided_slice %680 {offsets = [0, 32], sizes = [2, 16], strides = [1, 1]} : vector<2x64xf32> to vector<2x16xf32>
    %690 = math.tanh %689 : vector<2x16xf32>
    %691 = arith.mulf %687, %674 : vector<2x16xf32>
    %692 = arith.mulf %686, %690 : vector<2x16xf32>
    %693 = arith.addf %691, %692 : vector<2x16xf32>
    %694 = math.tanh %693 : vector<2x16xf32>
    %695 = arith.mulf %688, %694 : vector<2x16xf32>
    %c12_195 = arith.constant 12 : index
    %c0_196 = arith.constant 0 : index
    %696 = vector.load %arg16[%c12_195, %c0_196] : memref<16x16xf32, #tpu.memory_space<vmem>>, vector<2x16xf32>
    tpu.vector_store %arg16[%c12_195, %c0_196], %695 {strides = array<i32>} : memref<16x16xf32, #tpu.memory_space<vmem>>, vector<2x16xf32>,
    %697 = vector.extract_strided_slice %559 {offsets = [14, 0], sizes = [2, 64], strides = [1, 1]} : vector<16x64xf32> to vector<2x64xf32>
    %cst_197 = arith.constant dense<0.000000e+00> : vector<2x64xf32>
    %698 = tpu.matmul %695, %561, %cst_197 {dimension_numbers = #tpu.dot_dimension_numbers<[1], [0], [0], [1], [0, 0, 1, 1], [], []>} : vector<2x16xf32>, vector<16x64xf32>, vector<2x64xf32> -> vector<2x64xf32>
    %699 = arith.addf %697, %698 : vector<2x64xf32>
    %700 = arith.negf %699 : vector<2x64xf32>
    %701 = math.exp %700 : vector<2x64xf32>
    %cst_198 = arith.constant 1.000000e+00 : f32
    %702 = vector.broadcast %cst_198 : f32 to vector<2x64xf32>
    %703 = arith.addf %702, %701 : vector<2x64xf32>
    %704 = arith.divf %702, %703 : vector<2x64xf32>
    %705 = vector.extract_strided_slice %704 {offsets = [0, 0], sizes = [2, 16], strides = [1, 1]} : vector<2x64xf32> to vector<2x16xf32>
    %706 = vector.extract_strided_slice %704 {offsets = [0, 16], sizes = [2, 16], strides = [1, 1]} : vector<2x64xf32> to vector<2x16xf32>
    %707 = vector.extract_strided_slice %704 {offsets = [0, 48], sizes = [2, 16], strides = [1, 1]} : vector<2x64xf32> to vector<2x16xf32>
    %708 = vector.extract_strided_slice %699 {offsets = [0, 32], sizes = [2, 16], strides = [1, 1]} : vector<2x64xf32> to vector<2x16xf32>
    %709 = math.tanh %708 : vector<2x16xf32>
    %710 = arith.mulf %706, %693 : vector<2x16xf32>
    %711 = arith.mulf %705, %709 : vector<2x16xf32>
    %712 = arith.addf %710, %711 : vector<2x16xf32>
    %713 = math.tanh %712 : vector<2x16xf32>
    %714 = arith.mulf %707, %713 : vector<2x16xf32>
    %c14_199 = arith.constant 14 : index
    %c0_200 = arith.constant 0 : index
    %715 = vector.load %arg16[%c14_199, %c0_200] : memref<16x16xf32, #tpu.memory_space<vmem>>, vector<2x16xf32>
    tpu.vector_store %arg16[%c14_199, %c0_200], %714 {strides = array<i32>} : memref<16x16xf32, #tpu.memory_space<vmem>>, vector<2x16xf32>,
    %c0_201 = arith.constant 0 : index
    %c0_202 = arith.constant 0 : index
    %716 = vector.load %arg16[%c0_201, %c0_202] : memref<16x16xf32, #tpu.memory_space<vmem>>, vector<16x16xf32>
    %717 = arith.mulf %716, %716 : vector<16x16xf32>
    %cst_203 = arith.constant dense<0.000000e+00> : vector<16xf32>
    %718 = vector.multi_reduction <add>, %717, %cst_203 [1] : vector<16x16xf32> to vector<16xf32>
    %719 = vector.shape_cast %718 : vector<16xf32> to vector<16x1xf32>
    %720 = math.sqrt %719 : vector<16x1xf32>
    %cst_204 = arith.constant 9.99999996E-13 : f32
    %721 = vector.broadcast %cst_204 : f32 to vector<16x1xf32>
    %722 = arith.maximumf %720, %721 : vector<16x1xf32>
    %723 = vector.broadcast %722 : vector<16x1xf32> to vector<16x16xf32>
    %724 = arith.divf %716, %723 : vector<16x16xf32>
    %cst_205 = arith.constant 0.000000e+00 : f32
    %725 = vector.broadcast %cst_205 : f32 to vector<2x16xf32>
    %726 = vector.extract_strided_slice %724 {offsets = [0, 0], sizes = [2, 16], strides = [1, 1]} : vector<16x16xf32> to vector<2x16xf32>
    %727 = arith.addf %725, %726 : vector<2x16xf32>
    %728 = vector.extract_strided_slice %724 {offsets = [2, 0], sizes = [2, 16], strides = [1, 1]} : vector<16x16xf32> to vector<2x16xf32>
    %729 = arith.addf %727, %728 : vector<2x16xf32>
    %730 = vector.extract_strided_slice %724 {offsets = [4, 0], sizes = [2, 16], strides = [1, 1]} : vector<16x16xf32> to vector<2x16xf32>
    %731 = arith.addf %729, %730 : vector<2x16xf32>
    %732 = vector.extract_strided_slice %724 {offsets = [6, 0], sizes = [2, 16], strides = [1, 1]} : vector<16x16xf32> to vector<2x16xf32>
    %733 = arith.addf %731, %732 : vector<2x16xf32>
    %734 = vector.extract_strided_slice %724 {offsets = [8, 0], sizes = [2, 16], strides = [1, 1]} : vector<16x16xf32> to vector<2x16xf32>
    %735 = arith.addf %733, %734 : vector<2x16xf32>
    %736 = vector.extract_strided_slice %724 {offsets = [10, 0], sizes = [2, 16], strides = [1, 1]} : vector<16x16xf32> to vector<2x16xf32>
    %737 = arith.addf %735, %736 : vector<2x16xf32>
    %738 = vector.extract_strided_slice %724 {offsets = [12, 0], sizes = [2, 16], strides = [1, 1]} : vector<16x16xf32> to vector<2x16xf32>
    %739 = arith.addf %737, %738 : vector<2x16xf32>
    %740 = vector.extract_strided_slice %724 {offsets = [14, 0], sizes = [2, 16], strides = [1, 1]} : vector<16x16xf32> to vector<2x16xf32>
    %741 = arith.addf %739, %740 : vector<2x16xf32>
    %cst_206 = arith.constant 1.250000e-01 : f32
    %742 = vector.broadcast %cst_206 : f32 to vector<2x16xf32>
    %743 = arith.mulf %741, %742 : vector<2x16xf32>
    %744 = arith.mulf %743, %743 : vector<2x16xf32>
    %cst_207 = arith.constant dense<0.000000e+00> : vector<2xf32>
    %745 = vector.multi_reduction <add>, %744, %cst_207 [1] : vector<2x16xf32> to vector<2xf32>
    %746 = vector.shape_cast %745 : vector<2xf32> to vector<2x1xf32>
    %747 = math.sqrt %746 : vector<2x1xf32>
    %cst_208 = arith.constant 9.99999996E-13 : f32
    %748 = vector.broadcast %cst_208 : f32 to vector<2x1xf32>
    %749 = arith.maximumf %747, %748 : vector<2x1xf32>
    %750 = vector.broadcast %749 : vector<2x1xf32> to vector<2x16xf32>
    %751 = arith.divf %743, %750 : vector<2x16xf32>
    %c0_209 = arith.constant 0 : index
    %c0_210 = arith.constant 0 : index
    %752 = vector.load %arg7[%c0_209, %c0_210] : memref<16x8xf32, #tpu.memory_space<vmem>>, vector<16x8xf32>
    %cst_211 = arith.constant dense<0.000000e+00> : vector<2x8xf32>
    %753 = tpu.matmul %751, %752, %cst_211 {dimension_numbers = #tpu.dot_dimension_numbers<[1], [0], [0], [1], [0, 0, 1, 1], [], []>} : vector<2x16xf32>, vector<16x8xf32>, vector<2x8xf32> -> vector<2x8xf32>
    %c0_212 = arith.constant 0 : index
    %c0_213 = arith.constant 0 : index
    %754 = vector.load %arg8[%c0_212, %c0_213] : memref<1x8xf32, #tpu.memory_space<vmem>>, vector<1x8xf32>
    %755 = vector.broadcast %754 : vector<1x8xf32> to vector<2x8xf32>
    %756 = arith.addf %753, %755 : vector<2x8xf32>
    %c0_214 = arith.constant 0 : index
    %c0_215 = arith.constant 0 : index
    %757 = vector.load %arg9[%c0_214, %c0_215] : memref<8x8xf32, #tpu.memory_space<vmem>>, vector<8x8xf32>
    %cst_216 = arith.constant dense<0.000000e+00> : vector<2x8xf32>
    %758 = tpu.matmul %756, %757, %cst_216 {dimension_numbers = #tpu.dot_dimension_numbers<[1], [0], [0], [1], [0, 0, 1, 1], [], []>} : vector<2x8xf32>, vector<8x8xf32>, vector<2x8xf32> -> vector<2x8xf32>
    %c0_217 = arith.constant 0 : index
    %c0_218 = arith.constant 0 : index
    %759 = vector.load %arg10[%c0_217, %c0_218] : memref<1x8xf32, #tpu.memory_space<vmem>>, vector<1x8xf32>
    %760 = vector.broadcast %759 : vector<1x8xf32> to vector<2x8xf32>
    %761 = arith.addf %758, %760 : vector<2x8xf32>
    %c0_219 = arith.constant 0 : index
    %c0_220 = arith.constant 0 : index
    %762 = vector.load %arg11[%c0_219, %c0_220] : memref<8x1xf32, #tpu.memory_space<vmem>>, vector<8x1xf32>
    %cst_221 = arith.constant dense<0.000000e+00> : vector<2x1xf32>
    %763 = tpu.matmul %761, %762, %cst_221 {dimension_numbers = #tpu.dot_dimension_numbers<[1], [0], [0], [1], [0, 0, 1, 1], [], []>} : vector<2x8xf32>, vector<8x1xf32>, vector<2x1xf32> -> vector<2x1xf32>
    %c0_222 = arith.constant 0 : index
    %c0_223 = arith.constant 0 : index
    %764 = vector.load %arg12[%c0_222, %c0_223] : memref<1x1xf32, #tpu.memory_space<vmem>>, vector<1x1xf32>
    %765 = vector.broadcast %764 : vector<1x1xf32> to vector<2x1xf32>
    %766 = arith.addf %763, %765 : vector<2x1xf32>
    %767 = arith.negf %766 : vector<2x1xf32>
    %768 = math.exp %767 : vector<2x1xf32>
    %cst_224 = arith.constant 1.000000e+00 : f32
    %769 = vector.broadcast %cst_224 : f32 to vector<2x1xf32>
    %770 = arith.addf %769, %768 : vector<2x1xf32>
    %771 = arith.divf %769, %770 : vector<2x1xf32>
    %c0_225 = arith.constant 0 : index
    %c0_226 = arith.constant 0 : index
    %772 = vector.load %arg14[%c0_225, %c0_226] : memref<2x1xf32, #tpu.memory_space<vmem>>, vector<2x1xf32>
    tpu.vector_store %arg14[%c0_225, %c0_226], %383 {strides = array<i32>} : memref<2x1xf32, #tpu.memory_space<vmem>>, vector<2x1xf32>,
    %c0_227 = arith.constant 0 : index
    %c0_228 = arith.constant 0 : index
    %773 = vector.load %arg15[%c0_227, %c0_228] : memref<2x1xf32, #tpu.memory_space<vmem>>, vector<2x1xf32>
    tpu.vector_store %arg15[%c0_227, %c0_228], %771 {strides = array<i32>} : memref<2x1xf32, #tpu.memory_space<vmem>>, vector<2x1xf32>,
    %774 = arith.subf %383, %771 : vector<2x1xf32>
    %c0_229 = arith.constant 0 : index
    %c0_230 = arith.constant 0 : index
    %775 = vector.load %arg13[%c0_229, %c0_230] : memref<2x1xf32, #tpu.memory_space<vmem>>, vector<2x1xf32>
    tpu.vector_store %arg13[%c0_229, %c0_230], %774 {strides = array<i32>} : memref<2x1xf32, #tpu.memory_space<vmem>>, vector<2x1xf32>,
    return
  }
}

</mosaic_0001>

<llo_original>
// kernel: tpu_custom_call.1
$region0: #{tpu_custom_call.1}
  #allocation0 [shape = 'u32[]', space=smem, size = 0x4, offset = 0x4, fixed_abs, tag = 'smem constant byte address 0x4 - core index']
  #allocation1 [shape = 'u32[144,128]{1,0:T(1,128)}', space=vmem, size = 0x12000, scoped, tag = 'internal scratch']
  #allocation2 [shape = 'f32[16,16]{1,0:T(8,128)}', space=vmem, size = 0x2000, scoped, tag = 'scratch operand']
  #allocation3 [shape = 'f32[16,16]{1,0:T(8,128)}', space=vmem, size = 0x2000, scoped, tag = 'scratch operand']
  #allocation4 [shape = 'f32[1,1]{1,0:T(1,128)S(1)}', space=vmem, size = 0x200, scoped, tag = 'scoped memory for tpu_custom_call.1']
  #allocation5 [shape = 'f32[1,1]{1,0:T(1,128)S(1)}', space=vmem, size = 0x200, scoped, tag = 'scoped memory for tpu_custom_call.1']
  %s0 = inlined_call_operand.vmem [shape: s32[16,1], index: 0, kind: input, shape index: {}]
  %s1 = inlined_call_operand.vmem [shape: f32[2,12,16], index: 1, kind: input, shape index: {}]
  %s2 = inlined_call_operand.vmem [shape: f32[4,16,64], index: 2, kind: input, shape index: {}]
  %s3 = inlined_call_operand.vmem [shape: f32[4,16,64], index: 3, kind: input, shape index: {}]
  %s4 = inlined_call_operand.hbm [shape: f32[4,1,64], index: 4, kind: input, shape index: {}]
  %s5 = inlined_call_operand.vmem [shape: f32[16,1], index: 5, kind: input, shape index: {}]
  %s6 = inlined_call_operand.<no memory space> [shape: f32[1,1], index: 6, kind: input, shape index: {}]
  %s7 = inlined_call_operand.vmem [shape: f32[16,8], index: 7, kind: input, shape index: {}]
  %s8 = inlined_call_operand.vmem [shape: f32[1,8], index: 8, kind: input, shape index: {}]
  %s9 = inlined_call_operand.hbm [shape: f32[8,8], index: 9, kind: input, shape index: {}]
  %s10 = inlined_call_operand.vmem [shape: f32[1,8], index: 10, kind: input, shape index: {}]
  %s11 = inlined_call_operand.vmem [shape: f32[8,1], index: 11, kind: input, shape index: {}]
  %s12 = inlined_call_operand.<no memory space> [shape: f32[1,1], index: 12, kind: input, shape index: {}]
  %s13 = inlined_call_operand.vmem [shape: f32[2,1], index: 13, kind: output, shape index: {0}]
  %s14 = inlined_call_operand.vmem [shape: f32[2,1], index: 14, kind: output, shape index: {1}]
  %s15 = inlined_call_operand.vmem [shape: f32[2,1], index: 15, kind: output, shape index: {2}]
  %16 = xla_tuple %s13, %s14, %s15
  %s17 = sld [smem:[#allocation0]]
  $region86: #{tpu_custom_call.1} parent=0
    _
  %s19 = ssub.s32 1, %s17
  %s20 = scalar_select 0, %s19, %s17
  %v21 = vstv %s6
  %22 = vst [vmem:[#allocation4] sm:$0x1] %v21
  %v23 = vstv %s12
  %24 = vst [vmem:[#allocation5] sm:$0x1] %v23
  $region1: #{tpu_custom_call.1} parent=0
    #allocation6 [shape = 'u8[2048]{0}', space=vmem, size = 0x800, scoped, tag = 'input window, operand 4, single buffered']
    #allocation7 [shape = 's32[1]{0}', space=sflag, size = 0x4, scoped, tag = 'scoped memory for tpu_custom_call.1']
    #allocation8 [shape = 'u8[4096]{0}', space=vmem, size = 0x1000, scoped, tag = 'input window, operand 9, single buffered']
    #allocation9 [shape = 's32[1]{0}', space=sflag, size = 0x4, scoped, tag = 'scoped memory for tpu_custom_call.1']
    %25 = vsyncpa [#allocation7], 0
    %26 = vsyncpa [#allocation9], 0
    // Predicated region
    $region2: #{tpu_custom_call.1} parent=1 // pred_check
      _
    $region3: #{tpu_custom_call.1} parent=1 // pred_check_branch
      %28 = sbr.rel (0) target = $region5
    $region4: #{tpu_custom_call.1} parent=1 // pred_region
      _
    $region5: #{tpu_custom_call.1} parent=1 // pred_fallthru
      _
    // Predicated region
    $region6: #{tpu_custom_call.1} parent=1 // pred_check
      _
    $region7: #{tpu_custom_call.1} parent=1 // pred_check_branch
      %30 = sbr.rel (0) target = $region9
    $region8: #{tpu_custom_call.1} parent=1 // pred_region
      _
    $region9: #{tpu_custom_call.1} parent=1 // pred_fallthru
      _
    // Predicated region
    $region10: #{tpu_custom_call.1} parent=1 // pred_check
      _
    $region11: #{tpu_custom_call.1} parent=1 // pred_check_branch
      %32 = sbr.rel (0) target = $region13
    $region12: #{tpu_custom_call.1} parent=1 // pred_region
      _
    $region13: #{tpu_custom_call.1} parent=1 // pred_fallthru
      _
    // Predicated region
    $region14: #{tpu_custom_call.1} parent=1 // pred_check
      _
    $region15: #{tpu_custom_call.1} parent=1 // pred_check_branch
      %34 = sbr.rel (0) target = $region17
    $region16: #{tpu_custom_call.1} parent=1 // pred_region
      _
    $region17: #{tpu_custom_call.1} parent=1 // pred_fallthru
      _
    // Predicated region
    $region18: #{tpu_custom_call.1} parent=1 // pred_check
      _
    $region19: #{tpu_custom_call.1} parent=1 // pred_check_branch
      %36 = sbr.rel (0) target = $region21
    $region20: #{tpu_custom_call.1} parent=1 // pred_region
      %s38 = ssub.s32 64, 64
      %39 = vsyncadd [#allocation7], %s38
      %s40 = sshll.u32 [#allocation6], 4
      %s41 = int_to_ptr.vmem [resolvable:$true] %s40
      %46 = dma.hbm_to_vmem [thread:$0]  %s4, 64, %s41, [#allocation7], 16, 16, 1
    $region21: #{tpu_custom_call.1} parent=1 // pred_fallthru
      _
    // Predicated region
    $region22: #{tpu_custom_call.1} parent=1 // pred_check
      _
    $region23: #{tpu_custom_call.1} parent=1 // pred_check_branch
      %48 = sbr.rel (0) target = $region25
    $region24: #{tpu_custom_call.1} parent=1 // pred_region
      _
    $region25: #{tpu_custom_call.1} parent=1 // pred_fallthru
      _
    // Predicated region
    $region26: #{tpu_custom_call.1} parent=1 // pred_check
      _
    $region27: #{tpu_custom_call.1} parent=1 // pred_check_branch
      %50 = sbr.rel (0) target = $region29
    $region28: #{tpu_custom_call.1} parent=1 // pred_region
      _
    $region29: #{tpu_custom_call.1} parent=1 // pred_fallthru
      _
    // Predicated region
    $region30: #{tpu_custom_call.1} parent=1 // pred_check
      _
    $region31: #{tpu_custom_call.1} parent=1 // pred_check_branch
      %52 = sbr.rel (0) target = $region33
    $region32: #{tpu_custom_call.1} parent=1 // pred_region
      _
    $region33: #{tpu_custom_call.1} parent=1 // pred_fallthru
      _
    // Predicated region
    $region34: #{tpu_custom_call.1} parent=1 // pred_check
      _
    $region35: #{tpu_custom_call.1} parent=1 // pred_check_branch
      %54 = sbr.rel (0) target = $region37
    $region36: #{tpu_custom_call.1} parent=1 // pred_region
      _
    $region37: #{tpu_custom_call.1} parent=1 // pred_fallthru
      _
    // Predicated region
    $region38: #{tpu_custom_call.1} parent=1 // pred_check
      _
    $region39: #{tpu_custom_call.1} parent=1 // pred_check_branch
      %56 = sbr.rel (0) target = $region41
    $region40: #{tpu_custom_call.1} parent=1 // pred_region
      %s58 = ssub.s32 128, 128
      %59 = vsyncadd [#allocation9], %s58
      %s61 = sshll.u32 [#allocation8], 4
      %s62 = int_to_ptr.vmem [resolvable:$true] %s61
      %64 = dma.hbm_to_vmem [thread:$0]  %s9, 128, %s62, [#allocation9]
    $region41: #{tpu_custom_call.1} parent=1 // pred_fallthru
      _
    // Predicated region
    $region42: #{tpu_custom_call.1} parent=1 // pred_check
      _
    $region43: #{tpu_custom_call.1} parent=1 // pred_check_branch
      %66 = sbr.rel (0) target = $region45
    $region44: #{tpu_custom_call.1} parent=1 // pred_region
      _
    $region45: #{tpu_custom_call.1} parent=1 // pred_fallthru
      _
    // Predicated region
    $region46: #{tpu_custom_call.1} parent=1 // pred_check
      _
    $region47: #{tpu_custom_call.1} parent=1 // pred_check_branch
      %68 = sbr.rel (0) target = $region49
    $region48: #{tpu_custom_call.1} parent=1 // pred_region
      _
    $region49: #{tpu_custom_call.1} parent=1 // pred_fallthru
      _
    // Predicated region
    $region50: #{tpu_custom_call.1} parent=1 // pred_check
      _
    $region51: #{tpu_custom_call.1} parent=1 // pred_check_branch
      %70 = sbr.rel (0) target = $region53
    $region52: #{tpu_custom_call.1} parent=1 // pred_region
      _
    $region53: #{tpu_custom_call.1} parent=1 // pred_fallthru
      _
    // Predicated region
    $region54: #{tpu_custom_call.1} parent=1 // pred_check
      _
    $region55: #{tpu_custom_call.1} parent=1 // pred_check_branch
      %72 = sbr.rel (0) target = $region57
    $region56: #{tpu_custom_call.1} parent=1 // pred_region
      %73 = dma.done [#allocation7], 64
    $region57: #{tpu_custom_call.1} parent=1 // pred_fallthru
      _
    // Predicated region
    $region58: #{tpu_custom_call.1} parent=1 // pred_check
      _
    $region59: #{tpu_custom_call.1} parent=1 // pred_check_branch
      %75 = sbr.rel (0) target = $region61
    $region60: #{tpu_custom_call.1} parent=1 // pred_region
      %76 = dma.done [#allocation9], 128
    $region61: #{tpu_custom_call.1} parent=1 // pred_fallthru
      _
    %v77 = vld [vmem:[%s0] sm:$0xff]
    %v78 = vld [vmem:[%s0 + $0x8] sm:$0xff]
    %v79 = vlaneseq
    %v80 = vand.u32 %v79, 127
    %81 = vset.pattern.permute.xlu0 0
    %82 = vperm.xlu0 %81, %v77
    %v83 = vpop.permute.xlu0 %82
    %84 = vset.pattern.permute.xlu0 0
    %85 = vperm.xlu0 %84, %v78
    %v86 = vpop.permute.xlu0 %85
    %vm87 = vcmp.eq.s32.totalorder %v80, %v83
    %vm88 = vcmp.eq.s32.totalorder %v80, %v86
    %v89 = vsel %vm87, 1, 0
    %v90 = vsel %vm88, 1, 0
    %v91 = vcvt.s32.f32 %v89
    %v92 = vcvt.s32.f32 %v90
    %v93 = vld [vmem:[%s1] sm:$0xff]
    %v94 = vld [vmem:[%s1 + $0x8] sm:$0xf]
    %vm95 = vcmask 97280
    %v97 = vsel %vm95, %v91, 0
    %v100 = vsel %vm95, %v92, 0
    %vm102 = vcmask 1043456
    %v104 = vsel %vm102, %v94, 0
    %106 = vmatprep.subr.mxu0 0.0
    %107 = vmatpush1.msra.mxu0 0.0
    %108 = vmatprep.subr.mxu0 0.0
    %109 = vmatpush1.msra.mxu0 0.0
    %110 = vmatprep.subr.mxu0 0.0
    %111 = vmatpush1.msra.mxu0 0.0
    %112 = vmatprep.subr.mxu0 0.0
    %113 = vmatpush1.msra.mxu0 0.0
    %114 = vmatprep.subr.mxu0 0.0
    %115 = vmatpush1.msra.mxu0 0.0
    %116 = vmatprep.subr.mxu0 0.0
    %117 = vmatpush1.msra.mxu0 0.0
    %118 = vmatprep.subr.mxu0 0.0
    %119 = vmatpush1.msra.mxu0 0.0
    %120 = vmatprep.subr.mxu0 0.0
    %121 = vmatpush1.msra.mxu0 0.0
    %122 = vmatprep.subr.mxu0 0.0
    %123 = vmatpush1.msra.mxu0 0.0
    %124 = vmatprep.subr.mxu0 0.0
    %125 = vmatpush1.msra.mxu0 0.0
    %126 = vmatprep.subr.mxu0 0.0
    %127 = vmatpush1.msra.mxu0 0.0
    %128 = vmatprep.subr.mxu0 0.0
    %129 = vmatpush1.msra.mxu0 0.0
    %130 = vmatprep.subr.mxu0 0.0
    %131 = vmatpush1.msra.mxu0 0.0
    %132 = vmatprep.subr.mxu0 0.0
    %133 = vmatpush1.msra.mxu0 0.0
    %134 = vmatprep.subr.mxu0 0.0
    %135 = vmatpush1.msra.mxu0 %v104
    %136 = vmatprep.subr.mxu0 0.0
    %137 = vmatpush1.msra.mxu0 %v93
    %138 = vmatprep.subr.mxu0 0.0
    %139 = vmatpush2.msra.mxu0 0.0
    %140 = vmatprep.subr.mxu0 0.0
    %141 = vmatpush2.msra.mxu0 0.0
    %142 = vmatprep.subr.mxu0 0.0
    %143 = vmatpush2.msra.mxu0 0.0
    %144 = vmatprep.subr.mxu0 0.0
    %145 = vmatpush2.msra.mxu0 0.0
    %146 = vmatprep.subr.mxu0 0.0
    %147 = vmatpush2.msra.mxu0 0.0
    %148 = vmatprep.subr.mxu0 0.0
    %149 = vmatpush2.msra.mxu0 0.0
    %150 = vmatprep.subr.mxu0 0.0
    %151 = vmatpush2.msra.mxu0 0.0
    %152 = vmatprep.subr.mxu0 0.0
    %153 = vmatpush2.msra.mxu0 0.0
    %154 = vmatprep.subr.mxu0 0.0
    %155 = vmatpush2.msra.mxu0 0.0
    %156 = vmatprep.subr.mxu0 0.0
    %157 = vmatpush2.msra.mxu0 0.0
    %158 = vmatprep.subr.mxu0 0.0
    %159 = vmatpush2.msra.mxu0 0.0
    %160 = vmatprep.subr.mxu0 0.0
    %161 = vmatpush2.msra.mxu0 0.0
    %162 = vmatprep.subr.mxu0 0.0
    %163 = vmatpush2.msra.mxu0 0.0
    %164 = vmatprep.subr.mxu0 0.0
    %165 = vmatpush2.msra.mxu0 0.0
    %166 = vmatprep.subr.mxu0 0.0
    %167 = vmatpush2.msra.mxu0 0.0
    %168 = vmatprep.subr.mxu0 0.0
    %169 = vmatpush2.msra.mxu0 0.0
    %170 = vmatprep.mubr.f32.mxu0 0.0
    %171 = vmatmul.mubr.f32.gmra.mxu0 %v97
    %v172 = vpop.f32.mrf.mxu0
    %v173 = vadd.f32 0.0, %v172
    %v174 = vpop.f32.mrf.mxu0
    %175 = vmatprep.mubr.f32.mxu0 0.0
    %176 = vmatmul.mubr.f32.gmra.mxu0 %v100
    %v177 = vpop.f32.mrf.mxu0
    %v178 = vadd.f32 0.0, %v177
    %v179 = vpop.f32.mrf.mxu0
    %180 = vdwg.mxu0
    %vm181 = vcmask 130048
    %182 = vst.msk [vmem:[#allocation2] sm:$0xff] %vm181, %v173
    %183 = vst.msk [vmem:[#allocation2 + $0x8] sm:$0xff] %vm181, %v178
    %v184 = vld [vmem:[#allocation2] sm:$0xff]
    %v185 = vld [vmem:[#allocation2 + $0x8] sm:$0xff]
    %v186 = vld [vmem:[%s2] sm:$0xff]
    %v187 = vld [vmem:[%s2 + $0x8] sm:$0xff]
    %v188 = vld [vmem:[#allocation6] sm:$0x1]
    %v190 = vlaneseq
    %v191 = vshrl.u32 %v190, 7
    %v192 = vsub.s32 0, %v191
    %v193 = vrot.slane %v188, %v192
    %v196 = vsel %vm181, %v184, 0
    %v199 = vsel %vm181, %v185, 0
    %201 = vmatprep.subr.mxu0 0.0
    %202 = vmatpush1.msra.mxu0 0.0
    %203 = vmatprep.subr.mxu0 0.0
    %204 = vmatpush1.msra.mxu0 0.0
    %205 = vmatprep.subr.mxu0 0.0
    %206 = vmatpush1.msra.mxu0 0.0
    %207 = vmatprep.subr.mxu0 0.0
    %208 = vmatpush1.msra.mxu0 0.0
    %209 = vmatprep.subr.mxu0 0.0
    %210 = vmatpush1.msra.mxu0 0.0
    %211 = vmatprep.subr.mxu0 0.0
    %212 = vmatpush1.msra.mxu0 0.0
    %213 = vmatprep.subr.mxu0 0.0
    %214 = vmatpush1.msra.mxu0 0.0
    %215 = vmatprep.subr.mxu0 0.0
    %216 = vmatpush1.msra.mxu0 0.0
    %217 = vmatprep.subr.mxu0 0.0
    %218 = vmatpush1.msra.mxu0 0.0
    %219 = vmatprep.subr.mxu0 0.0
    %220 = vmatpush1.msra.mxu0 0.0
    %221 = vmatprep.subr.mxu0 0.0
    %222 = vmatpush1.msra.mxu0 0.0
    %223 = vmatprep.subr.mxu0 0.0
    %224 = vmatpush1.msra.mxu0 0.0
    %225 = vmatprep.subr.mxu0 0.0
    %226 = vmatpush1.msra.mxu0 0.0
    %227 = vmatprep.subr.mxu0 0.0
    %228 = vmatpush1.msra.mxu0 0.0
    %229 = vmatprep.subr.mxu0 0.0
    %230 = vmatpush1.msra.mxu0 %v187
    %231 = vmatprep.subr.mxu0 0.0
    %232 = vmatpush1.msra.mxu0 %v186
    %233 = vmatprep.subr.mxu0 0.0
    %234 = vmatpush2.msra.mxu0 0.0
    %235 = vmatprep.subr.mxu0 0.0
    %236 = vmatpush2.msra.mxu0 0.0
    %237 = vmatprep.subr.mxu0 0.0
    %238 = vmatpush2.msra.mxu0 0.0
    %239 = vmatprep.subr.mxu0 0.0
    %240 = vmatpush2.msra.mxu0 0.0
    %241 = vmatprep.subr.mxu0 0.0
    %242 = vmatpush2.msra.mxu0 0.0
    %243 = vmatprep.subr.mxu0 0.0
    %244 = vmatpush2.msra.mxu0 0.0
    %245 = vmatprep.subr.mxu0 0.0
    %246 = vmatpush2.msra.mxu0 0.0
    %247 = vmatprep.subr.mxu0 0.0
    %248 = vmatpush2.msra.mxu0 0.0
    %249 = vmatprep.subr.mxu0 0.0
    %250 = vmatpush2.msra.mxu0 0.0
    %251 = vmatprep.subr.mxu0 0.0
    %252 = vmatpush2.msra.mxu0 0.0
    %253 = vmatprep.subr.mxu0 0.0
    %254 = vmatpush2.msra.mxu0 0.0
    %255 = vmatprep.subr.mxu0 0.0
    %256 = vmatpush2.msra.mxu0 0.0
    %257 = vmatprep.subr.mxu0 0.0
    %258 = vmatpush2.msra.mxu0 0.0
    %259 = vmatprep.subr.mxu0 0.0
    %260 = vmatpush2.msra.mxu0 0.0
    %261 = vmatprep.subr.mxu0 0.0
    %262 = vmatpush2.msra.mxu0 0.0
    %263 = vmatprep.subr.mxu0 0.0
    %264 = vmatpush2.msra.mxu0 0.0
    %265 = vmatprep.mubr.f32.mxu0 0.0
    %266 = vmatmul.mubr.f32.gmra.mxu0 %v196
    %v267 = vpop.f32.mrf.mxu0
    %v268 = vadd.f32 %v193, %v267
    %v269 = vpop.f32.mrf.mxu0
    %270 = vmatprep.mubr.f32.mxu0 0.0
    %271 = vmatmul.mubr.f32.gmra.mxu0 %v199
    %v272 = vpop.f32.mrf.mxu0
    %v273 = vadd.f32 %v193, %v272
    %v274 = vpop.f32.mrf.mxu0
    %275 = vdwg.mxu0
    %v276 = vld [vmem:[%s3] sm:$0xff]
    %v277 = vld [vmem:[%s3 + $0x8] sm:$0xff]
    %v279 = vsel %vm181, 0.0, 0
    %281 = vmatprep.subr.mxu0 0.0
    %282 = vmatpush1.msra.mxu0 0.0
    %283 = vmatprep.subr.mxu0 0.0
    %284 = vmatpush1.msra.mxu0 0.0
    %285 = vmatprep.subr.mxu0 0.0
    %286 = vmatpush1.msra.mxu0 0.0
    %287 = vmatprep.subr.mxu0 0.0
    %288 = vmatpush1.msra.mxu0 0.0
    %289 = vmatprep.subr.mxu0 0.0
    %290 = vmatpush1.msra.mxu0 0.0
    %291 = vmatprep.subr.mxu0 0.0
    %292 = vmatpush1.msra.mxu0 0.0
    %293 = vmatprep.subr.mxu0 0.0
    %294 = vmatpush1.msra.mxu0 0.0
    %295 = vmatprep.subr.mxu0 0.0
    %296 = vmatpush1.msra.mxu0 0.0
    %297 = vmatprep.subr.mxu0 0.0
    %298 = vmatpush1.msra.mxu0 0.0
    %299 = vmatprep.subr.mxu0 0.0
    %300 = vmatpush1.msra.mxu0 0.0
    %301 = vmatprep.subr.mxu0 0.0
    %302 = vmatpush1.msra.mxu0 0.0
    %303 = vmatprep.subr.mxu0 0.0
    %304 = vmatpush1.msra.mxu0 0.0
    %305 = vmatprep.subr.mxu0 0.0
    %306 = vmatpush1.msra.mxu0 0.0
    %307 = vmatprep.subr.mxu0 0.0
    %308 = vmatpush1.msra.mxu0 0.0
    %309 = vmatprep.subr.mxu0 0.0
    %310 = vmatpush1.msra.mxu0 %v277
    %311 = vmatprep.subr.mxu0 0.0
    %312 = vmatpush1.msra.mxu0 %v276
    %313 = vmatprep.subr.mxu0 0.0
    %314 = vmatpush2.msra.mxu0 0.0
    %315 = vmatprep.subr.mxu0 0.0
    %316 = vmatpush2.msra.mxu0 0.0
    %317 = vmatprep.subr.mxu0 0.0
    %318 = vmatpush2.msra.mxu0 0.0
    %319 = vmatprep.subr.mxu0 0.0
    %320 = vmatpush2.msra.mxu0 0.0
    %321 = vmatprep.subr.mxu0 0.0
    %322 = vmatpush2.msra.mxu0 0.0
    %323 = vmatprep.subr.mxu0 0.0
    %324 = vmatpush2.msra.mxu0 0.0
    %325 = vmatprep.subr.mxu0 0.0
    %326 = vmatpush2.msra.mxu0 0.0
    %327 = vmatprep.subr.mxu0 0.0
    %328 = vmatpush2.msra.mxu0 0.0
    %329 = vmatprep.subr.mxu0 0.0
    %330 = vmatpush2.msra.mxu0 0.0
    %331 = vmatprep.subr.mxu0 0.0
    %332 = vmatpush2.msra.mxu0 0.0
    %333 = vmatprep.subr.mxu0 0.0
    %334 = vmatpush2.msra.mxu0 0.0
    %335 = vmatprep.subr.mxu0 0.0
    %336 = vmatpush2.msra.mxu0 0.0
    %337 = vmatprep.subr.mxu0 0.0
    %338 = vmatpush2.msra.mxu0 0.0
    %339 = vmatprep.subr.mxu0 0.0
    %340 = vmatpush2.msra.mxu0 0.0
    %341 = vmatprep.subr.mxu0 0.0
    %342 = vmatpush2.msra.mxu0 0.0
    %343 = vmatprep.subr.mxu0 0.0
    %344 = vmatpush2.msra.mxu0 0.0
    %345 = vmatprep.mubr.f32.mxu0 0.0
    %346 = vmatmul.mubr.f32.gmra.mxu0 %v279
    %v347 = vpop.f32.mrf.mxu0
    %v348 = vadd.f32 0.0, %v347
    %v349 = vpop.f32.mrf.mxu0
    %350 = vdwg.mxu0
    %v351 = vadd.f32 %v268, %v348
    %v352 = vxor.u32 %v351, 2147483648
    %v353 = vmul.f32 %v352, 1.442695
    %v354 = vpow.pop %v353
    %v355 = vadd.f32 %v354, 1.0
    %v356 = vrcp.pop %v355
    %v357 = vmul.f32 1.0, %v356
    %v358 = vtanh.pop %v351
    %v359 = vmul.f32 %v357, 0.0
    %361 = vrot.lane.b32.xlu0 %v358, 96
    %v362 = vpop.permute.xlu0 %361
    %v364 = vmul.f32 %v357, %v362
    %366 = vrot.lane.b32.xlu0 %v364, 16
    %v367 = vpop.permute.xlu0 %366
    %v369 = vadd.f32 %v359, %v367
    %v370 = vtanh.pop %v369
    %372 = vrot.lane.b32.xlu0 %v370, 32
    %v373 = vpop.permute.xlu0 %372
    %v375 = vmul.f32 %v357, %v373
    %377 = vrot.lane.b32.xlu0 %v375, 80
    %v378 = vpop.permute.xlu0 %377
    %vm380 = vcmask 123904
    %381 = vst.msk [vmem:[#allocation3] sm:$0x3] %vm380, %v378
    %v382 = vsel %vm181, %v378, 0
    %384 = vmatprep.subr.mxu0 0.0
    %385 = vmatpush1.msra.mxu0 0.0
    %386 = vmatprep.subr.mxu0 0.0
    %387 = vmatpush1.msra.mxu0 0.0
    %388 = vmatprep.subr.mxu0 0.0
    %389 = vmatpush1.msra.mxu0 0.0
    %390 = vmatprep.subr.mxu0 0.0
    %391 = vmatpush1.msra.mxu0 0.0
    %392 = vmatprep.subr.mxu0 0.0
    %393 = vmatpush1.msra.mxu0 0.0
    %394 = vmatprep.subr.mxu0 0.0
    %395 = vmatpush1.msra.mxu0 0.0
    %396 = vmatprep.subr.mxu0 0.0
    %397 = vmatpush1.msra.mxu0 0.0
    %398 = vmatprep.subr.mxu0 0.0
    %399 = vmatpush1.msra.mxu0 0.0
    %400 = vmatprep.subr.mxu0 0.0
    %401 = vmatpush1.msra.mxu0 0.0
    %402 = vmatprep.subr.mxu0 0.0
    %403 = vmatpush1.msra.mxu0 0.0
    %404 = vmatprep.subr.mxu0 0.0
    %405 = vmatpush1.msra.mxu0 0.0
    %406 = vmatprep.subr.mxu0 0.0
    %407 = vmatpush1.msra.mxu0 0.0
    %408 = vmatprep.subr.mxu0 0.0
    %409 = vmatpush1.msra.mxu0 0.0
    %410 = vmatprep.subr.mxu0 0.0
    %411 = vmatpush1.msra.mxu0 0.0
    %412 = vmatprep.subr.mxu0 0.0
    %413 = vmatpush1.msra.mxu0 %v277
    %414 = vmatprep.subr.mxu0 0.0
    %415 = vmatpush1.msra.mxu0 %v276
    %416 = vmatprep.subr.mxu0 0.0
    %417 = vmatpush2.msra.mxu0 0.0
    %418 = vmatprep.subr.mxu0 0.0
    %419 = vmatpush2.msra.mxu0 0.0
    %420 = vmatprep.subr.mxu0 0.0
    %421 = vmatpush2.msra.mxu0 0.0
    %422 = vmatprep.subr.mxu0 0.0
    %423 = vmatpush2.msra.mxu0 0.0
    %424 = vmatprep.subr.mxu0 0.0
    %425 = vmatpush2.msra.mxu0 0.0
    %426 = vmatprep.subr.mxu0 0.0
    %427 = vmatpush2.msra.mxu0 0.0
    %428 = vmatprep.subr.mxu0 0.0
    %429 = vmatpush2.msra.mxu0 0.0
    %430 = vmatprep.subr.mxu0 0.0
    %431 = vmatpush2.msra.mxu0 0.0
    %432 = vmatprep.subr.mxu0 0.0
    %433 = vmatpush2.msra.mxu0 0.0
    %434 = vmatprep.subr.mxu0 0.0
    %435 = vmatpush2.msra.mxu0 0.0
    %436 = vmatprep.subr.mxu0 0.0
    %437 = vmatpush2.msra.mxu0 0.0
    %438 = vmatprep.subr.mxu0 0.0
    %439 = vmatpush2.msra.mxu0 0.0
    %440 = vmatprep.subr.mxu0 0.0
    %441 = vmatpush2.msra.mxu0 0.0
    %442 = vmatprep.subr.mxu0 0.0
    %443 = vmatpush2.msra.mxu0 0.0
    %444 = vmatprep.subr.mxu0 0.0
    %445 = vmatpush2.msra.mxu0 0.0
    %446 = vmatprep.subr.mxu0 0.0
    %447 = vmatpush2.msra.mxu0 0.0
    %448 = vmatprep.mubr.f32.mxu0 0.0
    %449 = vmatmul.mubr.f32.gmra.mxu0 %v382
    %v450 = vpop.f32.mrf.mxu0
    %v451 = vadd.f32 0.0, %v450
    %v452 = vpop.f32.mrf.mxu0
    %453 = vdwg.mxu0
    %v455 = vrot.slane %v451, 6
    %v457 = vadd.f32 %v268, %v455
    %v458 = vxor.u32 %v457, 2147483648
    %v459 = vmul.f32 %v458, 1.442695
    %v460 = vpow.pop %v459
    %v461 = vadd.f32 %v460, 1.0
    %v462 = vrcp.pop %v461
    %v463 = vmul.f32 1.0, %v462
    %v464 = vtanh.pop %v457
    %v466 = vrot.slane %v369, 6
    %v468 = vmul.f32 %v463, %v466
    %470 = vrot.lane.b32.xlu0 %v464, 96
    %v471 = vpop.permute.xlu0 %470
    %v473 = vmul.f32 %v463, %v471
    %475 = vrot.lane.b32.xlu0 %v473, 16
    %v476 = vpop.permute.xlu0 %475
    %v478 = vadd.f32 %v468, %v476
    %v479 = vtanh.pop %v478
    %481 = vrot.lane.b32.xlu0 %v479, 32
    %v482 = vpop.permute.xlu0 %481
    %v484 = vmul.f32 %v463, %v482
    %486 = vrot.lane.b32.xlu0 %v484, 80
    %v487 = vpop.permute.xlu0 %486
    %vm489 = vcmask 125954
    %490 = vst.msk [vmem:[#allocation3] sm:$0xc] %vm489, %v487
    %v491 = vrot.slane %v484, 2
    %492 = vrot.lane.b32.xlu0 %v491, 80
    %v493 = vpop.permute.xlu0 %492
    %v494 = vsel %vm181, %v493, 0
    %496 = vmatprep.subr.mxu0 0.0
    %497 = vmatpush1.msra.mxu0 0.0
    %498 = vmatprep.subr.mxu0 0.0
    %499 = vmatpush1.msra.mxu0 0.0
    %500 = vmatprep.subr.mxu0 0.0
    %501 = vmatpush1.msra.mxu0 0.0
    %502 = vmatprep.subr.mxu0 0.0
    %503 = vmatpush1.msra.mxu0 0.0
    %504 = vmatprep.subr.mxu0 0.0
    %505 = vmatpush1.msra.mxu0 0.0
    %506 = vmatprep.subr.mxu0 0.0
    %507 = vmatpush1.msra.mxu0 0.0
    %508 = vmatprep.subr.mxu0 0.0
    %509 = vmatpush1.msra.mxu0 0.0
    %510 = vmatprep.subr.mxu0 0.0
    %511 = vmatpush1.msra.mxu0 0.0
    %512 = vmatprep.subr.mxu0 0.0
    %513 = vmatpush1.msra.mxu0 0.0
    %514 = vmatprep.subr.mxu0 0.0
    %515 = vmatpush1.msra.mxu0 0.0
    %516 = vmatprep.subr.mxu0 0.0
    %517 = vmatpush1.msra.mxu0 0.0
    %518 = vmatprep.subr.mxu0 0.0
    %519 = vmatpush1.msra.mxu0 0.0
    %520 = vmatprep.subr.mxu0 0.0
    %521 = vmatpush1.msra.mxu0 0.0
    %522 = vmatprep.subr.mxu0 0.0
    %523 = vmatpush1.msra.mxu0 0.0
    %524 = vmatprep.subr.mxu0 0.0
    %525 = vmatpush1.msra.mxu0 %v277
    %526 = vmatprep.subr.mxu0 0.0
    %527 = vmatpush1.msra.mxu0 %v276
    %528 = vmatprep.subr.mxu0 0.0
    %529 = vmatpush2.msra.mxu0 0.0
    %530 = vmatprep.subr.mxu0 0.0
    %531 = vmatpush2.msra.mxu0 0.0
    %532 = vmatprep.subr.mxu0 0.0
    %533 = vmatpush2.msra.mxu0 0.0
    %534 = vmatprep.subr.mxu0 0.0
    %535 = vmatpush2.msra.mxu0 0.0
    %536 = vmatprep.subr.mxu0 0.0
    %537 = vmatpush2.msra.mxu0 0.0
    %538 = vmatprep.subr.mxu0 0.0
    %539 = vmatpush2.msra.mxu0 0.0
    %540 = vmatprep.subr.mxu0 0.0
    %541 = vmatpush2.msra.mxu0 0.0
    %542 = vmatprep.subr.mxu0 0.0
    %543 = vmatpush2.msra.mxu0 0.0
    %544 = vmatprep.subr.mxu0 0.0
    %545 = vmatpush2.msra.mxu0 0.0
    %546 = vmatprep.subr.mxu0 0.0
    %547 = vmatpush2.msra.mxu0 0.0
    %548 = vmatprep.subr.mxu0 0.0
    %549 = vmatpush2.msra.mxu0 0.0
    %550 = vmatprep.subr.mxu0 0.0
    %551 = vmatpush2.msra.mxu0 0.0
    %552 = vmatprep.subr.mxu0 0.0
    %553 = vmatpush2.msra.mxu0 0.0
    %554 = vmatprep.subr.mxu0 0.0
    %555 = vmatpush2.msra.mxu0 0.0
    %556 = vmatprep.subr.mxu0 0.0
    %557 = vmatpush2.msra.mxu0 0.0
    %558 = vmatprep.subr.mxu0 0.0
    %559 = vmatpush2.msra.mxu0 0.0
    %560 = vmatprep.mubr.f32.mxu0 0.0
    %561 = vmatmul.mubr.f32.gmra.mxu0 %v494
    %v562 = vpop.f32.mrf.mxu0
    %v563 = vadd.f32 0.0, %v562
    %v564 = vpop.f32.mrf.mxu0
    %565 = vdwg.mxu0
    %v567 = vrot.slane %v563, 4
    %v569 = vadd.f32 %v268, %v567
    %v570 = vxor.u32 %v569, 2147483648
    %v571 = vmul.f32 %v570, 1.442695
    %v572 = vpow.pop %v571
    %v573 = vadd.f32 %v572, 1.0
    %v574 = vrcp.pop %v573
    %v575 = vmul.f32 1.0, %v574
    %v576 = vtanh.pop %v569
    %v578 = vrot.slane %v478, 6
    %v580 = vmul.f32 %v575, %v578
    %582 = vrot.lane.b32.xlu0 %v576, 96
    %v583 = vpop.permute.xlu0 %582
    %v585 = vmul.f32 %v575, %v583
    %587 = vrot.lane.b32.xlu0 %v585, 16
    %v588 = vpop.permute.xlu0 %587
    %v590 = vadd.f32 %v580, %v588
    %v591 = vtanh.pop %v590
    %593 = vrot.lane.b32.xlu0 %v591, 32
    %v594 = vpop.permute.xlu0 %593
    %v596 = vmul.f32 %v575, %v594
    %598 = vrot.lane.b32.xlu0 %v596, 80
    %v599 = vpop.permute.xlu0 %598
    %vm601 = vcmask 128004
    %602 = vst.msk [vmem:[#allocation3] sm:$0x30] %vm601, %v599
    %v603 = vrot.slane %v596, 4
    %604 = vrot.lane.b32.xlu0 %v603, 80
    %v605 = vpop.permute.xlu0 %604
    %v606 = vsel %vm181, %v605, 0
    %608 = vmatprep.subr.mxu0 0.0
    %609 = vmatpush1.msra.mxu0 0.0
    %610 = vmatprep.subr.mxu0 0.0
    %611 = vmatpush1.msra.mxu0 0.0
    %612 = vmatprep.subr.mxu0 0.0
    %613 = vmatpush1.msra.mxu0 0.0
    %614 = vmatprep.subr.mxu0 0.0
    %615 = vmatpush1.msra.mxu0 0.0
    %616 = vmatprep.subr.mxu0 0.0
    %617 = vmatpush1.msra.mxu0 0.0
    %618 = vmatprep.subr.mxu0 0.0
    %619 = vmatpush1.msra.mxu0 0.0
    %620 = vmatprep.subr.mxu0 0.0
    %621 = vmatpush1.msra.mxu0 0.0
    %622 = vmatprep.subr.mxu0 0.0
    %623 = vmatpush1.msra.mxu0 0.0
    %624 = vmatprep.subr.mxu0 0.0
    %625 = vmatpush1.msra.mxu0 0.0
    %626 = vmatprep.subr.mxu0 0.0
    %627 = vmatpush1.msra.mxu0 0.0
    %628 = vmatprep.subr.mxu0 0.0
    %629 = vmatpush1.msra.mxu0 0.0
    %630 = vmatprep.subr.mxu0 0.0
    %631 = vmatpush1.msra.mxu0 0.0
    %632 = vmatprep.subr.mxu0 0.0
    %633 = vmatpush1.msra.mxu0 0.0
    %634 = vmatprep.subr.mxu0 0.0
    %635 = vmatpush1.msra.mxu0 0.0
    %636 = vmatprep.subr.mxu0 0.0
    %637 = vmatpush1.msra.mxu0 %v277
    %638 = vmatprep.subr.mxu0 0.0
    %639 = vmatpush1.msra.mxu0 %v276
    %640 = vmatprep.subr.mxu0 0.0
    %641 = vmatpush2.msra.mxu0 0.0
    %642 = vmatprep.subr.mxu0 0.0
    %643 = vmatpush2.msra.mxu0 0.0
    %644 = vmatprep.subr.mxu0 0.0
    %645 = vmatpush2.msra.mxu0 0.0
    %646 = vmatprep.subr.mxu0 0.0
    %647 = vmatpush2.msra.mxu0 0.0
    %648 = vmatprep.subr.mxu0 0.0
    %649 = vmatpush2.msra.mxu0 0.0
    %650 = vmatprep.subr.mxu0 0.0
    %651 = vmatpush2.msra.mxu0 0.0
    %652 = vmatprep.subr.mxu0 0.0
    %653 = vmatpush2.msra.mxu0 0.0
    %654 = vmatprep.subr.mxu0 0.0
    %655 = vmatpush2.msra.mxu0 0.0
    %656 = vmatprep.subr.mxu0 0.0
    %657 = vmatpush2.msra.mxu0 0.0
    %658 = vmatprep.subr.mxu0 0.0
    %659 = vmatpush2.msra.mxu0 0.0
    %660 = vmatprep.subr.mxu0 0.0
    %661 = vmatpush2.msra.mxu0 0.0
    %662 = vmatprep.subr.mxu0 0.0
    %663 = vmatpush2.msra.mxu0 0.0
    %664 = vmatprep.subr.mxu0 0.0
    %665 = vmatpush2.msra.mxu0 0.0
    %666 = vmatprep.subr.mxu0 0.0
    %667 = vmatpush2.msra.mxu0 0.0
    %668 = vmatprep.subr.mxu0 0.0
    %669 = vmatpush2.msra.mxu0 0.0
    %670 = vmatprep.subr.mxu0 0.0
    %671 = vmatpush2.msra.mxu0 0.0
    %672 = vmatprep.mubr.f32.mxu0 0.0
    %673 = vmatmul.mubr.f32.gmra.mxu0 %v606
    %v674 = vpop.f32.mrf.mxu0
    %v675 = vadd.f32 0.0, %v674
    %v676 = vpop.f32.mrf.mxu0
    %677 = vdwg.mxu0
    %v679 = vrot.slane %v675, 2
    %v681 = vadd.f32 %v268, %v679
    %v682 = vxor.u32 %v681, 2147483648
    %v683 = vmul.f32 %v682, 1.442695
    %v684 = vpow.pop %v683
    %v685 = vadd.f32 %v684, 1.0
    %v686 = vrcp.pop %v685
    %v687 = vmul.f32 1.0, %v686
    %v688 = vtanh.pop %v681
    %v690 = vrot.slane %v590, 6
    %v692 = vmul.f32 %v687, %v690
    %694 = vrot.lane.b32.xlu0 %v688, 96
    %v695 = vpop.permute.xlu0 %694
    %v697 = vmul.f32 %v687, %v695
    %699 = vrot.lane.b32.xlu0 %v697, 16
    %v700 = vpop.permute.xlu0 %699
    %v702 = vadd.f32 %v692, %v700
    %v703 = vtanh.pop %v702
    %705 = vrot.lane.b32.xlu0 %v703, 32
    %v706 = vpop.permute.xlu0 %705
    %v708 = vmul.f32 %v687, %v706
    %710 = vrot.lane.b32.xlu0 %v708, 80
    %v711 = vpop.permute.xlu0 %710
    %vm713 = vcmask 130054
    %714 = vst.msk [vmem:[#allocation3] sm:$0xc0] %vm713, %v711
    %v715 = vrot.slane %v708, 6
    %716 = vrot.lane.b32.xlu0 %v715, 80
    %v717 = vpop.permute.xlu0 %716
    %v718 = vsel %vm181, %v717, 0
    %720 = vmatprep.subr.mxu0 0.0
    %721 = vmatpush1.msra.mxu0 0.0
    %722 = vmatprep.subr.mxu0 0.0
    %723 = vmatpush1.msra.mxu0 0.0
    %724 = vmatprep.subr.mxu0 0.0
    %725 = vmatpush1.msra.mxu0 0.0
    %726 = vmatprep.subr.mxu0 0.0
    %727 = vmatpush1.msra.mxu0 0.0
    %728 = vmatprep.subr.mxu0 0.0
    %729 = vmatpush1.msra.mxu0 0.0
    %730 = vmatprep.subr.mxu0 0.0
    %731 = vmatpush1.msra.mxu0 0.0
    %732 = vmatprep.subr.mxu0 0.0
    %733 = vmatpush1.msra.mxu0 0.0
    %734 = vmatprep.subr.mxu0 0.0
    %735 = vmatpush1.msra.mxu0 0.0
    %736 = vmatprep.subr.mxu0 0.0
    %737 = vmatpush1.msra.mxu0 0.0
    %738 = vmatprep.subr.mxu0 0.0
    %739 = vmatpush1.msra.mxu0 0.0
    %740 = vmatprep.subr.mxu0 0.0
    %741 = vmatpush1.msra.mxu0 0.0
    %742 = vmatprep.subr.mxu0 0.0
    %743 = vmatpush1.msra.mxu0 0.0
    %744 = vmatprep.subr.mxu0 0.0
    %745 = vmatpush1.msra.mxu0 0.0
    %746 = vmatprep.subr.mxu0 0.0
    %747 = vmatpush1.msra.mxu0 0.0
    %748 = vmatprep.subr.mxu0 0.0
    %749 = vmatpush1.msra.mxu0 %v277
    %750 = vmatprep.subr.mxu0 0.0
    %751 = vmatpush1.msra.mxu0 %v276
    %752 = vmatprep.subr.mxu0 0.0
    %753 = vmatpush2.msra.mxu0 0.0
    %754 = vmatprep.subr.mxu0 0.0
    %755 = vmatpush2.msra.mxu0 0.0
    %756 = vmatprep.subr.mxu0 0.0
    %757 = vmatpush2.msra.mxu0 0.0
    %758 = vmatprep.subr.mxu0 0.0
    %759 = vmatpush2.msra.mxu0 0.0
    %760 = vmatprep.subr.mxu0 0.0
    %761 = vmatpush2.msra.mxu0 0.0
    %762 = vmatprep.subr.mxu0 0.0
    %763 = vmatpush2.msra.mxu0 0.0
    %764 = vmatprep.subr.mxu0 0.0
    %765 = vmatpush2.msra.mxu0 0.0
    %766 = vmatprep.subr.mxu0 0.0
    %767 = vmatpush2.msra.mxu0 0.0
    %768 = vmatprep.subr.mxu0 0.0
    %769 = vmatpush2.msra.mxu0 0.0
    %770 = vmatprep.subr.mxu0 0.0
    %771 = vmatpush2.msra.mxu0 0.0
    %772 = vmatprep.subr.mxu0 0.0
    %773 = vmatpush2.msra.mxu0 0.0
    %774 = vmatprep.subr.mxu0 0.0
    %775 = vmatpush2.msra.mxu0 0.0
    %776 = vmatprep.subr.mxu0 0.0
    %777 = vmatpush2.msra.mxu0 0.0
    %778 = vmatprep.subr.mxu0 0.0
    %779 = vmatpush2.msra.mxu0 0.0
    %780 = vmatprep.subr.mxu0 0.0
    %781 = vmatpush2.msra.mxu0 0.0
    %782 = vmatprep.subr.mxu0 0.0
    %783 = vmatpush2.msra.mxu0 0.0
    %784 = vmatprep.mubr.f32.mxu0 0.0
    %785 = vmatmul.mubr.f32.gmra.mxu0 %v718
    %v786 = vpop.f32.mrf.mxu0
    %v787 = vadd.f32 0.0, %v786
    %v788 = vpop.f32.mrf.mxu0
    %789 = vdwg.mxu0
    %v790 = vadd.f32 %v273, %v787
    %v791 = vxor.u32 %v790, 2147483648
    %v792 = vmul.f32 %v791, 1.442695
    %v793 = vpow.pop %v792
    %v794 = vadd.f32 %v793, 1.0
    %v795 = vrcp.pop %v794
    %v796 = vmul.f32 1.0, %v795
    %v797 = vtanh.pop %v790
    %v799 = vrot.slane %v702, 6
    %v801 = vmul.f32 %v796, %v799
    %803 = vrot.lane.b32.xlu0 %v797, 96
    %v804 = vpop.permute.xlu0 %803
    %v806 = vmul.f32 %v796, %v804
    %808 = vrot.lane.b32.xlu0 %v806, 16
    %v809 = vpop.permute.xlu0 %808
    %v811 = vadd.f32 %v801, %v809
    %v812 = vtanh.pop %v811
    %814 = vrot.lane.b32.xlu0 %v812, 32
    %v815 = vpop.permute.xlu0 %814
    %v817 = vmul.f32 %v796, %v815
    %819 = vrot.lane.b32.xlu0 %v817, 80
    %v820 = vpop.permute.xlu0 %819
    %822 = vst.msk [vmem:[#allocation3 + $0x8] sm:$0x3] %vm380, %v820
    %v823 = vsel %vm181, %v820, 0
    %825 = vmatprep.subr.mxu0 0.0
    %826 = vmatpush1.msra.mxu0 0.0
    %827 = vmatprep.subr.mxu0 0.0
    %828 = vmatpush1.msra.mxu0 0.0
    %829 = vmatprep.subr.mxu0 0.0
    %830 = vmatpush1.msra.mxu0 0.0
    %831 = vmatprep.subr.mxu0 0.0
    %832 = vmatpush1.msra.mxu0 0.0
    %833 = vmatprep.subr.mxu0 0.0
    %834 = vmatpush1.msra.mxu0 0.0
    %835 = vmatprep.subr.mxu0 0.0
    %836 = vmatpush1.msra.mxu0 0.0
    %837 = vmatprep.subr.mxu0 0.0
    %838 = vmatpush1.msra.mxu0 0.0
    %839 = vmatprep.subr.mxu0 0.0
    %840 = vmatpush1.msra.mxu0 0.0
    %841 = vmatprep.subr.mxu0 0.0
    %842 = vmatpush1.msra.mxu0 0.0
    %843 = vmatprep.subr.mxu0 0.0
    %844 = vmatpush1.msra.mxu0 0.0
    %845 = vmatprep.subr.mxu0 0.0
    %846 = vmatpush1.msra.mxu0 0.0
    %847 = vmatprep.subr.mxu0 0.0
    %848 = vmatpush1.msra.mxu0 0.0
    %849 = vmatprep.subr.mxu0 0.0
    %850 = vmatpush1.msra.mxu0 0.0
    %851 = vmatprep.subr.mxu0 0.0
    %852 = vmatpush1.msra.mxu0 0.0
    %853 = vmatprep.subr.mxu0 0.0
    %854 = vmatpush1.msra.mxu0 %v277
    %855 = vmatprep.subr.mxu0 0.0
    %856 = vmatpush1.msra.mxu0 %v276
    %857 = vmatprep.subr.mxu0 0.0
    %858 = vmatpush2.msra.mxu0 0.0
    %859 = vmatprep.subr.mxu0 0.0
    %860 = vmatpush2.msra.mxu0 0.0
    %861 = vmatprep.subr.mxu0 0.0
    %862 = vmatpush2.msra.mxu0 0.0
    %863 = vmatprep.subr.mxu0 0.0
    %864 = vmatpush2.msra.mxu0 0.0
    %865 = vmatprep.subr.mxu0 0.0
    %866 = vmatpush2.msra.mxu0 0.0
    %867 = vmatprep.subr.mxu0 0.0
    %868 = vmatpush2.msra.mxu0 0.0
    %869 = vmatprep.subr.mxu0 0.0
    %870 = vmatpush2.msra.mxu0 0.0
    %871 = vmatprep.subr.mxu0 0.0
    %872 = vmatpush2.msra.mxu0 0.0
    %873 = vmatprep.subr.mxu0 0.0
    %874 = vmatpush2.msra.mxu0 0.0
    %875 = vmatprep.subr.mxu0 0.0
    %876 = vmatpush2.msra.mxu0 0.0
    %877 = vmatprep.subr.mxu0 0.0
    %878 = vmatpush2.msra.mxu0 0.0
    %879 = vmatprep.subr.mxu0 0.0
    %880 = vmatpush2.msra.mxu0 0.0
    %881 = vmatprep.subr.mxu0 0.0
    %882 = vmatpush2.msra.mxu0 0.0
    %883 = vmatprep.subr.mxu0 0.0
    %884 = vmatpush2.msra.mxu0 0.0
    %885 = vmatprep.subr.mxu0 0.0
    %886 = vmatpush2.msra.mxu0 0.0
    %887 = vmatprep.subr.mxu0 0.0
    %888 = vmatpush2.msra.mxu0 0.0
    %889 = vmatprep.mubr.f32.mxu0 0.0
    %890 = vmatmul.mubr.f32.gmra.mxu0 %v823
    %v891 = vpop.f32.mrf.mxu0
    %v892 = vadd.f32 0.0, %v891
    %v893 = vpop.f32.mrf.mxu0
    %894 = vdwg.mxu0
    %v896 = vrot.slane %v892, 6
    %v898 = vadd.f32 %v273, %v896
    %v899 = vxor.u32 %v898, 2147483648
    %v900 = vmul.f32 %v899, 1.442695
    %v901 = vpow.pop %v900
    %v902 = vadd.f32 %v901, 1.0
    %v903 = vrcp.pop %v902
    %v904 = vmul.f32 1.0, %v903
    %v905 = vtanh.pop %v898
    %v907 = vrot.slane %v811, 6
    %v909 = vmul.f32 %v904, %v907
    %911 = vrot.lane.b32.xlu0 %v905, 96
    %v912 = vpop.permute.xlu0 %911
    %v914 = vmul.f32 %v904, %v912
    %916 = vrot.lane.b32.xlu0 %v914, 16
    %v917 = vpop.permute.xlu0 %916
    %v919 = vadd.f32 %v909, %v917
    %v920 = vtanh.pop %v919
    %922 = vrot.lane.b32.xlu0 %v920, 32
    %v923 = vpop.permute.xlu0 %922
    %v925 = vmul.f32 %v904, %v923
    %927 = vrot.lane.b32.xlu0 %v925, 80
    %v928 = vpop.permute.xlu0 %927
    %930 = vst.msk [vmem:[#allocation3 + $0x8] sm:$0xc] %vm489, %v928
    %v931 = vrot.slane %v925, 2
    %932 = vrot.lane.b32.xlu0 %v931, 80
    %v933 = vpop.permute.xlu0 %932
    %v934 = vsel %vm181, %v933, 0
    %936 = vmatprep.subr.mxu0 0.0
    %937 = vmatpush1.msra.mxu0 0.0
    %938 = vmatprep.subr.mxu0 0.0
    %939 = vmatpush1.msra.mxu0 0.0
    %940 = vmatprep.subr.mxu0 0.0
    %941 = vmatpush1.msra.mxu0 0.0
    %942 = vmatprep.subr.mxu0 0.0
    %943 = vmatpush1.msra.mxu0 0.0
    %944 = vmatprep.subr.mxu0 0.0
    %945 = vmatpush1.msra.mxu0 0.0
    %946 = vmatprep.subr.mxu0 0.0
    %947 = vmatpush1.msra.mxu0 0.0
    %948 = vmatprep.subr.mxu0 0.0
    %949 = vmatpush1.msra.mxu0 0.0
    %950 = vmatprep.subr.mxu0 0.0
    %951 = vmatpush1.msra.mxu0 0.0
    %952 = vmatprep.subr.mxu0 0.0
    %953 = vmatpush1.msra.mxu0 0.0
    %954 = vmatprep.subr.mxu0 0.0
    %955 = vmatpush1.msra.mxu0 0.0
    %956 = vmatprep.subr.mxu0 0.0
    %957 = vmatpush1.msra.mxu0 0.0
    %958 = vmatprep.subr.mxu0 0.0
    %959 = vmatpush1.msra.mxu0 0.0
    %960 = vmatprep.subr.mxu0 0.0
    %961 = vmatpush1.msra.mxu0 0.0
    %962 = vmatprep.subr.mxu0 0.0
    %963 = vmatpush1.msra.mxu0 0.0
    %964 = vmatprep.subr.mxu0 0.0
    %965 = vmatpush1.msra.mxu0 %v277
    %966 = vmatprep.subr.mxu0 0.0
    %967 = vmatpush1.msra.mxu0 %v276
    %968 = vmatprep.subr.mxu0 0.0
    %969 = vmatpush2.msra.mxu0 0.0
    %970 = vmatprep.subr.mxu0 0.0
    %971 = vmatpush2.msra.mxu0 0.0
    %972 = vmatprep.subr.mxu0 0.0
    %973 = vmatpush2.msra.mxu0 0.0
    %974 = vmatprep.subr.mxu0 0.0
    %975 = vmatpush2.msra.mxu0 0.0
    %976 = vmatprep.subr.mxu0 0.0
    %977 = vmatpush2.msra.mxu0 0.0
    %978 = vmatprep.subr.mxu0 0.0
    %979 = vmatpush2.msra.mxu0 0.0
    %980 = vmatprep.subr.mxu0 0.0
    %981 = vmatpush2.msra.mxu0 0.0
    %982 = vmatprep.subr.mxu0 0.0
    %983 = vmatpush2.msra.mxu0 0.0
    %984 = vmatprep.subr.mxu0 0.0
    %985 = vmatpush2.msra.mxu0 0.0
    %986 = vmatprep.subr.mxu0 0.0
    %987 = vmatpush2.msra.mxu0 0.0
    %988 = vmatprep.subr.mxu0 0.0
    %989 = vmatpush2.msra.mxu0 0.0
    %990 = vmatprep.subr.mxu0 0.0
    %991 = vmatpush2.msra.mxu0 0.0
    %992 = vmatprep.subr.mxu0 0.0
    %993 = vmatpush2.msra.mxu0 0.0
    %994 = vmatprep.subr.mxu0 0.0
    %995 = vmatpush2.msra.mxu0 0.0
    %996 = vmatprep.subr.mxu0 0.0
    %997 = vmatpush2.msra.mxu0 0.0
    %998 = vmatprep.subr.mxu0 0.0
    %999 = vmatpush2.msra.mxu0 0.0
    %1000 = vmatprep.mubr.f32.mxu0 0.0
    %1001 = vmatmul.mubr.f32.gmra.mxu0 %v934
    %v1002 = vpop.f32.mrf.mxu0
    %v1003 = vadd.f32 0.0, %v1002
    %v1004 = vpop.f32.mrf.mxu0
    %1005 = vdwg.mxu0
    %v1007 = vrot.slane %v1003, 4
    %v1009 = vadd.f32 %v273, %v1007
    %v1010 = vxor.u32 %v1009, 2147483648
    %v1011 = vmul.f32 %v1010, 1.442695
    %v1012 = vpow.pop %v1011
    %v1013 = vadd.f32 %v1012, 1.0
    %v1014 = vrcp.pop %v1013
    %v1015 = vmul.f32 1.0, %v1014
    %v1016 = vtanh.pop %v1009
    %v1018 = vrot.slane %v919, 6
    %v1020 = vmul.f32 %v1015, %v1018
    %1022 = vrot.lane.b32.xlu0 %v1016, 96
    %v1023 = vpop.permute.xlu0 %1022
    %v1025 = vmul.f32 %v1015, %v1023
    %1027 = vrot.lane.b32.xlu0 %v1025, 16
    %v1028 = vpop.permute.xlu0 %1027
    %v1030 = vadd.f32 %v1020, %v1028
    %v1031 = vtanh.pop %v1030
    %1033 = vrot.lane.b32.xlu0 %v1031, 32
    %v1034 = vpop.permute.xlu0 %1033
    %v1036 = vmul.f32 %v1015, %v1034
    %1038 = vrot.lane.b32.xlu0 %v1036, 80
    %v1039 = vpop.permute.xlu0 %1038
    %1041 = vst.msk [vmem:[#allocation3 + $0x8] sm:$0x30] %vm601, %v1039
    %v1042 = vrot.slane %v1036, 4
    %1043 = vrot.lane.b32.xlu0 %v1042, 80
    %v1044 = vpop.permute.xlu0 %1043
    %v1045 = vsel %vm181, %v1044, 0
    %1047 = vmatprep.subr.mxu0 0.0
    %1048 = vmatpush1.msra.mxu0 0.0
    %1049 = vmatprep.subr.mxu0 0.0
    %1050 = vmatpush1.msra.mxu0 0.0
    %1051 = vmatprep.subr.mxu0 0.0
    %1052 = vmatpush1.msra.mxu0 0.0
    %1053 = vmatprep.subr.mxu0 0.0
    %1054 = vmatpush1.msra.mxu0 0.0
    %1055 = vmatprep.subr.mxu0 0.0
    %1056 = vmatpush1.msra.mxu0 0.0
    %1057 = vmatprep.subr.mxu0 0.0
    %1058 = vmatpush1.msra.mxu0 0.0
    %1059 = vmatprep.subr.mxu0 0.0
    %1060 = vmatpush1.msra.mxu0 0.0
    %1061 = vmatprep.subr.mxu0 0.0
    %1062 = vmatpush1.msra.mxu0 0.0
    %1063 = vmatprep.subr.mxu0 0.0
    %1064 = vmatpush1.msra.mxu0 0.0
    %1065 = vmatprep.subr.mxu0 0.0
    %1066 = vmatpush1.msra.mxu0 0.0
    %1067 = vmatprep.subr.mxu0 0.0
    %1068 = vmatpush1.msra.mxu0 0.0
    %1069 = vmatprep.subr.mxu0 0.0
    %1070 = vmatpush1.msra.mxu0 0.0
    %1071 = vmatprep.subr.mxu0 0.0
    %1072 = vmatpush1.msra.mxu0 0.0
    %1073 = vmatprep.subr.mxu0 0.0
    %1074 = vmatpush1.msra.mxu0 0.0
    %1075 = vmatprep.subr.mxu0 0.0
    %1076 = vmatpush1.msra.mxu0 %v277
    %1077 = vmatprep.subr.mxu0 0.0
    %1078 = vmatpush1.msra.mxu0 %v276
    %1079 = vmatprep.subr.mxu0 0.0
    %1080 = vmatpush2.msra.mxu0 0.0
    %1081 = vmatprep.subr.mxu0 0.0
    %1082 = vmatpush2.msra.mxu0 0.0
    %1083 = vmatprep.subr.mxu0 0.0
    %1084 = vmatpush2.msra.mxu0 0.0
    %1085 = vmatprep.subr.mxu0 0.0
    %1086 = vmatpush2.msra.mxu0 0.0
    %1087 = vmatprep.subr.mxu0 0.0
    %1088 = vmatpush2.msra.mxu0 0.0
    %1089 = vmatprep.subr.mxu0 0.0
    %1090 = vmatpush2.msra.mxu0 0.0
    %1091 = vmatprep.subr.mxu0 0.0
    %1092 = vmatpush2.msra.mxu0 0.0
    %1093 = vmatprep.subr.mxu0 0.0
    %1094 = vmatpush2.msra.mxu0 0.0
    %1095 = vmatprep.subr.mxu0 0.0
    %1096 = vmatpush2.msra.mxu0 0.0
    %1097 = vmatprep.subr.mxu0 0.0
    %1098 = vmatpush2.msra.mxu0 0.0
    %1099 = vmatprep.subr.mxu0 0.0
    %1100 = vmatpush2.msra.mxu0 0.0
    %1101 = vmatprep.subr.mxu0 0.0
    %1102 = vmatpush2.msra.mxu0 0.0
    %1103 = vmatprep.subr.mxu0 0.0
    %1104 = vmatpush2.msra.mxu0 0.0
    %1105 = vmatprep.subr.mxu0 0.0
    %1106 = vmatpush2.msra.mxu0 0.0
    %1107 = vmatprep.subr.mxu0 0.0
    %1108 = vmatpush2.msra.mxu0 0.0
    %1109 = vmatprep.subr.mxu0 0.0
    %1110 = vmatpush2.msra.mxu0 0.0
    %1111 = vmatprep.mubr.f32.mxu0 0.0
    %1112 = vmatmul.mubr.f32.gmra.mxu0 %v1045
    %v1113 = vpop.f32.mrf.mxu0
    %v1114 = vadd.f32 0.0, %v1113
    %v1115 = vpop.f32.mrf.mxu0
    %1116 = vdwg.mxu0
    %v1118 = vrot.slane %v1114, 2
    %v1120 = vadd.f32 %v273, %v1118
    %v1121 = vxor.u32 %v1120, 2147483648
    %v1122 = vmul.f32 %v1121, 1.442695
    %v1123 = vpow.pop %v1122
    %v1124 = vadd.f32 %v1123, 1.0
    %v1125 = vrcp.pop %v1124
    %v1126 = vmul.f32 1.0, %v1125
    %v1127 = vtanh.pop %v1120
    %v1129 = vrot.slane %v1030, 6
    %v1131 = vmul.f32 %v1126, %v1129
    %1133 = vrot.lane.b32.xlu0 %v1127, 96
    %v1134 = vpop.permute.xlu0 %1133
    %v1136 = vmul.f32 %v1126, %v1134
    %1138 = vrot.lane.b32.xlu0 %v1136, 16
    %v1139 = vpop.permute.xlu0 %1138
    %v1141 = vadd.f32 %v1131, %v1139
    %v1142 = vtanh.pop %v1141
    %1144 = vrot.lane.b32.xlu0 %v1142, 32
    %v1145 = vpop.permute.xlu0 %1144
    %v1147 = vmul.f32 %v1126, %v1145
    %1149 = vrot.lane.b32.xlu0 %v1147, 80
    %v1150 = vpop.permute.xlu0 %1149
    %1152 = vst.msk [vmem:[#allocation3 + $0x8] sm:$0xc0] %vm713, %v1150
    %v1153 = vld [vmem:[#allocation3] sm:$0xff]
    %v1154 = vld [vmem:[#allocation3 + $0x8] sm:$0xff]
    %s1155 = scalar_lea.vmem %s2, 16
    %v1156 = vld [vmem:[%s1155] sm:$0xff]
    %v1157 = vld [vmem:[%s1155 + $0x8] sm:$0xff]
    %s1158 = scalar_lea.vmem [#allocation6], 1
    %v1159 = vld [vmem:[%s1158] sm:$0x1]
    %v1161 = vlaneseq
    %v1162 = vshrl.u32 %v1161, 7
    %v1163 = vsub.s32 0, %v1162
    %v1164 = vrot.slane %v1159, %v1163
    %v1167 = vsel %vm181, %v1153, 0
    %v1170 = vsel %vm181, %v1154, 0
    %1172 = vmatprep.subr.mxu0 0.0
    %1173 = vmatpush1.msra.mxu0 0.0
    %1174 = vmatprep.subr.mxu0 0.0
    %1175 = vmatpush1.msra.mxu0 0.0
    %1176 = vmatprep.subr.mxu0 0.0
    %1177 = vmatpush1.msra.mxu0 0.0
    %1178 = vmatprep.subr.mxu0 0.0
    %1179 = vmatpush1.msra.mxu0 0.0
    %1180 = vmatprep.subr.mxu0 0.0
    %1181 = vmatpush1.msra.mxu0 0.0
    %1182 = vmatprep.subr.mxu0 0.0
    %1183 = vmatpush1.msra.mxu0 0.0
    %1184 = vmatprep.subr.mxu0 0.0
    %1185 = vmatpush1.msra.mxu0 0.0
    %1186 = vmatprep.subr.mxu0 0.0
    %1187 = vmatpush1.msra.mxu0 0.0
    %1188 = vmatprep.subr.mxu0 0.0
    %1189 = vmatpush1.msra.mxu0 0.0
    %1190 = vmatprep.subr.mxu0 0.0
    %1191 = vmatpush1.msra.mxu0 0.0
    %1192 = vmatprep.subr.mxu0 0.0
    %1193 = vmatpush1.msra.mxu0 0.0
    %1194 = vmatprep.subr.mxu0 0.0
    %1195 = vmatpush1.msra.mxu0 0.0
    %1196 = vmatprep.subr.mxu0 0.0
    %1197 = vmatpush1.msra.mxu0 0.0
    %1198 = vmatprep.subr.mxu0 0.0
    %1199 = vmatpush1.msra.mxu0 0.0
    %1200 = vmatprep.subr.mxu0 0.0
    %1201 = vmatpush1.msra.mxu0 %v1157
    %1202 = vmatprep.subr.mxu0 0.0
    %1203 = vmatpush1.msra.mxu0 %v1156
    %1204 = vmatprep.subr.mxu0 0.0
    %1205 = vmatpush2.msra.mxu0 0.0
    %1206 = vmatprep.subr.mxu0 0.0
    %1207 = vmatpush2.msra.mxu0 0.0
    %1208 = vmatprep.subr.mxu0 0.0
    %1209 = vmatpush2.msra.mxu0 0.0
    %1210 = vmatprep.subr.mxu0 0.0
    %1211 = vmatpush2.msra.mxu0 0.0
    %1212 = vmatprep.subr.mxu0 0.0
    %1213 = vmatpush2.msra.mxu0 0.0
    %1214 = vmatprep.subr.mxu0 0.0
    %1215 = vmatpush2.msra.mxu0 0.0
    %1216 = vmatprep.subr.mxu0 0.0
    %1217 = vmatpush2.msra.mxu0 0.0
    %1218 = vmatprep.subr.mxu0 0.0
    %1219 = vmatpush2.msra.mxu0 0.0
    %1220 = vmatprep.subr.mxu0 0.0
    %1221 = vmatpush2.msra.mxu0 0.0
    %1222 = vmatprep.subr.mxu0 0.0
    %1223 = vmatpush2.msra.mxu0 0.0
    %1224 = vmatprep.subr.mxu0 0.0
    %1225 = vmatpush2.msra.mxu0 0.0
    %1226 = vmatprep.subr.mxu0 0.0
    %1227 = vmatpush2.msra.mxu0 0.0
    %1228 = vmatprep.subr.mxu0 0.0
    %1229 = vmatpush2.msra.mxu0 0.0
    %1230 = vmatprep.subr.mxu0 0.0
    %1231 = vmatpush2.msra.mxu0 0.0
    %1232 = vmatprep.subr.mxu0 0.0
    %1233 = vmatpush2.msra.mxu0 0.0
    %1234 = vmatprep.subr.mxu0 0.0
    %1235 = vmatpush2.msra.mxu0 0.0
    %1236 = vmatprep.mubr.f32.mxu0 0.0
    %1237 = vmatmul.mubr.f32.gmra.mxu0 %v1167
    %v1238 = vpop.f32.mrf.mxu0
    %v1239 = vadd.f32 %v1164, %v1238
    %v1240 = vpop.f32.mrf.mxu0
    %1241 = vmatprep.mubr.f32.mxu0 0.0
    %1242 = vmatmul.mubr.f32.gmra.mxu0 %v1170
    %v1243 = vpop.f32.mrf.mxu0
    %v1244 = vadd.f32 %v1164, %v1243
    %v1245 = vpop.f32.mrf.mxu0
    %1246 = vdwg.mxu0
    %s1247 = scalar_lea.vmem %s3, 16
    %v1248 = vld [vmem:[%s1247] sm:$0xff]
    %v1249 = vld [vmem:[%s1247 + $0x8] sm:$0xff]
    %1250 = vmatprep.subr.mxu0 0.0
    %1251 = vmatpush1.msra.mxu0 0.0
    %1252 = vmatprep.subr.mxu0 0.0
    %1253 = vmatpush1.msra.mxu0 0.0
    %1254 = vmatprep.subr.mxu0 0.0
    %1255 = vmatpush1.msra.mxu0 0.0
    %1256 = vmatprep.subr.mxu0 0.0
    %1257 = vmatpush1.msra.mxu0 0.0
    %1258 = vmatprep.subr.mxu0 0.0
    %1259 = vmatpush1.msra.mxu0 0.0
    %1260 = vmatprep.subr.mxu0 0.0
    %1261 = vmatpush1.msra.mxu0 0.0
    %1262 = vmatprep.subr.mxu0 0.0
    %1263 = vmatpush1.msra.mxu0 0.0
    %1264 = vmatprep.subr.mxu0 0.0
    %1265 = vmatpush1.msra.mxu0 0.0
    %1266 = vmatprep.subr.mxu0 0.0
    %1267 = vmatpush1.msra.mxu0 0.0
    %1268 = vmatprep.subr.mxu0 0.0
    %1269 = vmatpush1.msra.mxu0 0.0
    %1270 = vmatprep.subr.mxu0 0.0
    %1271 = vmatpush1.msra.mxu0 0.0
    %1272 = vmatprep.subr.mxu0 0.0
    %1273 = vmatpush1.msra.mxu0 0.0
    %1274 = vmatprep.subr.mxu0 0.0
    %1275 = vmatpush1.msra.mxu0 0.0
    %1276 = vmatprep.subr.mxu0 0.0
    %1277 = vmatpush1.msra.mxu0 0.0
    %1278 = vmatprep.subr.mxu0 0.0
    %1279 = vmatpush1.msra.mxu0 %v1249
    %1280 = vmatprep.subr.mxu0 0.0
    %1281 = vmatpush1.msra.mxu0 %v1248
    %1282 = vmatprep.subr.mxu0 0.0
    %1283 = vmatpush2.msra.mxu0 0.0
    %1284 = vmatprep.subr.mxu0 0.0
    %1285 = vmatpush2.msra.mxu0 0.0
    %1286 = vmatprep.subr.mxu0 0.0
    %1287 = vmatpush2.msra.mxu0 0.0
    %1288 = vmatprep.subr.mxu0 0.0
    %1289 = vmatpush2.msra.mxu0 0.0
    %1290 = vmatprep.subr.mxu0 0.0
    %1291 = vmatpush2.msra.mxu0 0.0
    %1292 = vmatprep.subr.mxu0 0.0
    %1293 = vmatpush2.msra.mxu0 0.0
    %1294 = vmatprep.subr.mxu0 0.0
    %1295 = vmatpush2.msra.mxu0 0.0
    %1296 = vmatprep.subr.mxu0 0.0
    %1297 = vmatpush2.msra.mxu0 0.0
    %1298 = vmatprep.subr.mxu0 0.0
    %1299 = vmatpush2.msra.mxu0 0.0
    %1300 = vmatprep.subr.mxu0 0.0
    %1301 = vmatpush2.msra.mxu0 0.0
    %1302 = vmatprep.subr.mxu0 0.0
    %1303 = vmatpush2.msra.mxu0 0.0
    %1304 = vmatprep.subr.mxu0 0.0
    %1305 = vmatpush2.msra.mxu0 0.0
    %1306 = vmatprep.subr.mxu0 0.0
    %1307 = vmatpush2.msra.mxu0 0.0
    %1308 = vmatprep.subr.mxu0 0.0
    %1309 = vmatpush2.msra.mxu0 0.0
    %1310 = vmatprep.subr.mxu0 0.0
    %1311 = vmatpush2.msra.mxu0 0.0
    %1312 = vmatprep.subr.mxu0 0.0
    %1313 = vmatpush2.msra.mxu0 0.0
    %1314 = vmatprep.mubr.f32.mxu0 0.0
    %1315 = vmatmul.mubr.f32.gmra.mxu0 %v279
    %v1316 = vpop.f32.mrf.mxu0
    %v1317 = vadd.f32 0.0, %v1316
    %v1318 = vpop.f32.mrf.mxu0
    %1319 = vdwg.mxu0
    %v1320 = vadd.f32 %v1239, %v1317
    %v1321 = vxor.u32 %v1320, 2147483648
    %v1322 = vmul.f32 %v1321, 1.442695
    %v1323 = vpow.pop %v1322
    %v1324 = vadd.f32 %v1323, 1.0
    %v1325 = vrcp.pop %v1324
    %v1326 = vmul.f32 1.0, %v1325
    %v1327 = vtanh.pop %v1320
    %v1328 = vmul.f32 %v1326, 0.0
    %1330 = vrot.lane.b32.xlu0 %v1327, 96
    %v1331 = vpop.permute.xlu0 %1330
    %v1333 = vmul.f32 %v1326, %v1331
    %1335 = vrot.lane.b32.xlu0 %v1333, 16
    %v1336 = vpop.permute.xlu0 %1335
    %v1338 = vadd.f32 %v1328, %v1336
    %v1339 = vtanh.pop %v1338
    %1341 = vrot.lane.b32.xlu0 %v1339, 32
    %v1342 = vpop.permute.xlu0 %1341
    %v1344 = vmul.f32 %v1326, %v1342
    %1346 = vrot.lane.b32.xlu0 %v1344, 80
    %v1347 = vpop.permute.xlu0 %1346
    %1349 = vst.msk [vmem:[#allocation2] sm:$0x3] %vm380, %v1347
    %v1350 = vsel %vm181, %v1347, 0
    %1352 = vmatprep.subr.mxu0 0.0
    %1353 = vmatpush1.msra.mxu0 0.0
    %1354 = vmatprep.subr.mxu0 0.0
    %1355 = vmatpush1.msra.mxu0 0.0
    %1356 = vmatprep.subr.mxu0 0.0
    %1357 = vmatpush1.msra.mxu0 0.0
    %1358 = vmatprep.subr.mxu0 0.0
    %1359 = vmatpush1.msra.mxu0 0.0
    %1360 = vmatprep.subr.mxu0 0.0
    %1361 = vmatpush1.msra.mxu0 0.0
    %1362 = vmatprep.subr.mxu0 0.0
    %1363 = vmatpush1.msra.mxu0 0.0
    %1364 = vmatprep.subr.mxu0 0.0
    %1365 = vmatpush1.msra.mxu0 0.0
    %1366 = vmatprep.subr.mxu0 0.0
    %1367 = vmatpush1.msra.mxu0 0.0
    %1368 = vmatprep.subr.mxu0 0.0
    %1369 = vmatpush1.msra.mxu0 0.0
    %1370 = vmatprep.subr.mxu0 0.0
    %1371 = vmatpush1.msra.mxu0 0.0
    %1372 = vmatprep.subr.mxu0 0.0
    %1373 = vmatpush1.msra.mxu0 0.0
    %1374 = vmatprep.subr.mxu0 0.0
    %1375 = vmatpush1.msra.mxu0 0.0
    %1376 = vmatprep.subr.mxu0 0.0
    %1377 = vmatpush1.msra.mxu0 0.0
    %1378 = vmatprep.subr.mxu0 0.0
    %1379 = vmatpush1.msra.mxu0 0.0
    %1380 = vmatprep.subr.mxu0 0.0
    %1381 = vmatpush1.msra.mxu0 %v1249
    %1382 = vmatprep.subr.mxu0 0.0
    %1383 = vmatpush1.msra.mxu0 %v1248
    %1384 = vmatprep.subr.mxu0 0.0
    %1385 = vmatpush2.msra.mxu0 0.0
    %1386 = vmatprep.subr.mxu0 0.0
    %1387 = vmatpush2.msra.mxu0 0.0
    %1388 = vmatprep.subr.mxu0 0.0
    %1389 = vmatpush2.msra.mxu0 0.0
    %1390 = vmatprep.subr.mxu0 0.0
    %1391 = vmatpush2.msra.mxu0 0.0
    %1392 = vmatprep.subr.mxu0 0.0
    %1393 = vmatpush2.msra.mxu0 0.0
    %1394 = vmatprep.subr.mxu0 0.0
    %1395 = vmatpush2.msra.mxu0 0.0
    %1396 = vmatprep.subr.mxu0 0.0
    %1397 = vmatpush2.msra.mxu0 0.0
    %1398 = vmatprep.subr.mxu0 0.0
    %1399 = vmatpush2.msra.mxu0 0.0
    %1400 = vmatprep.subr.mxu0 0.0
    %1401 = vmatpush2.msra.mxu0 0.0
    %1402 = vmatprep.subr.mxu0 0.0
    %1403 = vmatpush2.msra.mxu0 0.0
    %1404 = vmatprep.subr.mxu0 0.0
    %1405 = vmatpush2.msra.mxu0 0.0
    %1406 = vmatprep.subr.mxu0 0.0
    %1407 = vmatpush2.msra.mxu0 0.0
    %1408 = vmatprep.subr.mxu0 0.0
    %1409 = vmatpush2.msra.mxu0 0.0
    %1410 = vmatprep.subr.mxu0 0.0
    %1411 = vmatpush2.msra.mxu0 0.0
    %1412 = vmatprep.subr.mxu0 0.0
    %1413 = vmatpush2.msra.mxu0 0.0
    %1414 = vmatprep.subr.mxu0 0.0
    %1415 = vmatpush2.msra.mxu0 0.0
    %1416 = vmatprep.mubr.f32.mxu0 0.0
    %1417 = vmatmul.mubr.f32.gmra.mxu0 %v1350
    %v1418 = vpop.f32.mrf.mxu0
    %v1419 = vadd.f32 0.0, %v1418
    %v1420 = vpop.f32.mrf.mxu0
    %1421 = vdwg.mxu0
    %v1423 = vrot.slane %v1419, 6
    %v1425 = vadd.f32 %v1239, %v1423
    %v1426 = vxor.u32 %v1425, 2147483648
    %v1427 = vmul.f32 %v1426, 1.442695
    %v1428 = vpow.pop %v1427
    %v1429 = vadd.f32 %v1428, 1.0
    %v1430 = vrcp.pop %v1429
    %v1431 = vmul.f32 1.0, %v1430
    %v1432 = vtanh.pop %v1425
    %v1434 = vrot.slane %v1338, 6
    %v1436 = vmul.f32 %v1431, %v1434
    %1438 = vrot.lane.b32.xlu0 %v1432, 96
    %v1439 = vpop.permute.xlu0 %1438
    %v1441 = vmul.f32 %v1431, %v1439
    %1443 = vrot.lane.b32.xlu0 %v1441, 16
    %v1444 = vpop.permute.xlu0 %1443
    %v1446 = vadd.f32 %v1436, %v1444
    %v1447 = vtanh.pop %v1446
    %1449 = vrot.lane.b32.xlu0 %v1447, 32
    %v1450 = vpop.permute.xlu0 %1449
    %v1452 = vmul.f32 %v1431, %v1450
    %1454 = vrot.lane.b32.xlu0 %v1452, 80
    %v1455 = vpop.permute.xlu0 %1454
    %1457 = vst.msk [vmem:[#allocation2] sm:$0xc] %vm489, %v1455
    %v1458 = vrot.slane %v1452, 2
    %1459 = vrot.lane.b32.xlu0 %v1458, 80
    %v1460 = vpop.permute.xlu0 %1459
    %v1461 = vsel %vm181, %v1460, 0
    %1463 = vmatprep.subr.mxu0 0.0
    %1464 = vmatpush1.msra.mxu0 0.0
    %1465 = vmatprep.subr.mxu0 0.0
    %1466 = vmatpush1.msra.mxu0 0.0
    %1467 = vmatprep.subr.mxu0 0.0
    %1468 = vmatpush1.msra.mxu0 0.0
    %1469 = vmatprep.subr.mxu0 0.0
    %1470 = vmatpush1.msra.mxu0 0.0
    %1471 = vmatprep.subr.mxu0 0.0
    %1472 = vmatpush1.msra.mxu0 0.0
    %1473 = vmatprep.subr.mxu0 0.0
    %1474 = vmatpush1.msra.mxu0 0.0
    %1475 = vmatprep.subr.mxu0 0.0
    %1476 = vmatpush1.msra.mxu0 0.0
    %1477 = vmatprep.subr.mxu0 0.0
    %1478 = vmatpush1.msra.mxu0 0.0
    %1479 = vmatprep.subr.mxu0 0.0
    %1480 = vmatpush1.msra.mxu0 0.0
    %1481 = vmatprep.subr.mxu0 0.0
    %1482 = vmatpush1.msra.mxu0 0.0
    %1483 = vmatprep.subr.mxu0 0.0
    %1484 = vmatpush1.msra.mxu0 0.0
    %1485 = vmatprep.subr.mxu0 0.0
    %1486 = vmatpush1.msra.mxu0 0.0
    %1487 = vmatprep.subr.mxu0 0.0
    %1488 = vmatpush1.msra.mxu0 0.0
    %1489 = vmatprep.subr.mxu0 0.0
    %1490 = vmatpush1.msra.mxu0 0.0
    %1491 = vmatprep.subr.mxu0 0.0
    %1492 = vmatpush1.msra.mxu0 %v1249
    %1493 = vmatprep.subr.mxu0 0.0
    %1494 = vmatpush1.msra.mxu0 %v1248
    %1495 = vmatprep.subr.mxu0 0.0
    %1496 = vmatpush2.msra.mxu0 0.0
    %1497 = vmatprep.subr.mxu0 0.0
    %1498 = vmatpush2.msra.mxu0 0.0
    %1499 = vmatprep.subr.mxu0 0.0
    %1500 = vmatpush2.msra.mxu0 0.0
    %1501 = vmatprep.subr.mxu0 0.0
    %1502 = vmatpush2.msra.mxu0 0.0
    %1503 = vmatprep.subr.mxu0 0.0
    %1504 = vmatpush2.msra.mxu0 0.0
    %1505 = vmatprep.subr.mxu0 0.0
    %1506 = vmatpush2.msra.mxu0 0.0
    %1507 = vmatprep.subr.mxu0 0.0
    %1508 = vmatpush2.msra.mxu0 0.0
    %1509 = vmatprep.subr.mxu0 0.0
    %1510 = vmatpush2.msra.mxu0 0.0
    %1511 = vmatprep.subr.mxu0 0.0
    %1512 = vmatpush2.msra.mxu0 0.0
    %1513 = vmatprep.subr.mxu0 0.0
    %1514 = vmatpush2.msra.mxu0 0.0
    %1515 = vmatprep.subr.mxu0 0.0
    %1516 = vmatpush2.msra.mxu0 0.0
    %1517 = vmatprep.subr.mxu0 0.0
    %1518 = vmatpush2.msra.mxu0 0.0
    %1519 = vmatprep.subr.mxu0 0.0
    %1520 = vmatpush2.msra.mxu0 0.0
    %1521 = vmatprep.subr.mxu0 0.0
    %1522 = vmatpush2.msra.mxu0 0.0
    %1523 = vmatprep.subr.mxu0 0.0
    %1524 = vmatpush2.msra.mxu0 0.0
    %1525 = vmatprep.subr.mxu0 0.0
    %1526 = vmatpush2.msra.mxu0 0.0
    %1527 = vmatprep.mubr.f32.mxu0 0.0
    %1528 = vmatmul.mubr.f32.gmra.mxu0 %v1461
    %v1529 = vpop.f32.mrf.mxu0
    %v1530 = vadd.f32 0.0, %v1529
    %v1531 = vpop.f32.mrf.mxu0
    %1532 = vdwg.mxu0
    %v1534 = vrot.slane %v1530, 4
    %v1536 = vadd.f32 %v1239, %v1534
    %v1537 = vxor.u32 %v1536, 2147483648
    %v1538 = vmul.f32 %v1537, 1.442695
    %v1539 = vpow.pop %v1538
    %v1540 = vadd.f32 %v1539, 1.0
    %v1541 = vrcp.pop %v1540
    %v1542 = vmul.f32 1.0, %v1541
    %v1543 = vtanh.pop %v1536
    %v1545 = vrot.slane %v1446, 6
    %v1547 = vmul.f32 %v1542, %v1545
    %1549 = vrot.lane.b32.xlu0 %v1543, 96
    %v1550 = vpop.permute.xlu0 %1549
    %v1552 = vmul.f32 %v1542, %v1550
    %1554 = vrot.lane.b32.xlu0 %v1552, 16
    %v1555 = vpop.permute.xlu0 %1554
    %v1557 = vadd.f32 %v1547, %v1555
    %v1558 = vtanh.pop %v1557
    %1560 = vrot.lane.b32.xlu0 %v1558, 32
    %v1561 = vpop.permute.xlu0 %1560
    %v1563 = vmul.f32 %v1542, %v1561
    %1565 = vrot.lane.b32.xlu0 %v1563, 80
    %v1566 = vpop.permute.xlu0 %1565
    %1568 = vst.msk [vmem:[#allocation2] sm:$0x30] %vm601, %v1566
    %v1569 = vrot.slane %v1563, 4
    %1570 = vrot.lane.b32.xlu0 %v1569, 80
    %v1571 = vpop.permute.xlu0 %1570
    %v1572 = vsel %vm181, %v1571, 0
    %1574 = vmatprep.subr.mxu0 0.0
    %1575 = vmatpush1.msra.mxu0 0.0
    %1576 = vmatprep.subr.mxu0 0.0
    %1577 = vmatpush1.msra.mxu0 0.0
    %1578 = vmatprep.subr.mxu0 0.0
    %1579 = vmatpush1.msra.mxu0 0.0
    %1580 = vmatprep.subr.mxu0 0.0
    %1581 = vmatpush1.msra.mxu0 0.0
    %1582 = vmatprep.subr.mxu0 0.0
    %1583 = vmatpush1.msra.mxu0 0.0
    %1584 = vmatprep.subr.mxu0 0.0
    %1585 = vmatpush1.msra.mxu0 0.0
    %1586 = vmatprep.subr.mxu0 0.0
    %1587 = vmatpush1.msra.mxu0 0.0
    %1588 = vmatprep.subr.mxu0 0.0
    %1589 = vmatpush1.msra.mxu0 0.0
    %1590 = vmatprep.subr.mxu0 0.0
    %1591 = vmatpush1.msra.mxu0 0.0
    %1592 = vmatprep.subr.mxu0 0.0
    %1593 = vmatpush1.msra.mxu0 0.0
    %1594 = vmatprep.subr.mxu0 0.0
    %1595 = vmatpush1.msra.mxu0 0.0
    %1596 = vmatprep.subr.mxu0 0.0
    %1597 = vmatpush1.msra.mxu0 0.0
    %1598 = vmatprep.subr.mxu0 0.0
    %1599 = vmatpush1.msra.mxu0 0.0
    %1600 = vmatprep.subr.mxu0 0.0
    %1601 = vmatpush1.msra.mxu0 0.0
    %1602 = vmatprep.subr.mxu0 0.0
    %1603 = vmatpush1.msra.mxu0 %v1249
    %1604 = vmatprep.subr.mxu0 0.0
    %1605 = vmatpush1.msra.mxu0 %v1248
    %1606 = vmatprep.subr.mxu0 0.0
    %1607 = vmatpush2.msra.mxu0 0.0
    %1608 = vmatprep.subr.mxu0 0.0
    %1609 = vmatpush2.msra.mxu0 0.0
    %1610 = vmatprep.subr.mxu0 0.0
    %1611 = vmatpush2.msra.mxu0 0.0
    %1612 = vmatprep.subr.mxu0 0.0
    %1613 = vmatpush2.msra.mxu0 0.0
    %1614 = vmatprep.subr.mxu0 0.0
    %1615 = vmatpush2.msra.mxu0 0.0
    %1616 = vmatprep.subr.mxu0 0.0
    %1617 = vmatpush2.msra.mxu0 0.0
    %1618 = vmatprep.subr.mxu0 0.0
    %1619 = vmatpush2.msra.mxu0 0.0
    %1620 = vmatprep.subr.mxu0 0.0
    %1621 = vmatpush2.msra.mxu0 0.0
    %1622 = vmatprep.subr.mxu0 0.0
    %1623 = vmatpush2.msra.mxu0 0.0
    %1624 = vmatprep.subr.mxu0 0.0
    %1625 = vmatpush2.msra.mxu0 0.0
    %1626 = vmatprep.subr.mxu0 0.0
    %1627 = vmatpush2.msra.mxu0 0.0
    %1628 = vmatprep.subr.mxu0 0.0
    %1629 = vmatpush2.msra.mxu0 0.0
    %1630 = vmatprep.subr.mxu0 0.0
    %1631 = vmatpush2.msra.mxu0 0.0
    %1632 = vmatprep.subr.mxu0 0.0
    %1633 = vmatpush2.msra.mxu0 0.0
    %1634 = vmatprep.subr.mxu0 0.0
    %1635 = vmatpush2.msra.mxu0 0.0
    %1636 = vmatprep.subr.mxu0 0.0
    %1637 = vmatpush2.msra.mxu0 0.0
    %1638 = vmatprep.mubr.f32.mxu0 0.0
    %1639 = vmatmul.mubr.f32.gmra.mxu0 %v1572
    %v1640 = vpop.f32.mrf.mxu0
    %v1641 = vadd.f32 0.0, %v1640
    %v1642 = vpop.f32.mrf.mxu0
    %1643 = vdwg.mxu0
    %v1645 = vrot.slane %v1641, 2
    %v1647 = vadd.f32 %v1239, %v1645
    %v1648 = vxor.u32 %v1647, 2147483648
    %v1649 = vmul.f32 %v1648, 1.442695
    %v1650 = vpow.pop %v1649
    %v1651 = vadd.f32 %v1650, 1.0
    %v1652 = vrcp.pop %v1651
    %v1653 = vmul.f32 1.0, %v1652
    %v1654 = vtanh.pop %v1647
    %v1656 = vrot.slane %v1557, 6
    %v1658 = vmul.f32 %v1653, %v1656
    %1660 = vrot.lane.b32.xlu0 %v1654, 96
    %v1661 = vpop.permute.xlu0 %1660
    %v1663 = vmul.f32 %v1653, %v1661
    %1665 = vrot.lane.b32.xlu0 %v1663, 16
    %v1666 = vpop.permute.xlu0 %1665
    %v1668 = vadd.f32 %v1658, %v1666
    %v1669 = vtanh.pop %v1668
    %1671 = vrot.lane.b32.xlu0 %v1669, 32
    %v1672 = vpop.permute.xlu0 %1671
    %v1674 = vmul.f32 %v1653, %v1672
    %1676 = vrot.lane.b32.xlu0 %v1674, 80
    %v1677 = vpop.permute.xlu0 %1676
    %1679 = vst.msk [vmem:[#allocation2] sm:$0xc0] %vm713, %v1677
    %v1680 = vrot.slane %v1674, 6
    %1681 = vrot.lane.b32.xlu0 %v1680, 80
    %v1682 = vpop.permute.xlu0 %1681
    %v1683 = vsel %vm181, %v1682, 0
    %1685 = vmatprep.subr.mxu0 0.0
    %1686 = vmatpush1.msra.mxu0 0.0
    %1687 = vmatprep.subr.mxu0 0.0
    %1688 = vmatpush1.msra.mxu0 0.0
    %1689 = vmatprep.subr.mxu0 0.0
    %1690 = vmatpush1.msra.mxu0 0.0
    %1691 = vmatprep.subr.mxu0 0.0
    %1692 = vmatpush1.msra.mxu0 0.0
    %1693 = vmatprep.subr.mxu0 0.0
    %1694 = vmatpush1.msra.mxu0 0.0
    %1695 = vmatprep.subr.mxu0 0.0
    %1696 = vmatpush1.msra.mxu0 0.0
    %1697 = vmatprep.subr.mxu0 0.0
    %1698 = vmatpush1.msra.mxu0 0.0
    %1699 = vmatprep.subr.mxu0 0.0
    %1700 = vmatpush1.msra.mxu0 0.0
    %1701 = vmatprep.subr.mxu0 0.0
    %1702 = vmatpush1.msra.mxu0 0.0
    %1703 = vmatprep.subr.mxu0 0.0
    %1704 = vmatpush1.msra.mxu0 0.0
    %1705 = vmatprep.subr.mxu0 0.0
    %1706 = vmatpush1.msra.mxu0 0.0
    %1707 = vmatprep.subr.mxu0 0.0
    %1708 = vmatpush1.msra.mxu0 0.0
    %1709 = vmatprep.subr.mxu0 0.0
    %1710 = vmatpush1.msra.mxu0 0.0
    %1711 = vmatprep.subr.mxu0 0.0
    %1712 = vmatpush1.msra.mxu0 0.0
    %1713 = vmatprep.subr.mxu0 0.0
    %1714 = vmatpush1.msra.mxu0 %v1249
    %1715 = vmatprep.subr.mxu0 0.0
    %1716 = vmatpush1.msra.mxu0 %v1248
    %1717 = vmatprep.subr.mxu0 0.0
    %1718 = vmatpush2.msra.mxu0 0.0
    %1719 = vmatprep.subr.mxu0 0.0
    %1720 = vmatpush2.msra.mxu0 0.0
    %1721 = vmatprep.subr.mxu0 0.0
    %1722 = vmatpush2.msra.mxu0 0.0
    %1723 = vmatprep.subr.mxu0 0.0
    %1724 = vmatpush2.msra.mxu0 0.0
    %1725 = vmatprep.subr.mxu0 0.0
    %1726 = vmatpush2.msra.mxu0 0.0
    %1727 = vmatprep.subr.mxu0 0.0
    %1728 = vmatpush2.msra.mxu0 0.0
    %1729 = vmatprep.subr.mxu0 0.0
    %1730 = vmatpush2.msra.mxu0 0.0
    %1731 = vmatprep.subr.mxu0 0.0
    %1732 = vmatpush2.msra.mxu0 0.0
    %1733 = vmatprep.subr.mxu0 0.0
    %1734 = vmatpush2.msra.mxu0 0.0
    %1735 = vmatprep.subr.mxu0 0.0
    %1736 = vmatpush2.msra.mxu0 0.0
    %1737 = vmatprep.subr.mxu0 0.0
    %1738 = vmatpush2.msra.mxu0 0.0
    %1739 = vmatprep.subr.mxu0 0.0
    %1740 = vmatpush2.msra.mxu0 0.0
    %1741 = vmatprep.subr.mxu0 0.0
    %1742 = vmatpush2.msra.mxu0 0.0
    %1743 = vmatprep.subr.mxu0 0.0
    %1744 = vmatpush2.msra.mxu0 0.0
    %1745 = vmatprep.subr.mxu0 0.0
    %1746 = vmatpush2.msra.mxu0 0.0
    %1747 = vmatprep.subr.mxu0 0.0
    %1748 = vmatpush2.msra.mxu0 0.0
    %1749 = vmatprep.mubr.f32.mxu0 0.0
    %1750 = vmatmul.mubr.f32.gmra.mxu0 %v1683
    %v1751 = vpop.f32.mrf.mxu0
    %v1752 = vadd.f32 0.0, %v1751
    %v1753 = vpop.f32.mrf.mxu0
    %1754 = vdwg.mxu0
    %v1755 = vadd.f32 %v1244, %v1752
    %v1756 = vxor.u32 %v1755, 2147483648
    %v1757 = vmul.f32 %v1756, 1.442695
    %v1758 = vpow.pop %v1757
    %v1759 = vadd.f32 %v1758, 1.0
    %v1760 = vrcp.pop %v1759
    %v1761 = vmul.f32 1.0, %v1760
    %v1762 = vtanh.pop %v1755
    %v1764 = vrot.slane %v1668, 6
    %v1766 = vmul.f32 %v1761, %v1764
    %1768 = vrot.lane.b32.xlu0 %v1762, 96
    %v1769 = vpop.permute.xlu0 %1768
    %v1771 = vmul.f32 %v1761, %v1769
    %1773 = vrot.lane.b32.xlu0 %v1771, 16
    %v1774 = vpop.permute.xlu0 %1773
    %v1776 = vadd.f32 %v1766, %v1774
    %v1777 = vtanh.pop %v1776
    %1779 = vrot.lane.b32.xlu0 %v1777, 32
    %v1780 = vpop.permute.xlu0 %1779
    %v1782 = vmul.f32 %v1761, %v1780
    %1784 = vrot.lane.b32.xlu0 %v1782, 80
    %v1785 = vpop.permute.xlu0 %1784
    %1787 = vst.msk [vmem:[#allocation2 + $0x8] sm:$0x3] %vm380, %v1785
    %v1788 = vsel %vm181, %v1785, 0
    %1790 = vmatprep.subr.mxu0 0.0
    %1791 = vmatpush1.msra.mxu0 0.0
    %1792 = vmatprep.subr.mxu0 0.0
    %1793 = vmatpush1.msra.mxu0 0.0
    %1794 = vmatprep.subr.mxu0 0.0
    %1795 = vmatpush1.msra.mxu0 0.0
    %1796 = vmatprep.subr.mxu0 0.0
    %1797 = vmatpush1.msra.mxu0 0.0
    %1798 = vmatprep.subr.mxu0 0.0
    %1799 = vmatpush1.msra.mxu0 0.0
    %1800 = vmatprep.subr.mxu0 0.0
    %1801 = vmatpush1.msra.mxu0 0.0
    %1802 = vmatprep.subr.mxu0 0.0
    %1803 = vmatpush1.msra.mxu0 0.0
    %1804 = vmatprep.subr.mxu0 0.0
    %1805 = vmatpush1.msra.mxu0 0.0
    %1806 = vmatprep.subr.mxu0 0.0
    %1807 = vmatpush1.msra.mxu0 0.0
    %1808 = vmatprep.subr.mxu0 0.0
    %1809 = vmatpush1.msra.mxu0 0.0
    %1810 = vmatprep.subr.mxu0 0.0
    %1811 = vmatpush1.msra.mxu0 0.0
    %1812 = vmatprep.subr.mxu0 0.0
    %1813 = vmatpush1.msra.mxu0 0.0
    %1814 = vmatprep.subr.mxu0 0.0
    %1815 = vmatpush1.msra.mxu0 0.0
    %1816 = vmatprep.subr.mxu0 0.0
    %1817 = vmatpush1.msra.mxu0 0.0
    %1818 = vmatprep.subr.mxu0 0.0
    %1819 = vmatpush1.msra.mxu0 %v1249
    %1820 = vmatprep.subr.mxu0 0.0
    %1821 = vmatpush1.msra.mxu0 %v1248
    %1822 = vmatprep.subr.mxu0 0.0
    %1823 = vmatpush2.msra.mxu0 0.0
    %1824 = vmatprep.subr.mxu0 0.0
    %1825 = vmatpush2.msra.mxu0 0.0
    %1826 = vmatprep.subr.mxu0 0.0
    %1827 = vmatpush2.msra.mxu0 0.0
    %1828 = vmatprep.subr.mxu0 0.0
    %1829 = vmatpush2.msra.mxu0 0.0
    %1830 = vmatprep.subr.mxu0 0.0
    %1831 = vmatpush2.msra.mxu0 0.0
    %1832 = vmatprep.subr.mxu0 0.0
    %1833 = vmatpush2.msra.mxu0 0.0
    %1834 = vmatprep.subr.mxu0 0.0
    %1835 = vmatpush2.msra.mxu0 0.0
    %1836 = vmatprep.subr.mxu0 0.0
    %1837 = vmatpush2.msra.mxu0 0.0
    %1838 = vmatprep.subr.mxu0 0.0
    %1839 = vmatpush2.msra.mxu0 0.0
    %1840 = vmatprep.subr.mxu0 0.0
    %1841 = vmatpush2.msra.mxu0 0.0
    %1842 = vmatprep.subr.mxu0 0.0
    %1843 = vmatpush2.msra.mxu0 0.0
    %1844 = vmatprep.subr.mxu0 0.0
    %1845 = vmatpush2.msra.mxu0 0.0
    %1846 = vmatprep.subr.mxu0 0.0
    %1847 = vmatpush2.msra.mxu0 0.0
    %1848 = vmatprep.subr.mxu0 0.0
    %1849 = vmatpush2.msra.mxu0 0.0
    %1850 = vmatprep.subr.mxu0 0.0
    %1851 = vmatpush2.msra.mxu0 0.0
    %1852 = vmatprep.subr.mxu0 0.0
    %1853 = vmatpush2.msra.mxu0 0.0
    %1854 = vmatprep.mubr.f32.mxu0 0.0
    %1855 = vmatmul.mubr.f32.gmra.mxu0 %v1788
    %v1856 = vpop.f32.mrf.mxu0
    %v1857 = vadd.f32 0.0, %v1856
    %v1858 = vpop.f32.mrf.mxu0
    %1859 = vdwg.mxu0
    %v1861 = vrot.slane %v1857, 6
    %v1863 = vadd.f32 %v1244, %v1861
    %v1864 = vxor.u32 %v1863, 2147483648
    %v1865 = vmul.f32 %v1864, 1.442695
    %v1866 = vpow.pop %v1865
    %v1867 = vadd.f32 %v1866, 1.0
    %v1868 = vrcp.pop %v1867
    %v1869 = vmul.f32 1.0, %v1868
    %v1870 = vtanh.pop %v1863
    %v1872 = vrot.slane %v1776, 6
    %v1874 = vmul.f32 %v1869, %v1872
    %1876 = vrot.lane.b32.xlu0 %v1870, 96
    %v1877 = vpop.permute.xlu0 %1876
    %v1879 = vmul.f32 %v1869, %v1877
    %1881 = vrot.lane.b32.xlu0 %v1879, 16
    %v1882 = vpop.permute.xlu0 %1881
    %v1884 = vadd.f32 %v1874, %v1882
    %v1885 = vtanh.pop %v1884
    %1887 = vrot.lane.b32.xlu0 %v1885, 32
    %v1888 = vpop.permute.xlu0 %1887
    %v1890 = vmul.f32 %v1869, %v1888
    %1892 = vrot.lane.b32.xlu0 %v1890, 80
    %v1893 = vpop.permute.xlu0 %1892
    %1895 = vst.msk [vmem:[#allocation2 + $0x8] sm:$0xc] %vm489, %v1893
    %v1896 = vrot.slane %v1890, 2
    %1897 = vrot.lane.b32.xlu0 %v1896, 80
    %v1898 = vpop.permute.xlu0 %1897
    %v1899 = vsel %vm181, %v1898, 0
    %1901 = vmatprep.subr.mxu0 0.0
    %1902 = vmatpush1.msra.mxu0 0.0
    %1903 = vmatprep.subr.mxu0 0.0
    %1904 = vmatpush1.msra.mxu0 0.0
    %1905 = vmatprep.subr.mxu0 0.0
    %1906 = vmatpush1.msra.mxu0 0.0
    %1907 = vmatprep.subr.mxu0 0.0
    %1908 = vmatpush1.msra.mxu0 0.0
    %1909 = vmatprep.subr.mxu0 0.0
    %1910 = vmatpush1.msra.mxu0 0.0
    %1911 = vmatprep.subr.mxu0 0.0
    %1912 = vmatpush1.msra.mxu0 0.0
    %1913 = vmatprep.subr.mxu0 0.0
    %1914 = vmatpush1.msra.mxu0 0.0
    %1915 = vmatprep.subr.mxu0 0.0
    %1916 = vmatpush1.msra.mxu0 0.0
    %1917 = vmatprep.subr.mxu0 0.0
    %1918 = vmatpush1.msra.mxu0 0.0
    %1919 = vmatprep.subr.mxu0 0.0
    %1920 = vmatpush1.msra.mxu0 0.0
    %1921 = vmatprep.subr.mxu0 0.0
    %1922 = vmatpush1.msra.mxu0 0.0
    %1923 = vmatprep.subr.mxu0 0.0
    %1924 = vmatpush1.msra.mxu0 0.0
    %1925 = vmatprep.subr.mxu0 0.0
    %1926 = vmatpush1.msra.mxu0 0.0
    %1927 = vmatprep.subr.mxu0 0.0
    %1928 = vmatpush1.msra.mxu0 0.0
    %1929 = vmatprep.subr.mxu0 0.0
    %1930 = vmatpush1.msra.mxu0 %v1249
    %1931 = vmatprep.subr.mxu0 0.0
    %1932 = vmatpush1.msra.mxu0 %v1248
    %1933 = vmatprep.subr.mxu0 0.0
    %1934 = vmatpush2.msra.mxu0 0.0
    %1935 = vmatprep.subr.mxu0 0.0
    %1936 = vmatpush2.msra.mxu0 0.0
    %1937 = vmatprep.subr.mxu0 0.0
    %1938 = vmatpush2.msra.mxu0 0.0
    %1939 = vmatprep.subr.mxu0 0.0
    %1940 = vmatpush2.msra.mxu0 0.0
    %1941 = vmatprep.subr.mxu0 0.0
    %1942 = vmatpush2.msra.mxu0 0.0
    %1943 = vmatprep.subr.mxu0 0.0
    %1944 = vmatpush2.msra.mxu0 0.0
    %1945 = vmatprep.subr.mxu0 0.0
    %1946 = vmatpush2.msra.mxu0 0.0
    %1947 = vmatprep.subr.mxu0 0.0
    %1948 = vmatpush2.msra.mxu0 0.0
    %1949 = vmatprep.subr.mxu0 0.0
    %1950 = vmatpush2.msra.mxu0 0.0
    %1951 = vmatprep.subr.mxu0 0.0
    %1952 = vmatpush2.msra.mxu0 0.0
    %1953 = vmatprep.subr.mxu0 0.0
    %1954 = vmatpush2.msra.mxu0 0.0
    %1955 = vmatprep.subr.mxu0 0.0
    %1956 = vmatpush2.msra.mxu0 0.0
    %1957 = vmatprep.subr.mxu0 0.0
    %1958 = vmatpush2.msra.mxu0 0.0
    %1959 = vmatprep.subr.mxu0 0.0
    %1960 = vmatpush2.msra.mxu0 0.0
    %1961 = vmatprep.subr.mxu0 0.0
    %1962 = vmatpush2.msra.mxu0 0.0
    %1963 = vmatprep.subr.mxu0 0.0
    %1964 = vmatpush2.msra.mxu0 0.0
    %1965 = vmatprep.mubr.f32.mxu0 0.0
    %1966 = vmatmul.mubr.f32.gmra.mxu0 %v1899
    %v1967 = vpop.f32.mrf.mxu0
    %v1968 = vadd.f32 0.0, %v1967
    %v1969 = vpop.f32.mrf.mxu0
    %1970 = vdwg.mxu0
    %v1972 = vrot.slane %v1968, 4
    %v1974 = vadd.f32 %v1244, %v1972
    %v1975 = vxor.u32 %v1974, 2147483648
    %v1976 = vmul.f32 %v1975, 1.442695
    %v1977 = vpow.pop %v1976
    %v1978 = vadd.f32 %v1977, 1.0
    %v1979 = vrcp.pop %v1978
    %v1980 = vmul.f32 1.0, %v1979
    %v1981 = vtanh.pop %v1974
    %v1983 = vrot.slane %v1884, 6
    %v1985 = vmul.f32 %v1980, %v1983
    %1987 = vrot.lane.b32.xlu0 %v1981, 96
    %v1988 = vpop.permute.xlu0 %1987
    %v1990 = vmul.f32 %v1980, %v1988
    %1992 = vrot.lane.b32.xlu0 %v1990, 16
    %v1993 = vpop.permute.xlu0 %1992
    %v1995 = vadd.f32 %v1985, %v1993
    %v1996 = vtanh.pop %v1995
    %1998 = vrot.lane.b32.xlu0 %v1996, 32
    %v1999 = vpop.permute.xlu0 %1998
    %v2001 = vmul.f32 %v1980, %v1999
    %2003 = vrot.lane.b32.xlu0 %v2001, 80
    %v2004 = vpop.permute.xlu0 %2003
    %2006 = vst.msk [vmem:[#allocation2 + $0x8] sm:$0x30] %vm601, %v2004
    %v2007 = vrot.slane %v2001, 4
    %2008 = vrot.lane.b32.xlu0 %v2007, 80
    %v2009 = vpop.permute.xlu0 %2008
    %v2010 = vsel %vm181, %v2009, 0
    %2012 = vmatprep.subr.mxu0 0.0
    %2013 = vmatpush1.msra.mxu0 0.0
    %2014 = vmatprep.subr.mxu0 0.0
    %2015 = vmatpush1.msra.mxu0 0.0
    %2016 = vmatprep.subr.mxu0 0.0
    %2017 = vmatpush1.msra.mxu0 0.0
    %2018 = vmatprep.subr.mxu0 0.0
    %2019 = vmatpush1.msra.mxu0 0.0
    %2020 = vmatprep.subr.mxu0 0.0
    %2021 = vmatpush1.msra.mxu0 0.0
    %2022 = vmatprep.subr.mxu0 0.0
    %2023 = vmatpush1.msra.mxu0 0.0
    %2024 = vmatprep.subr.mxu0 0.0
    %2025 = vmatpush1.msra.mxu0 0.0
    %2026 = vmatprep.subr.mxu0 0.0
    %2027 = vmatpush1.msra.mxu0 0.0
    %2028 = vmatprep.subr.mxu0 0.0
    %2029 = vmatpush1.msra.mxu0 0.0
    %2030 = vmatprep.subr.mxu0 0.0
    %2031 = vmatpush1.msra.mxu0 0.0
    %2032 = vmatprep.subr.mxu0 0.0
    %2033 = vmatpush1.msra.mxu0 0.0
    %2034 = vmatprep.subr.mxu0 0.0
    %2035 = vmatpush1.msra.mxu0 0.0
    %2036 = vmatprep.subr.mxu0 0.0
    %2037 = vmatpush1.msra.mxu0 0.0
    %2038 = vmatprep.subr.mxu0 0.0
    %2039 = vmatpush1.msra.mxu0 0.0
    %2040 = vmatprep.subr.mxu0 0.0
    %2041 = vmatpush1.msra.mxu0 %v1249
    %2042 = vmatprep.subr.mxu0 0.0
    %2043 = vmatpush1.msra.mxu0 %v1248
    %2044 = vmatprep.subr.mxu0 0.0
    %2045 = vmatpush2.msra.mxu0 0.0
    %2046 = vmatprep.subr.mxu0 0.0
    %2047 = vmatpush2.msra.mxu0 0.0
    %2048 = vmatprep.subr.mxu0 0.0
    %2049 = vmatpush2.msra.mxu0 0.0
    %2050 = vmatprep.subr.mxu0 0.0
    %2051 = vmatpush2.msra.mxu0 0.0
    %2052 = vmatprep.subr.mxu0 0.0
    %2053 = vmatpush2.msra.mxu0 0.0
    %2054 = vmatprep.subr.mxu0 0.0
    %2055 = vmatpush2.msra.mxu0 0.0
    %2056 = vmatprep.subr.mxu0 0.0
    %2057 = vmatpush2.msra.mxu0 0.0
    %2058 = vmatprep.subr.mxu0 0.0
    %2059 = vmatpush2.msra.mxu0 0.0
    %2060 = vmatprep.subr.mxu0 0.0
    %2061 = vmatpush2.msra.mxu0 0.0
    %2062 = vmatprep.subr.mxu0 0.0
    %2063 = vmatpush2.msra.mxu0 0.0
    %2064 = vmatprep.subr.mxu0 0.0
    %2065 = vmatpush2.msra.mxu0 0.0
    %2066 = vmatprep.subr.mxu0 0.0
    %2067 = vmatpush2.msra.mxu0 0.0
    %2068 = vmatprep.subr.mxu0 0.0
    %2069 = vmatpush2.msra.mxu0 0.0
    %2070 = vmatprep.subr.mxu0 0.0
    %2071 = vmatpush2.msra.mxu0 0.0
    %2072 = vmatprep.subr.mxu0 0.0
    %2073 = vmatpush2.msra.mxu0 0.0
    %2074 = vmatprep.subr.mxu0 0.0
    %2075 = vmatpush2.msra.mxu0 0.0
    %2076 = vmatprep.mubr.f32.mxu0 0.0
    %2077 = vmatmul.mubr.f32.gmra.mxu0 %v2010
    %v2078 = vpop.f32.mrf.mxu0
    %v2079 = vadd.f32 0.0, %v2078
    %v2080 = vpop.f32.mrf.mxu0
    %2081 = vdwg.mxu0
    %v2083 = vrot.slane %v2079, 2
    %v2085 = vadd.f32 %v1244, %v2083
    %v2086 = vxor.u32 %v2085, 2147483648
    %v2087 = vmul.f32 %v2086, 1.442695
    %v2088 = vpow.pop %v2087
    %v2089 = vadd.f32 %v2088, 1.0
    %v2090 = vrcp.pop %v2089
    %v2091 = vmul.f32 1.0, %v2090
    %v2092 = vtanh.pop %v2085
    %v2094 = vrot.slane %v1995, 6
    %v2096 = vmul.f32 %v2091, %v2094
    %2098 = vrot.lane.b32.xlu0 %v2092, 96
    %v2099 = vpop.permute.xlu0 %2098
    %v2101 = vmul.f32 %v2091, %v2099
    %2103 = vrot.lane.b32.xlu0 %v2101, 16
    %v2104 = vpop.permute.xlu0 %2103
    %v2106 = vadd.f32 %v2096, %v2104
    %v2107 = vtanh.pop %v2106
    %2109 = vrot.lane.b32.xlu0 %v2107, 32
    %v2110 = vpop.permute.xlu0 %2109
    %v2112 = vmul.f32 %v2091, %v2110
    %2114 = vrot.lane.b32.xlu0 %v2112, 80
    %v2115 = vpop.permute.xlu0 %2114
    %2117 = vst.msk [vmem:[#allocation2 + $0x8] sm:$0xc0] %vm713, %v2115
    %v2118 = vld [vmem:[#allocation2] sm:$0xff]
    %v2119 = vld [vmem:[#allocation2 + $0x8] sm:$0xff]
    %v2120 = vmul.f32 %v2118, %v2118
    %v2121 = vmul.f32 %v2119, %v2119
    %v2122 = vsel %vm181, %v2120, 0.0
    %2123 = vadd.xlane.f32.xlu0 %v2122
    %v2124 = vpop.xlane.xlu0 %2123
    %v2125 = vsel %vm181, %v2121, 0.0
    %2126 = vadd.xlane.f32.xlu0 %v2125
    %v2127 = vpop.xlane.xlu0 %2126
    %v2128 = vrsqrt.pop %v2124
    %v2129 = vmul.f32 %v2124, %v2128
    %vm2130 = vcmp.eq.f32.partialorder %v2124, inf
    %v2131 = vsel %vm2130, %v2124, %v2129
    %vm2132 = vcmp.eq.f32.partialorder %v2124, 0.0
    %v2133 = vand.u32 %v2124, 2147483648
    %v2134 = vsel %vm2132, %v2133, %v2131
    %v2135 = vrsqrt.pop %v2127
    %v2136 = vmul.f32 %v2127, %v2135
    %vm2137 = vcmp.eq.f32.partialorder %v2127, inf
    %v2138 = vsel %vm2137, %v2127, %v2136
    %vm2139 = vcmp.eq.f32.partialorder %v2127, 0.0
    %v2140 = vand.u32 %v2127, 2147483648
    %v2141 = vsel %vm2139, %v2140, %v2138
    %v2142 = vmax.f32 %v2134, 1e-12
    %v2143 = vmax.f32 %v2141, 1e-12
    %v2144 = vrcp.pop %v2142
    %v2145 = vmul.f32 %v2118, %v2144
    %v2146 = vrcp.pop %v2143
    %v2147 = vmul.f32 %v2119, %v2146
    %v2148 = vadd.f32 %v2145, 0.0
    %v2150 = vrot.slane %v2145, 2
    %v2152 = vadd.f32 %v2148, %v2150
    %v2153 = vrot.slane %v2145, 4
    %v2155 = vadd.f32 %v2152, %v2153
    %v2156 = vrot.slane %v2145, 6
    %v2158 = vadd.f32 %v2155, %v2156
    %v2159 = vadd.f32 %v2158, %v2147
    %v2161 = vrot.slane %v2147, 2
    %v2163 = vadd.f32 %v2159, %v2161
    %v2164 = vrot.slane %v2147, 4
    %v2166 = vadd.f32 %v2163, %v2164
    %v2167 = vrot.slane %v2147, 6
    %v2169 = vadd.f32 %v2166, %v2167
    %v2170 = vmul.f32 %v2169, 0.125
    %v2171 = vmul.f32 %v2170, %v2170
    %v2172 = vsel %vm380, %v2171, 0.0
    %2173 = vadd.xlane.f32.xlu0 %v2172
    %v2174 = vpop.xlane.xlu0 %2173
    %v2175 = vrsqrt.pop %v2174
    %v2176 = vmul.f32 %v2174, %v2175
    %vm2177 = vcmp.eq.f32.partialorder %v2174, inf
    %v2178 = vsel %vm2177, %v2174, %v2176
    %vm2179 = vcmp.eq.f32.partialorder %v2174, 0.0
    %v2180 = vand.u32 %v2174, 2147483648
    %v2181 = vsel %vm2179, %v2180, %v2178
    %v2182 = vmax.f32 %v2181, 1e-12
    %v2183 = vrcp.pop %v2182
    %v2184 = vmul.f32 %v2170, %v2183
    %v2185 = vld [vmem:[%s5] sm:$0xff]
    %v2186 = vld [vmem:[%s5 + $0x8] sm:$0xff]
    %v2187 = vld [vmem:[#allocation4] sm:$0x1]
    %v2189 = vlaneseq
    %v2190 = vshrl.u32 %v2189, 7
    %v2191 = vsub.s32 0, %v2190
    %v2192 = vrot.slane %v2187, %v2191
    %v2195 = vsel %vm181, %v2184, 0
    %2197 = vmatprep.subr.mxu0 0.0
    %2198 = vmatpush1.msra.mxu0 0.0
    %2199 = vmatprep.subr.mxu0 0.0
    %2200 = vmatpush1.msra.mxu0 0.0
    %2201 = vmatprep.subr.mxu0 0.0
    %2202 = vmatpush1.msra.mxu0 0.0
    %2203 = vmatprep.subr.mxu0 0.0
    %2204 = vmatpush1.msra.mxu0 0.0
    %2205 = vmatprep.subr.mxu0 0.0
    %2206 = vmatpush1.msra.mxu0 0.0
    %2207 = vmatprep.subr.mxu0 0.0
    %2208 = vmatpush1.msra.mxu0 0.0
    %2209 = vmatprep.subr.mxu0 0.0
    %2210 = vmatpush1.msra.mxu0 0.0
    %2211 = vmatprep.subr.mxu0 0.0
    %2212 = vmatpush1.msra.mxu0 0.0
    %2213 = vmatprep.subr.mxu0 0.0
    %2214 = vmatpush1.msra.mxu0 0.0
    %2215 = vmatprep.subr.mxu0 0.0
    %2216 = vmatpush1.msra.mxu0 0.0
    %2217 = vmatprep.subr.mxu0 0.0
    %2218 = vmatpush1.msra.mxu0 0.0
    %2219 = vmatprep.subr.mxu0 0.0
    %2220 = vmatpush1.msra.mxu0 0.0
    %2221 = vmatprep.subr.mxu0 0.0
    %2222 = vmatpush1.msra.mxu0 0.0
    %2223 = vmatprep.subr.mxu0 0.0
    %2224 = vmatpush1.msra.mxu0 0.0
    %2225 = vmatprep.subr.mxu0 0.0
    %2226 = vmatpush1.msra.mxu0 %v2186
    %2227 = vmatprep.subr.mxu0 0.0
    %2228 = vmatpush1.msra.mxu0 %v2185
    %2229 = vmatprep.subr.mxu0 0.0
    %2230 = vmatpush2.msra.mxu0 0.0
    %2231 = vmatprep.subr.mxu0 0.0
    %2232 = vmatpush2.msra.mxu0 0.0
    %2233 = vmatprep.subr.mxu0 0.0
    %2234 = vmatpush2.msra.mxu0 0.0
    %2235 = vmatprep.subr.mxu0 0.0
    %2236 = vmatpush2.msra.mxu0 0.0
    %2237 = vmatprep.subr.mxu0 0.0
    %2238 = vmatpush2.msra.mxu0 0.0
    %2239 = vmatprep.subr.mxu0 0.0
    %2240 = vmatpush2.msra.mxu0 0.0
    %2241 = vmatprep.subr.mxu0 0.0
    %2242 = vmatpush2.msra.mxu0 0.0
    %2243 = vmatprep.subr.mxu0 0.0
    %2244 = vmatpush2.msra.mxu0 0.0
    %2245 = vmatprep.subr.mxu0 0.0
    %2246 = vmatpush2.msra.mxu0 0.0
    %2247 = vmatprep.subr.mxu0 0.0
    %2248 = vmatpush2.msra.mxu0 0.0
    %2249 = vmatprep.subr.mxu0 0.0
    %2250 = vmatpush2.msra.mxu0 0.0
    %2251 = vmatprep.subr.mxu0 0.0
    %2252 = vmatpush2.msra.mxu0 0.0
    %2253 = vmatprep.subr.mxu0 0.0
    %2254 = vmatpush2.msra.mxu0 0.0
    %2255 = vmatprep.subr.mxu0 0.0
    %2256 = vmatpush2.msra.mxu0 0.0
    %2257 = vmatprep.subr.mxu0 0.0
    %2258 = vmatpush2.msra.mxu0 0.0
    %2259 = vmatprep.subr.mxu0 0.0
    %2260 = vmatpush2.msra.mxu0 0.0
    %2261 = vmatprep.mubr.f32.mxu0 0.0
    %2262 = vmatmul.mubr.f32.gmra.mxu0 %v2195
    %v2263 = vpop.f32.mrf.mxu0
    %v2264 = vadd.f32 %v2192, %v2263
    %v2265 = vpop.f32.mrf.mxu0
    %2266 = vdwg.mxu0
    %v2267 = vxor.u32 %v2264, 2147483648
    %v2268 = vmul.f32 %v2267, 1.442695
    %v2269 = vpow.pop %v2268
    %v2270 = vadd.f32 %v2269, 1.0
    %v2271 = vrcp.pop %v2270
    %v2272 = vmul.f32 1.0, %v2271
    %s2273 = scalar_lea.vmem %s1, 16
    %v2274 = vld [vmem:[%s2273] sm:$0xff]
    %v2275 = vld [vmem:[%s2273 + $0x8] sm:$0xf]
    %v2277 = vsel %vm102, %v2275, 0
    %2279 = vmatprep.subr.mxu0 0.0
    %2280 = vmatpush1.msra.mxu0 0.0
    %2281 = vmatprep.subr.mxu0 0.0
    %2282 = vmatpush1.msra.mxu0 0.0
    %2283 = vmatprep.subr.mxu0 0.0
    %2284 = vmatpush1.msra.mxu0 0.0
    %2285 = vmatprep.subr.mxu0 0.0
    %2286 = vmatpush1.msra.mxu0 0.0
    %2287 = vmatprep.subr.mxu0 0.0
    %2288 = vmatpush1.msra.mxu0 0.0
    %2289 = vmatprep.subr.mxu0 0.0
    %2290 = vmatpush1.msra.mxu0 0.0
    %2291 = vmatprep.subr.mxu0 0.0
    %2292 = vmatpush1.msra.mxu0 0.0
    %2293 = vmatprep.subr.mxu0 0.0
    %2294 = vmatpush1.msra.mxu0 0.0
    %2295 = vmatprep.subr.mxu0 0.0
    %2296 = vmatpush1.msra.mxu0 0.0
    %2297 = vmatprep.subr.mxu0 0.0
    %2298 = vmatpush1.msra.mxu0 0.0
    %2299 = vmatprep.subr.mxu0 0.0
    %2300 = vmatpush1.msra.mxu0 0.0
    %2301 = vmatprep.subr.mxu0 0.0
    %2302 = vmatpush1.msra.mxu0 0.0
    %2303 = vmatprep.subr.mxu0 0.0
    %2304 = vmatpush1.msra.mxu0 0.0
    %2305 = vmatprep.subr.mxu0 0.0
    %2306 = vmatpush1.msra.mxu0 0.0
    %2307 = vmatprep.subr.mxu0 0.0
    %2308 = vmatpush1.msra.mxu0 %v2277
    %2309 = vmatprep.subr.mxu0 0.0
    %2310 = vmatpush1.msra.mxu0 %v2274
    %2311 = vmatprep.subr.mxu0 0.0
    %2312 = vmatpush2.msra.mxu0 0.0
    %2313 = vmatprep.subr.mxu0 0.0
    %2314 = vmatpush2.msra.mxu0 0.0
    %2315 = vmatprep.subr.mxu0 0.0
    %2316 = vmatpush2.msra.mxu0 0.0
    %2317 = vmatprep.subr.mxu0 0.0
    %2318 = vmatpush2.msra.mxu0 0.0
    %2319 = vmatprep.subr.mxu0 0.0
    %2320 = vmatpush2.msra.mxu0 0.0
    %2321 = vmatprep.subr.mxu0 0.0
    %2322 = vmatpush2.msra.mxu0 0.0
    %2323 = vmatprep.subr.mxu0 0.0
    %2324 = vmatpush2.msra.mxu0 0.0
    %2325 = vmatprep.subr.mxu0 0.0
    %2326 = vmatpush2.msra.mxu0 0.0
    %2327 = vmatprep.subr.mxu0 0.0
    %2328 = vmatpush2.msra.mxu0 0.0
    %2329 = vmatprep.subr.mxu0 0.0
    %2330 = vmatpush2.msra.mxu0 0.0
    %2331 = vmatprep.subr.mxu0 0.0
    %2332 = vmatpush2.msra.mxu0 0.0
    %2333 = vmatprep.subr.mxu0 0.0
    %2334 = vmatpush2.msra.mxu0 0.0
    %2335 = vmatprep.subr.mxu0 0.0
    %2336 = vmatpush2.msra.mxu0 0.0
    %2337 = vmatprep.subr.mxu0 0.0
    %2338 = vmatpush2.msra.mxu0 0.0
    %2339 = vmatprep.subr.mxu0 0.0
    %2340 = vmatpush2.msra.mxu0 0.0
    %2341 = vmatprep.subr.mxu0 0.0
    %2342 = vmatpush2.msra.mxu0 0.0
    %2343 = vmatprep.mubr.f32.mxu0 0.0
    %2344 = vmatmul.mubr.f32.gmra.mxu0 %v97
    %v2345 = vpop.f32.mrf.mxu0
    %v2346 = vadd.f32 0.0, %v2345
    %v2347 = vpop.f32.mrf.mxu0
    %2348 = vmatprep.mubr.f32.mxu0 0.0
    %2349 = vmatmul.mubr.f32.gmra.mxu0 %v100
    %v2350 = vpop.f32.mrf.mxu0
    %v2351 = vadd.f32 0.0, %v2350
    %v2352 = vpop.f32.mrf.mxu0
    %2353 = vdwg.mxu0
    %2354 = vst.msk [vmem:[#allocation2] sm:$0xff] %vm181, %v2346
    %2355 = vst.msk [vmem:[#allocation2 + $0x8] sm:$0xff] %vm181, %v2351
    %v2356 = vld [vmem:[#allocation2] sm:$0xff]
    %v2357 = vld [vmem:[#allocation2 + $0x8] sm:$0xff]
    %s2358 = scalar_lea.vmem %s2, 32
    %v2359 = vld [vmem:[%s2358] sm:$0xff]
    %v2360 = vld [vmem:[%s2358 + $0x8] sm:$0xff]
    %s2361 = scalar_lea.vmem [#allocation6], 2
    %v2362 = vld [vmem:[%s2361] sm:$0x1]
    %v2364 = vlaneseq
    %v2365 = vshrl.u32 %v2364, 7
    %v2366 = vsub.s32 0, %v2365
    %v2367 = vrot.slane %v2362, %v2366
    %v2370 = vsel %vm181, %v2356, 0
    %v2373 = vsel %vm181, %v2357, 0
    %2375 = vmatprep.subr.mxu0 0.0
    %2376 = vmatpush1.msra.mxu0 0.0
    %2377 = vmatprep.subr.mxu0 0.0
    %2378 = vmatpush1.msra.mxu0 0.0
    %2379 = vmatprep.subr.mxu0 0.0
    %2380 = vmatpush1.msra.mxu0 0.0
    %2381 = vmatprep.subr.mxu0 0.0
    %2382 = vmatpush1.msra.mxu0 0.0
    %2383 = vmatprep.subr.mxu0 0.0
    %2384 = vmatpush1.msra.mxu0 0.0
    %2385 = vmatprep.subr.mxu0 0.0
    %2386 = vmatpush1.msra.mxu0 0.0
    %2387 = vmatprep.subr.mxu0 0.0
    %2388 = vmatpush1.msra.mxu0 0.0
    %2389 = vmatprep.subr.mxu0 0.0
    %2390 = vmatpush1.msra.mxu0 0.0
    %2391 = vmatprep.subr.mxu0 0.0
    %2392 = vmatpush1.msra.mxu0 0.0
    %2393 = vmatprep.subr.mxu0 0.0
    %2394 = vmatpush1.msra.mxu0 0.0
    %2395 = vmatprep.subr.mxu0 0.0
    %2396 = vmatpush1.msra.mxu0 0.0
    %2397 = vmatprep.subr.mxu0 0.0
    %2398 = vmatpush1.msra.mxu0 0.0
    %2399 = vmatprep.subr.mxu0 0.0
    %2400 = vmatpush1.msra.mxu0 0.0
    %2401 = vmatprep.subr.mxu0 0.0
    %2402 = vmatpush1.msra.mxu0 0.0
    %2403 = vmatprep.subr.mxu0 0.0
    %2404 = vmatpush1.msra.mxu0 %v2360
    %2405 = vmatprep.subr.mxu0 0.0
    %2406 = vmatpush1.msra.mxu0 %v2359
    %2407 = vmatprep.subr.mxu0 0.0
    %2408 = vmatpush2.msra.mxu0 0.0
    %2409 = vmatprep.subr.mxu0 0.0
    %2410 = vmatpush2.msra.mxu0 0.0
    %2411 = vmatprep.subr.mxu0 0.0
    %2412 = vmatpush2.msra.mxu0 0.0
    %2413 = vmatprep.subr.mxu0 0.0
    %2414 = vmatpush2.msra.mxu0 0.0
    %2415 = vmatprep.subr.mxu0 0.0
    %2416 = vmatpush2.msra.mxu0 0.0
    %2417 = vmatprep.subr.mxu0 0.0
    %2418 = vmatpush2.msra.mxu0 0.0
    %2419 = vmatprep.subr.mxu0 0.0
    %2420 = vmatpush2.msra.mxu0 0.0
    %2421 = vmatprep.subr.mxu0 0.0
    %2422 = vmatpush2.msra.mxu0 0.0
    %2423 = vmatprep.subr.mxu0 0.0
    %2424 = vmatpush2.msra.mxu0 0.0
    %2425 = vmatprep.subr.mxu0 0.0
    %2426 = vmatpush2.msra.mxu0 0.0
    %2427 = vmatprep.subr.mxu0 0.0
    %2428 = vmatpush2.msra.mxu0 0.0
    %2429 = vmatprep.subr.mxu0 0.0
    %2430 = vmatpush2.msra.mxu0 0.0
    %2431 = vmatprep.subr.mxu0 0.0
    %2432 = vmatpush2.msra.mxu0 0.0
    %2433 = vmatprep.subr.mxu0 0.0
    %2434 = vmatpush2.msra.mxu0 0.0
    %2435 = vmatprep.subr.mxu0 0.0
    %2436 = vmatpush2.msra.mxu0 0.0
    %2437 = vmatprep.subr.mxu0 0.0
    %2438 = vmatpush2.msra.mxu0 0.0
    %2439 = vmatprep.mubr.f32.mxu0 0.0
    %2440 = vmatmul.mubr.f32.gmra.mxu0 %v2370
    %v2441 = vpop.f32.mrf.mxu0
    %v2442 = vadd.f32 %v2367, %v2441
    %v2443 = vpop.f32.mrf.mxu0
    %2444 = vmatprep.mubr.f32.mxu0 0.0
    %2445 = vmatmul.mubr.f32.gmra.mxu0 %v2373
    %v2446 = vpop.f32.mrf.mxu0
    %v2447 = vadd.f32 %v2367, %v2446
    %v2448 = vpop.f32.mrf.mxu0
    %2449 = vdwg.mxu0
    %s2450 = scalar_lea.vmem %s3, 32
    %v2451 = vld [vmem:[%s2450] sm:$0xff]
    %v2452 = vld [vmem:[%s2450 + $0x8] sm:$0xff]
    %2453 = vmatprep.subr.mxu0 0.0
    %2454 = vmatpush1.msra.mxu0 0.0
    %2455 = vmatprep.subr.mxu0 0.0
    %2456 = vmatpush1.msra.mxu0 0.0
    %2457 = vmatprep.subr.mxu0 0.0
    %2458 = vmatpush1.msra.mxu0 0.0
    %2459 = vmatprep.subr.mxu0 0.0
    %2460 = vmatpush1.msra.mxu0 0.0
    %2461 = vmatprep.subr.mxu0 0.0
    %2462 = vmatpush1.msra.mxu0 0.0
    %2463 = vmatprep.subr.mxu0 0.0
    %2464 = vmatpush1.msra.mxu0 0.0
    %2465 = vmatprep.subr.mxu0 0.0
    %2466 = vmatpush1.msra.mxu0 0.0
    %2467 = vmatprep.subr.mxu0 0.0
    %2468 = vmatpush1.msra.mxu0 0.0
    %2469 = vmatprep.subr.mxu0 0.0
    %2470 = vmatpush1.msra.mxu0 0.0
    %2471 = vmatprep.subr.mxu0 0.0
    %2472 = vmatpush1.msra.mxu0 0.0
    %2473 = vmatprep.subr.mxu0 0.0
    %2474 = vmatpush1.msra.mxu0 0.0
    %2475 = vmatprep.subr.mxu0 0.0
    %2476 = vmatpush1.msra.mxu0 0.0
    %2477 = vmatprep.subr.mxu0 0.0
    %2478 = vmatpush1.msra.mxu0 0.0
    %2479 = vmatprep.subr.mxu0 0.0
    %2480 = vmatpush1.msra.mxu0 0.0
    %2481 = vmatprep.subr.mxu0 0.0
    %2482 = vmatpush1.msra.mxu0 %v2452
    %2483 = vmatprep.subr.mxu0 0.0
    %2484 = vmatpush1.msra.mxu0 %v2451
    %2485 = vmatprep.subr.mxu0 0.0
    %2486 = vmatpush2.msra.mxu0 0.0
    %2487 = vmatprep.subr.mxu0 0.0
    %2488 = vmatpush2.msra.mxu0 0.0
    %2489 = vmatprep.subr.mxu0 0.0
    %2490 = vmatpush2.msra.mxu0 0.0
    %2491 = vmatprep.subr.mxu0 0.0
    %2492 = vmatpush2.msra.mxu0 0.0
    %2493 = vmatprep.subr.mxu0 0.0
    %2494 = vmatpush2.msra.mxu0 0.0
    %2495 = vmatprep.subr.mxu0 0.0
    %2496 = vmatpush2.msra.mxu0 0.0
    %2497 = vmatprep.subr.mxu0 0.0
    %2498 = vmatpush2.msra.mxu0 0.0
    %2499 = vmatprep.subr.mxu0 0.0
    %2500 = vmatpush2.msra.mxu0 0.0
    %2501 = vmatprep.subr.mxu0 0.0
    %2502 = vmatpush2.msra.mxu0 0.0
    %2503 = vmatprep.subr.mxu0 0.0
    %2504 = vmatpush2.msra.mxu0 0.0
    %2505 = vmatprep.subr.mxu0 0.0
    %2506 = vmatpush2.msra.mxu0 0.0
    %2507 = vmatprep.subr.mxu0 0.0
    %2508 = vmatpush2.msra.mxu0 0.0
    %2509 = vmatprep.subr.mxu0 0.0
    %2510 = vmatpush2.msra.mxu0 0.0
    %2511 = vmatprep.subr.mxu0 0.0
    %2512 = vmatpush2.msra.mxu0 0.0
    %2513 = vmatprep.subr.mxu0 0.0
    %2514 = vmatpush2.msra.mxu0 0.0
    %2515 = vmatprep.subr.mxu0 0.0
    %2516 = vmatpush2.msra.mxu0 0.0
    %2517 = vmatprep.mubr.f32.mxu0 0.0
    %2518 = vmatmul.mubr.f32.gmra.mxu0 %v279
    %v2519 = vpop.f32.mrf.mxu0
    %v2520 = vadd.f32 0.0, %v2519
    %v2521 = vpop.f32.mrf.mxu0
    %2522 = vdwg.mxu0
    %v2523 = vadd.f32 %v2442, %v2520
    %v2524 = vxor.u32 %v2523, 2147483648
    %v2525 = vmul.f32 %v2524, 1.442695
    %v2526 = vpow.pop %v2525
    %v2527 = vadd.f32 %v2526, 1.0
    %v2528 = vrcp.pop %v2527
    %v2529 = vmul.f32 1.0, %v2528
    %v2530 = vtanh.pop %v2523
    %v2531 = vmul.f32 %v2529, 0.0
    %2533 = vrot.lane.b32.xlu0 %v2530, 96
    %v2534 = vpop.permute.xlu0 %2533
    %v2536 = vmul.f32 %v2529, %v2534
    %2538 = vrot.lane.b32.xlu0 %v2536, 16
    %v2539 = vpop.permute.xlu0 %2538
    %v2541 = vadd.f32 %v2531, %v2539
    %v2542 = vtanh.pop %v2541
    %2544 = vrot.lane.b32.xlu0 %v2542, 32
    %v2545 = vpop.permute.xlu0 %2544
    %v2547 = vmul.f32 %v2529, %v2545
    %2549 = vrot.lane.b32.xlu0 %v2547, 80
    %v2550 = vpop.permute.xlu0 %2549
    %2552 = vst.msk [vmem:[#allocation3] sm:$0x3] %vm380, %v2550
    %v2553 = vsel %vm181, %v2550, 0
    %2555 = vmatprep.subr.mxu0 0.0
    %2556 = vmatpush1.msra.mxu0 0.0
    %2557 = vmatprep.subr.mxu0 0.0
    %2558 = vmatpush1.msra.mxu0 0.0
    %2559 = vmatprep.subr.mxu0 0.0
    %2560 = vmatpush1.msra.mxu0 0.0
    %2561 = vmatprep.subr.mxu0 0.0
    %2562 = vmatpush1.msra.mxu0 0.0
    %2563 = vmatprep.subr.mxu0 0.0
    %2564 = vmatpush1.msra.mxu0 0.0
    %2565 = vmatprep.subr.mxu0 0.0
    %2566 = vmatpush1.msra.mxu0 0.0
    %2567 = vmatprep.subr.mxu0 0.0
    %2568 = vmatpush1.msra.mxu0 0.0
    %2569 = vmatprep.subr.mxu0 0.0
    %2570 = vmatpush1.msra.mxu0 0.0
    %2571 = vmatprep.subr.mxu0 0.0
    %2572 = vmatpush1.msra.mxu0 0.0
    %2573 = vmatprep.subr.mxu0 0.0
    %2574 = vmatpush1.msra.mxu0 0.0
    %2575 = vmatprep.subr.mxu0 0.0
    %2576 = vmatpush1.msra.mxu0 0.0
    %2577 = vmatprep.subr.mxu0 0.0
    %2578 = vmatpush1.msra.mxu0 0.0
    %2579 = vmatprep.subr.mxu0 0.0
    %2580 = vmatpush1.msra.mxu0 0.0
    %2581 = vmatprep.subr.mxu0 0.0
    %2582 = vmatpush1.msra.mxu0 0.0
    %2583 = vmatprep.subr.mxu0 0.0
    %2584 = vmatpush1.msra.mxu0 %v2452
    %2585 = vmatprep.subr.mxu0 0.0
    %2586 = vmatpush1.msra.mxu0 %v2451
    %2587 = vmatprep.subr.mxu0 0.0
    %2588 = vmatpush2.msra.mxu0 0.0
    %2589 = vmatprep.subr.mxu0 0.0
    %2590 = vmatpush2.msra.mxu0 0.0
    %2591 = vmatprep.subr.mxu0 0.0
    %2592 = vmatpush2.msra.mxu0 0.0
    %2593 = vmatprep.subr.mxu0 0.0
    %2594 = vmatpush2.msra.mxu0 0.0
    %2595 = vmatprep.subr.mxu0 0.0
    %2596 = vmatpush2.msra.mxu0 0.0
    %2597 = vmatprep.subr.mxu0 0.0
    %2598 = vmatpush2.msra.mxu0 0.0
    %2599 = vmatprep.subr.mxu0 0.0
    %2600 = vmatpush2.msra.mxu0 0.0
    %2601 = vmatprep.subr.mxu0 0.0
    %2602 = vmatpush2.msra.mxu0 0.0
    %2603 = vmatprep.subr.mxu0 0.0
    %2604 = vmatpush2.msra.mxu0 0.0
    %2605 = vmatprep.subr.mxu0 0.0
    %2606 = vmatpush2.msra.mxu0 0.0
    %2607 = vmatprep.subr.mxu0 0.0
    %2608 = vmatpush2.msra.mxu0 0.0
    %2609 = vmatprep.subr.mxu0 0.0
    %2610 = vmatpush2.msra.mxu0 0.0
    %2611 = vmatprep.subr.mxu0 0.0
    %2612 = vmatpush2.msra.mxu0 0.0
    %2613 = vmatprep.subr.mxu0 0.0
    %2614 = vmatpush2.msra.mxu0 0.0
    %2615 = vmatprep.subr.mxu0 0.0
    %2616 = vmatpush2.msra.mxu0 0.0
    %2617 = vmatprep.subr.mxu0 0.0
    %2618 = vmatpush2.msra.mxu0 0.0
    %2619 = vmatprep.mubr.f32.mxu0 0.0
    %2620 = vmatmul.mubr.f32.gmra.mxu0 %v2553
    %v2621 = vpop.f32.mrf.mxu0
    %v2622 = vadd.f32 0.0, %v2621
    %v2623 = vpop.f32.mrf.mxu0
    %2624 = vdwg.mxu0
    %v2626 = vrot.slane %v2622, 6
    %v2628 = vadd.f32 %v2442, %v2626
    %v2629 = vxor.u32 %v2628, 2147483648
    %v2630 = vmul.f32 %v2629, 1.442695
    %v2631 = vpow.pop %v2630
    %v2632 = vadd.f32 %v2631, 1.0
    %v2633 = vrcp.pop %v2632
    %v2634 = vmul.f32 1.0, %v2633
    %v2635 = vtanh.pop %v2628
    %v2637 = vrot.slane %v2541, 6
    %v2639 = vmul.f32 %v2634, %v2637
    %2641 = vrot.lane.b32.xlu0 %v2635, 96
    %v2642 = vpop.permute.xlu0 %2641
    %v2644 = vmul.f32 %v2634, %v2642
    %2646 = vrot.lane.b32.xlu0 %v2644, 16
    %v2647 = vpop.permute.xlu0 %2646
    %v2649 = vadd.f32 %v2639, %v2647
    %v2650 = vtanh.pop %v2649
    %2652 = vrot.lane.b32.xlu0 %v2650, 32
    %v2653 = vpop.permute.xlu0 %2652
    %v2655 = vmul.f32 %v2634, %v2653
    %2657 = vrot.lane.b32.xlu0 %v2655, 80
    %v2658 = vpop.permute.xlu0 %2657
    %2660 = vst.msk [vmem:[#allocation3] sm:$0xc] %vm489, %v2658
    %v2661 = vrot.slane %v2655, 2
    %2662 = vrot.lane.b32.xlu0 %v2661, 80
    %v2663 = vpop.permute.xlu0 %2662
    %v2664 = vsel %vm181, %v2663, 0
    %2666 = vmatprep.subr.mxu0 0.0
    %2667 = vmatpush1.msra.mxu0 0.0
    %2668 = vmatprep.subr.mxu0 0.0
    %2669 = vmatpush1.msra.mxu0 0.0
    %2670 = vmatprep.subr.mxu0 0.0
    %2671 = vmatpush1.msra.mxu0 0.0
    %2672 = vmatprep.subr.mxu0 0.0
    %2673 = vmatpush1.msra.mxu0 0.0
    %2674 = vmatprep.subr.mxu0 0.0
    %2675 = vmatpush1.msra.mxu0 0.0
    %2676 = vmatprep.subr.mxu0 0.0
    %2677 = vmatpush1.msra.mxu0 0.0
    %2678 = vmatprep.subr.mxu0 0.0
    %2679 = vmatpush1.msra.mxu0 0.0
    %2680 = vmatprep.subr.mxu0 0.0
    %2681 = vmatpush1.msra.mxu0 0.0
    %2682 = vmatprep.subr.mxu0 0.0
    %2683 = vmatpush1.msra.mxu0 0.0
    %2684 = vmatprep.subr.mxu0 0.0
    %2685 = vmatpush1.msra.mxu0 0.0
    %2686 = vmatprep.subr.mxu0 0.0
    %2687 = vmatpush1.msra.mxu0 0.0
    %2688 = vmatprep.subr.mxu0 0.0
    %2689 = vmatpush1.msra.mxu0 0.0
    %2690 = vmatprep.subr.mxu0 0.0
    %2691 = vmatpush1.msra.mxu0 0.0
    %2692 = vmatprep.subr.mxu0 0.0
    %2693 = vmatpush1.msra.mxu0 0.0
    %2694 = vmatprep.subr.mxu0 0.0
    %2695 = vmatpush1.msra.mxu0 %v2452
    %2696 = vmatprep.subr.mxu0 0.0
    %2697 = vmatpush1.msra.mxu0 %v2451
    %2698 = vmatprep.subr.mxu0 0.0
    %2699 = vmatpush2.msra.mxu0 0.0
    %2700 = vmatprep.subr.mxu0 0.0
    %2701 = vmatpush2.msra.mxu0 0.0
    %2702 = vmatprep.subr.mxu0 0.0
    %2703 = vmatpush2.msra.mxu0 0.0
    %2704 = vmatprep.subr.mxu0 0.0
    %2705 = vmatpush2.msra.mxu0 0.0
    %2706 = vmatprep.subr.mxu0 0.0
    %2707 = vmatpush2.msra.mxu0 0.0
    %2708 = vmatprep.subr.mxu0 0.0
    %2709 = vmatpush2.msra.mxu0 0.0
    %2710 = vmatprep.subr.mxu0 0.0
    %2711 = vmatpush2.msra.mxu0 0.0
    %2712 = vmatprep.subr.mxu0 0.0
    %2713 = vmatpush2.msra.mxu0 0.0
    %2714 = vmatprep.subr.mxu0 0.0
    %2715 = vmatpush2.msra.mxu0 0.0
    %2716 = vmatprep.subr.mxu0 0.0
    %2717 = vmatpush2.msra.mxu0 0.0
    %2718 = vmatprep.subr.mxu0 0.0
    %2719 = vmatpush2.msra.mxu0 0.0
    %2720 = vmatprep.subr.mxu0 0.0
    %2721 = vmatpush2.msra.mxu0 0.0
    %2722 = vmatprep.subr.mxu0 0.0
    %2723 = vmatpush2.msra.mxu0 0.0
    %2724 = vmatprep.subr.mxu0 0.0
    %2725 = vmatpush2.msra.mxu0 0.0
    %2726 = vmatprep.subr.mxu0 0.0
    %2727 = vmatpush2.msra.mxu0 0.0
    %2728 = vmatprep.subr.mxu0 0.0
    %2729 = vmatpush2.msra.mxu0 0.0
    %2730 = vmatprep.mubr.f32.mxu0 0.0
    %2731 = vmatmul.mubr.f32.gmra.mxu0 %v2664
    %v2732 = vpop.f32.mrf.mxu0
    %v2733 = vadd.f32 0.0, %v2732
    %v2734 = vpop.f32.mrf.mxu0
    %2735 = vdwg.mxu0
    %v2737 = vrot.slane %v2733, 4
    %v2739 = vadd.f32 %v2442, %v2737
    %v2740 = vxor.u32 %v2739, 2147483648
    %v2741 = vmul.f32 %v2740, 1.442695
    %v2742 = vpow.pop %v2741
    %v2743 = vadd.f32 %v2742, 1.0
    %v2744 = vrcp.pop %v2743
    %v2745 = vmul.f32 1.0, %v2744
    %v2746 = vtanh.pop %v2739
    %v2748 = vrot.slane %v2649, 6
    %v2750 = vmul.f32 %v2745, %v2748
    %2752 = vrot.lane.b32.xlu0 %v2746, 96
    %v2753 = vpop.permute.xlu0 %2752
    %v2755 = vmul.f32 %v2745, %v2753
    %2757 = vrot.lane.b32.xlu0 %v2755, 16
    %v2758 = vpop.permute.xlu0 %2757
    %v2760 = vadd.f32 %v2750, %v2758
    %v2761 = vtanh.pop %v2760
    %2763 = vrot.lane.b32.xlu0 %v2761, 32
    %v2764 = vpop.permute.xlu0 %2763
    %v2766 = vmul.f32 %v2745, %v2764
    %2768 = vrot.lane.b32.xlu0 %v2766, 80
    %v2769 = vpop.permute.xlu0 %2768
    %2771 = vst.msk [vmem:[#allocation3] sm:$0x30] %vm601, %v2769
    %v2772 = vrot.slane %v2766, 4
    %2773 = vrot.lane.b32.xlu0 %v2772, 80
    %v2774 = vpop.permute.xlu0 %2773
    %v2775 = vsel %vm181, %v2774, 0
    %2777 = vmatprep.subr.mxu0 0.0
    %2778 = vmatpush1.msra.mxu0 0.0
    %2779 = vmatprep.subr.mxu0 0.0
    %2780 = vmatpush1.msra.mxu0 0.0
    %2781 = vmatprep.subr.mxu0 0.0
    %2782 = vmatpush1.msra.mxu0 0.0
    %2783 = vmatprep.subr.mxu0 0.0
    %2784 = vmatpush1.msra.mxu0 0.0
    %2785 = vmatprep.subr.mxu0 0.0
    %2786 = vmatpush1.msra.mxu0 0.0
    %2787 = vmatprep.subr.mxu0 0.0
    %2788 = vmatpush1.msra.mxu0 0.0
    %2789 = vmatprep.subr.mxu0 0.0
    %2790 = vmatpush1.msra.mxu0 0.0
    %2791 = vmatprep.subr.mxu0 0.0
    %2792 = vmatpush1.msra.mxu0 0.0
    %2793 = vmatprep.subr.mxu0 0.0
    %2794 = vmatpush1.msra.mxu0 0.0
    %2795 = vmatprep.subr.mxu0 0.0
    %2796 = vmatpush1.msra.mxu0 0.0
    %2797 = vmatprep.subr.mxu0 0.0
    %2798 = vmatpush1.msra.mxu0 0.0
    %2799 = vmatprep.subr.mxu0 0.0
    %2800 = vmatpush1.msra.mxu0 0.0
    %2801 = vmatprep.subr.mxu0 0.0
    %2802 = vmatpush1.msra.mxu0 0.0
    %2803 = vmatprep.subr.mxu0 0.0
    %2804 = vmatpush1.msra.mxu0 0.0
    %2805 = vmatprep.subr.mxu0 0.0
    %2806 = vmatpush1.msra.mxu0 %v2452
    %2807 = vmatprep.subr.mxu0 0.0
    %2808 = vmatpush1.msra.mxu0 %v2451
    %2809 = vmatprep.subr.mxu0 0.0
    %2810 = vmatpush2.msra.mxu0 0.0
    %2811 = vmatprep.subr.mxu0 0.0
    %2812 = vmatpush2.msra.mxu0 0.0
    %2813 = vmatprep.subr.mxu0 0.0
    %2814 = vmatpush2.msra.mxu0 0.0
    %2815 = vmatprep.subr.mxu0 0.0
    %2816 = vmatpush2.msra.mxu0 0.0
    %2817 = vmatprep.subr.mxu0 0.0
    %2818 = vmatpush2.msra.mxu0 0.0
    %2819 = vmatprep.subr.mxu0 0.0
    %2820 = vmatpush2.msra.mxu0 0.0
    %2821 = vmatprep.subr.mxu0 0.0
    %2822 = vmatpush2.msra.mxu0 0.0
    %2823 = vmatprep.subr.mxu0 0.0
    %2824 = vmatpush2.msra.mxu0 0.0
    %2825 = vmatprep.subr.mxu0 0.0
    %2826 = vmatpush2.msra.mxu0 0.0
    %2827 = vmatprep.subr.mxu0 0.0
    %2828 = vmatpush2.msra.mxu0 0.0
    %2829 = vmatprep.subr.mxu0 0.0
    %2830 = vmatpush2.msra.mxu0 0.0
    %2831 = vmatprep.subr.mxu0 0.0
    %2832 = vmatpush2.msra.mxu0 0.0
    %2833 = vmatprep.subr.mxu0 0.0
    %2834 = vmatpush2.msra.mxu0 0.0
    %2835 = vmatprep.subr.mxu0 0.0
    %2836 = vmatpush2.msra.mxu0 0.0
    %2837 = vmatprep.subr.mxu0 0.0
    %2838 = vmatpush2.msra.mxu0 0.0
    %2839 = vmatprep.subr.mxu0 0.0
    %2840 = vmatpush2.msra.mxu0 0.0
    %2841 = vmatprep.mubr.f32.mxu0 0.0
    %2842 = vmatmul.mubr.f32.gmra.mxu0 %v2775
    %v2843 = vpop.f32.mrf.mxu0
    %v2844 = vadd.f32 0.0, %v2843
    %v2845 = vpop.f32.mrf.mxu0
    %2846 = vdwg.mxu0
    %v2848 = vrot.slane %v2844, 2
    %v2850 = vadd.f32 %v2442, %v2848
    %v2851 = vxor.u32 %v2850, 2147483648
    %v2852 = vmul.f32 %v2851, 1.442695
    %v2853 = vpow.pop %v2852
    %v2854 = vadd.f32 %v2853, 1.0
    %v2855 = vrcp.pop %v2854
    %v2856 = vmul.f32 1.0, %v2855
    %v2857 = vtanh.pop %v2850
    %v2859 = vrot.slane %v2760, 6
    %v2861 = vmul.f32 %v2856, %v2859
    %2863 = vrot.lane.b32.xlu0 %v2857, 96
    %v2864 = vpop.permute.xlu0 %2863
    %v2866 = vmul.f32 %v2856, %v2864
    %2868 = vrot.lane.b32.xlu0 %v2866, 16
    %v2869 = vpop.permute.xlu0 %2868
    %v2871 = vadd.f32 %v2861, %v2869
    %v2872 = vtanh.pop %v2871
    %2874 = vrot.lane.b32.xlu0 %v2872, 32
    %v2875 = vpop.permute.xlu0 %2874
    %v2877 = vmul.f32 %v2856, %v2875
    %2879 = vrot.lane.b32.xlu0 %v2877, 80
    %v2880 = vpop.permute.xlu0 %2879
    %2882 = vst.msk [vmem:[#allocation3] sm:$0xc0] %vm713, %v2880
    %v2883 = vrot.slane %v2877, 6
    %2884 = vrot.lane.b32.xlu0 %v2883, 80
    %v2885 = vpop.permute.xlu0 %2884
    %v2886 = vsel %vm181, %v2885, 0
    %2888 = vmatprep.subr.mxu0 0.0
    %2889 = vmatpush1.msra.mxu0 0.0
    %2890 = vmatprep.subr.mxu0 0.0
    %2891 = vmatpush1.msra.mxu0 0.0
    %2892 = vmatprep.subr.mxu0 0.0
    %2893 = vmatpush1.msra.mxu0 0.0
    %2894 = vmatprep.subr.mxu0 0.0
    %2895 = vmatpush1.msra.mxu0 0.0
    %2896 = vmatprep.subr.mxu0 0.0
    %2897 = vmatpush1.msra.mxu0 0.0
    %2898 = vmatprep.subr.mxu0 0.0
    %2899 = vmatpush1.msra.mxu0 0.0
    %2900 = vmatprep.subr.mxu0 0.0
    %2901 = vmatpush1.msra.mxu0 0.0
    %2902 = vmatprep.subr.mxu0 0.0
    %2903 = vmatpush1.msra.mxu0 0.0
    %2904 = vmatprep.subr.mxu0 0.0
    %2905 = vmatpush1.msra.mxu0 0.0
    %2906 = vmatprep.subr.mxu0 0.0
    %2907 = vmatpush1.msra.mxu0 0.0
    %2908 = vmatprep.subr.mxu0 0.0
    %2909 = vmatpush1.msra.mxu0 0.0
    %2910 = vmatprep.subr.mxu0 0.0
    %2911 = vmatpush1.msra.mxu0 0.0
    %2912 = vmatprep.subr.mxu0 0.0
    %2913 = vmatpush1.msra.mxu0 0.0
    %2914 = vmatprep.subr.mxu0 0.0
    %2915 = vmatpush1.msra.mxu0 0.0
    %2916 = vmatprep.subr.mxu0 0.0
    %2917 = vmatpush1.msra.mxu0 %v2452
    %2918 = vmatprep.subr.mxu0 0.0
    %2919 = vmatpush1.msra.mxu0 %v2451
    %2920 = vmatprep.subr.mxu0 0.0
    %2921 = vmatpush2.msra.mxu0 0.0
    %2922 = vmatprep.subr.mxu0 0.0
    %2923 = vmatpush2.msra.mxu0 0.0
    %2924 = vmatprep.subr.mxu0 0.0
    %2925 = vmatpush2.msra.mxu0 0.0
    %2926 = vmatprep.subr.mxu0 0.0
    %2927 = vmatpush2.msra.mxu0 0.0
    %2928 = vmatprep.subr.mxu0 0.0
    %2929 = vmatpush2.msra.mxu0 0.0
    %2930 = vmatprep.subr.mxu0 0.0
    %2931 = vmatpush2.msra.mxu0 0.0
    %2932 = vmatprep.subr.mxu0 0.0
    %2933 = vmatpush2.msra.mxu0 0.0
    %2934 = vmatprep.subr.mxu0 0.0
    %2935 = vmatpush2.msra.mxu0 0.0
    %2936 = vmatprep.subr.mxu0 0.0
    %2937 = vmatpush2.msra.mxu0 0.0
    %2938 = vmatprep.subr.mxu0 0.0
    %2939 = vmatpush2.msra.mxu0 0.0
    %2940 = vmatprep.subr.mxu0 0.0
    %2941 = vmatpush2.msra.mxu0 0.0
    %2942 = vmatprep.subr.mxu0 0.0
    %2943 = vmatpush2.msra.mxu0 0.0
    %2944 = vmatprep.subr.mxu0 0.0
    %2945 = vmatpush2.msra.mxu0 0.0
    %2946 = vmatprep.subr.mxu0 0.0
    %2947 = vmatpush2.msra.mxu0 0.0
    %2948 = vmatprep.subr.mxu0 0.0
    %2949 = vmatpush2.msra.mxu0 0.0
    %2950 = vmatprep.subr.mxu0 0.0
    %2951 = vmatpush2.msra.mxu0 0.0
    %2952 = vmatprep.mubr.f32.mxu0 0.0
    %2953 = vmatmul.mubr.f32.gmra.mxu0 %v2886
    %v2954 = vpop.f32.mrf.mxu0
    %v2955 = vadd.f32 0.0, %v2954
    %v2956 = vpop.f32.mrf.mxu0
    %2957 = vdwg.mxu0
    %v2958 = vadd.f32 %v2447, %v2955
    %v2959 = vxor.u32 %v2958, 2147483648
    %v2960 = vmul.f32 %v2959, 1.442695
    %v2961 = vpow.pop %v2960
    %v2962 = vadd.f32 %v2961, 1.0
    %v2963 = vrcp.pop %v2962
    %v2964 = vmul.f32 1.0, %v2963
    %v2965 = vtanh.pop %v2958
    %v2967 = vrot.slane %v2871, 6
    %v2969 = vmul.f32 %v2964, %v2967
    %2971 = vrot.lane.b32.xlu0 %v2965, 96
    %v2972 = vpop.permute.xlu0 %2971
    %v2974 = vmul.f32 %v2964, %v2972
    %2976 = vrot.lane.b32.xlu0 %v2974, 16
    %v2977 = vpop.permute.xlu0 %2976
    %v2979 = vadd.f32 %v2969, %v2977
    %v2980 = vtanh.pop %v2979
    %2982 = vrot.lane.b32.xlu0 %v2980, 32
    %v2983 = vpop.permute.xlu0 %2982
    %v2985 = vmul.f32 %v2964, %v2983
    %2987 = vrot.lane.b32.xlu0 %v2985, 80
    %v2988 = vpop.permute.xlu0 %2987
    %2990 = vst.msk [vmem:[#allocation3 + $0x8] sm:$0x3] %vm380, %v2988
    %v2991 = vsel %vm181, %v2988, 0
    %2993 = vmatprep.subr.mxu0 0.0
    %2994 = vmatpush1.msra.mxu0 0.0
    %2995 = vmatprep.subr.mxu0 0.0
    %2996 = vmatpush1.msra.mxu0 0.0
    %2997 = vmatprep.subr.mxu0 0.0
    %2998 = vmatpush1.msra.mxu0 0.0
    %2999 = vmatprep.subr.mxu0 0.0
    %3000 = vmatpush1.msra.mxu0 0.0
    %3001 = vmatprep.subr.mxu0 0.0
    %3002 = vmatpush1.msra.mxu0 0.0
    %3003 = vmatprep.subr.mxu0 0.0
    %3004 = vmatpush1.msra.mxu0 0.0
    %3005 = vmatprep.subr.mxu0 0.0
    %3006 = vmatpush1.msra.mxu0 0.0
    %3007 = vmatprep.subr.mxu0 0.0
    %3008 = vmatpush1.msra.mxu0 0.0
    %3009 = vmatprep.subr.mxu0 0.0
    %3010 = vmatpush1.msra.mxu0 0.0
    %3011 = vmatprep.subr.mxu0 0.0
    %3012 = vmatpush1.msra.mxu0 0.0
    %3013 = vmatprep.subr.mxu0 0.0
    %3014 = vmatpush1.msra.mxu0 0.0
    %3015 = vmatprep.subr.mxu0 0.0
    %3016 = vmatpush1.msra.mxu0 0.0
    %3017 = vmatprep.subr.mxu0 0.0
    %3018 = vmatpush1.msra.mxu0 0.0
    %3019 = vmatprep.subr.mxu0 0.0
    %3020 = vmatpush1.msra.mxu0 0.0
    %3021 = vmatprep.subr.mxu0 0.0
    %3022 = vmatpush1.msra.mxu0 %v2452
    %3023 = vmatprep.subr.mxu0 0.0
    %3024 = vmatpush1.msra.mxu0 %v2451
    %3025 = vmatprep.subr.mxu0 0.0
    %3026 = vmatpush2.msra.mxu0 0.0
    %3027 = vmatprep.subr.mxu0 0.0
    %3028 = vmatpush2.msra.mxu0 0.0
    %3029 = vmatprep.subr.mxu0 0.0
    %3030 = vmatpush2.msra.mxu0 0.0
    %3031 = vmatprep.subr.mxu0 0.0
    %3032 = vmatpush2.msra.mxu0 0.0
    %3033 = vmatprep.subr.mxu0 0.0
    %3034 = vmatpush2.msra.mxu0 0.0
    %3035 = vmatprep.subr.mxu0 0.0
    %3036 = vmatpush2.msra.mxu0 0.0
    %3037 = vmatprep.subr.mxu0 0.0
    %3038 = vmatpush2.msra.mxu0 0.0
    %3039 = vmatprep.subr.mxu0 0.0
    %3040 = vmatpush2.msra.mxu0 0.0
    %3041 = vmatprep.subr.mxu0 0.0
    %3042 = vmatpush2.msra.mxu0 0.0
    %3043 = vmatprep.subr.mxu0 0.0
    %3044 = vmatpush2.msra.mxu0 0.0
    %3045 = vmatprep.subr.mxu0 0.0
    %3046 = vmatpush2.msra.mxu0 0.0
    %3047 = vmatprep.subr.mxu0 0.0
    %3048 = vmatpush2.msra.mxu0 0.0
    %3049 = vmatprep.subr.mxu0 0.0
    %3050 = vmatpush2.msra.mxu0 0.0
    %3051 = vmatprep.subr.mxu0 0.0
    %3052 = vmatpush2.msra.mxu0 0.0
    %3053 = vmatprep.subr.mxu0 0.0
    %3054 = vmatpush2.msra.mxu0 0.0
    %3055 = vmatprep.subr.mxu0 0.0
    %3056 = vmatpush2.msra.mxu0 0.0
    %3057 = vmatprep.mubr.f32.mxu0 0.0
    %3058 = vmatmul.mubr.f32.gmra.mxu0 %v2991
    %v3059 = vpop.f32.mrf.mxu0
    %v3060 = vadd.f32 0.0, %v3059
    %v3061 = vpop.f32.mrf.mxu0
    %3062 = vdwg.mxu0
    %v3064 = vrot.slane %v3060, 6
    %v3066 = vadd.f32 %v2447, %v3064
    %v3067 = vxor.u32 %v3066, 2147483648
    %v3068 = vmul.f32 %v3067, 1.442695
    %v3069 = vpow.pop %v3068
    %v3070 = vadd.f32 %v3069, 1.0
    %v3071 = vrcp.pop %v3070
    %v3072 = vmul.f32 1.0, %v3071
    %v3073 = vtanh.pop %v3066
    %v3075 = vrot.slane %v2979, 6
    %v3077 = vmul.f32 %v3072, %v3075
    %3079 = vrot.lane.b32.xlu0 %v3073, 96
    %v3080 = vpop.permute.xlu0 %3079
    %v3082 = vmul.f32 %v3072, %v3080
    %3084 = vrot.lane.b32.xlu0 %v3082, 16
    %v3085 = vpop.permute.xlu0 %3084
    %v3087 = vadd.f32 %v3077, %v3085
    %v3088 = vtanh.pop %v3087
    %3090 = vrot.lane.b32.xlu0 %v3088, 32
    %v3091 = vpop.permute.xlu0 %3090
    %v3093 = vmul.f32 %v3072, %v3091
    %3095 = vrot.lane.b32.xlu0 %v3093, 80
    %v3096 = vpop.permute.xlu0 %3095
    %3098 = vst.msk [vmem:[#allocation3 + $0x8] sm:$0xc] %vm489, %v3096
    %v3099 = vrot.slane %v3093, 2
    %3100 = vrot.lane.b32.xlu0 %v3099, 80
    %v3101 = vpop.permute.xlu0 %3100
    %v3102 = vsel %vm181, %v3101, 0
    %3104 = vmatprep.subr.mxu0 0.0
    %3105 = vmatpush1.msra.mxu0 0.0
    %3106 = vmatprep.subr.mxu0 0.0
    %3107 = vmatpush1.msra.mxu0 0.0
    %3108 = vmatprep.subr.mxu0 0.0
    %3109 = vmatpush1.msra.mxu0 0.0
    %3110 = vmatprep.subr.mxu0 0.0
    %3111 = vmatpush1.msra.mxu0 0.0
    %3112 = vmatprep.subr.mxu0 0.0
    %3113 = vmatpush1.msra.mxu0 0.0
    %3114 = vmatprep.subr.mxu0 0.0
    %3115 = vmatpush1.msra.mxu0 0.0
    %3116 = vmatprep.subr.mxu0 0.0
    %3117 = vmatpush1.msra.mxu0 0.0
    %3118 = vmatprep.subr.mxu0 0.0
    %3119 = vmatpush1.msra.mxu0 0.0
    %3120 = vmatprep.subr.mxu0 0.0
    %3121 = vmatpush1.msra.mxu0 0.0
    %3122 = vmatprep.subr.mxu0 0.0
    %3123 = vmatpush1.msra.mxu0 0.0
    %3124 = vmatprep.subr.mxu0 0.0
    %3125 = vmatpush1.msra.mxu0 0.0
    %3126 = vmatprep.subr.mxu0 0.0
    %3127 = vmatpush1.msra.mxu0 0.0
    %3128 = vmatprep.subr.mxu0 0.0
    %3129 = vmatpush1.msra.mxu0 0.0
    %3130 = vmatprep.subr.mxu0 0.0
    %3131 = vmatpush1.msra.mxu0 0.0
    %3132 = vmatprep.subr.mxu0 0.0
    %3133 = vmatpush1.msra.mxu0 %v2452
    %3134 = vmatprep.subr.mxu0 0.0
    %3135 = vmatpush1.msra.mxu0 %v2451
    %3136 = vmatprep.subr.mxu0 0.0
    %3137 = vmatpush2.msra.mxu0 0.0
    %3138 = vmatprep.subr.mxu0 0.0
    %3139 = vmatpush2.msra.mxu0 0.0
    %3140 = vmatprep.subr.mxu0 0.0
    %3141 = vmatpush2.msra.mxu0 0.0
    %3142 = vmatprep.subr.mxu0 0.0
    %3143 = vmatpush2.msra.mxu0 0.0
    %3144 = vmatprep.subr.mxu0 0.0
    %3145 = vmatpush2.msra.mxu0 0.0
    %3146 = vmatprep.subr.mxu0 0.0
    %3147 = vmatpush2.msra.mxu0 0.0
    %3148 = vmatprep.subr.mxu0 0.0
    %3149 = vmatpush2.msra.mxu0 0.0
    %3150 = vmatprep.subr.mxu0 0.0
    %3151 = vmatpush2.msra.mxu0 0.0
    %3152 = vmatprep.subr.mxu0 0.0
    %3153 = vmatpush2.msra.mxu0 0.0
    %3154 = vmatprep.subr.mxu0 0.0
    %3155 = vmatpush2.msra.mxu0 0.0
    %3156 = vmatprep.subr.mxu0 0.0
    %3157 = vmatpush2.msra.mxu0 0.0
    %3158 = vmatprep.subr.mxu0 0.0
    %3159 = vmatpush2.msra.mxu0 0.0
    %3160 = vmatprep.subr.mxu0 0.0
    %3161 = vmatpush2.msra.mxu0 0.0
    %3162 = vmatprep.subr.mxu0 0.0
    %3163 = vmatpush2.msra.mxu0 0.0
    %3164 = vmatprep.subr.mxu0 0.0
    %3165 = vmatpush2.msra.mxu0 0.0
    %3166 = vmatprep.subr.mxu0 0.0
    %3167 = vmatpush2.msra.mxu0 0.0
    %3168 = vmatprep.mubr.f32.mxu0 0.0
    %3169 = vmatmul.mubr.f32.gmra.mxu0 %v3102
    %v3170 = vpop.f32.mrf.mxu0
    %v3171 = vadd.f32 0.0, %v3170
    %v3172 = vpop.f32.mrf.mxu0
    %3173 = vdwg.mxu0
    %v3175 = vrot.slane %v3171, 4
    %v3177 = vadd.f32 %v2447, %v3175
    %v3178 = vxor.u32 %v3177, 2147483648
    %v3179 = vmul.f32 %v3178, 1.442695
    %v3180 = vpow.pop %v3179
    %v3181 = vadd.f32 %v3180, 1.0
    %v3182 = vrcp.pop %v3181
    %v3183 = vmul.f32 1.0, %v3182
    %v3184 = vtanh.pop %v3177
    %v3186 = vrot.slane %v3087, 6
    %v3188 = vmul.f32 %v3183, %v3186
    %3190 = vrot.lane.b32.xlu0 %v3184, 96
    %v3191 = vpop.permute.xlu0 %3190
    %v3193 = vmul.f32 %v3183, %v3191
    %3195 = vrot.lane.b32.xlu0 %v3193, 16
    %v3196 = vpop.permute.xlu0 %3195
    %v3198 = vadd.f32 %v3188, %v3196
    %v3199 = vtanh.pop %v3198
    %3201 = vrot.lane.b32.xlu0 %v3199, 32
    %v3202 = vpop.permute.xlu0 %3201
    %v3204 = vmul.f32 %v3183, %v3202
    %3206 = vrot.lane.b32.xlu0 %v3204, 80
    %v3207 = vpop.permute.xlu0 %3206
    %3209 = vst.msk [vmem:[#allocation3 + $0x8] sm:$0x30] %vm601, %v3207
    %v3210 = vrot.slane %v3204, 4
    %3211 = vrot.lane.b32.xlu0 %v3210, 80
    %v3212 = vpop.permute.xlu0 %3211
    %v3213 = vsel %vm181, %v3212, 0
    %3215 = vmatprep.subr.mxu0 0.0
    %3216 = vmatpush1.msra.mxu0 0.0
    %3217 = vmatprep.subr.mxu0 0.0
    %3218 = vmatpush1.msra.mxu0 0.0
    %3219 = vmatprep.subr.mxu0 0.0
    %3220 = vmatpush1.msra.mxu0 0.0
    %3221 = vmatprep.subr.mxu0 0.0
    %3222 = vmatpush1.msra.mxu0 0.0
    %3223 = vmatprep.subr.mxu0 0.0
    %3224 = vmatpush1.msra.mxu0 0.0
    %3225 = vmatprep.subr.mxu0 0.0
    %3226 = vmatpush1.msra.mxu0 0.0
    %3227 = vmatprep.subr.mxu0 0.0
    %3228 = vmatpush1.msra.mxu0 0.0
    %3229 = vmatprep.subr.mxu0 0.0
    %3230 = vmatpush1.msra.mxu0 0.0
    %3231 = vmatprep.subr.mxu0 0.0
    %3232 = vmatpush1.msra.mxu0 0.0
    %3233 = vmatprep.subr.mxu0 0.0
    %3234 = vmatpush1.msra.mxu0 0.0
    %3235 = vmatprep.subr.mxu0 0.0
    %3236 = vmatpush1.msra.mxu0 0.0
    %3237 = vmatprep.subr.mxu0 0.0
    %3238 = vmatpush1.msra.mxu0 0.0
    %3239 = vmatprep.subr.mxu0 0.0
    %3240 = vmatpush1.msra.mxu0 0.0
    %3241 = vmatprep.subr.mxu0 0.0
    %3242 = vmatpush1.msra.mxu0 0.0
    %3243 = vmatprep.subr.mxu0 0.0
    %3244 = vmatpush1.msra.mxu0 %v2452
    %3245 = vmatprep.subr.mxu0 0.0
    %3246 = vmatpush1.msra.mxu0 %v2451
    %3247 = vmatprep.subr.mxu0 0.0
    %3248 = vmatpush2.msra.mxu0 0.0
    %3249 = vmatprep.subr.mxu0 0.0
    %3250 = vmatpush2.msra.mxu0 0.0
    %3251 = vmatprep.subr.mxu0 0.0
    %3252 = vmatpush2.msra.mxu0 0.0
    %3253 = vmatprep.subr.mxu0 0.0
    %3254 = vmatpush2.msra.mxu0 0.0
    %3255 = vmatprep.subr.mxu0 0.0
    %3256 = vmatpush2.msra.mxu0 0.0
    %3257 = vmatprep.subr.mxu0 0.0
    %3258 = vmatpush2.msra.mxu0 0.0
    %3259 = vmatprep.subr.mxu0 0.0
    %3260 = vmatpush2.msra.mxu0 0.0
    %3261 = vmatprep.subr.mxu0 0.0
    %3262 = vmatpush2.msra.mxu0 0.0
    %3263 = vmatprep.subr.mxu0 0.0
    %3264 = vmatpush2.msra.mxu0 0.0
    %3265 = vmatprep.subr.mxu0 0.0
    %3266 = vmatpush2.msra.mxu0 0.0
    %3267 = vmatprep.subr.mxu0 0.0
    %3268 = vmatpush2.msra.mxu0 0.0
    %3269 = vmatprep.subr.mxu0 0.0
    %3270 = vmatpush2.msra.mxu0 0.0
    %3271 = vmatprep.subr.mxu0 0.0
    %3272 = vmatpush2.msra.mxu0 0.0
    %3273 = vmatprep.subr.mxu0 0.0
    %3274 = vmatpush2.msra.mxu0 0.0
    %3275 = vmatprep.subr.mxu0 0.0
    %3276 = vmatpush2.msra.mxu0 0.0
    %3277 = vmatprep.subr.mxu0 0.0
    %3278 = vmatpush2.msra.mxu0 0.0
    %3279 = vmatprep.mubr.f32.mxu0 0.0
    %3280 = vmatmul.mubr.f32.gmra.mxu0 %v3213
    %v3281 = vpop.f32.mrf.mxu0
    %v3282 = vadd.f32 0.0, %v3281
    %v3283 = vpop.f32.mrf.mxu0
    %3284 = vdwg.mxu0
    %v3286 = vrot.slane %v3282, 2
    %v3288 = vadd.f32 %v2447, %v3286
    %v3289 = vxor.u32 %v3288, 2147483648
    %v3290 = vmul.f32 %v3289, 1.442695
    %v3291 = vpow.pop %v3290
    %v3292 = vadd.f32 %v3291, 1.0
    %v3293 = vrcp.pop %v3292
    %v3294 = vmul.f32 1.0, %v3293
    %v3295 = vtanh.pop %v3288
    %v3297 = vrot.slane %v3198, 6
    %v3299 = vmul.f32 %v3294, %v3297
    %3301 = vrot.lane.b32.xlu0 %v3295, 96
    %v3302 = vpop.permute.xlu0 %3301
    %v3304 = vmul.f32 %v3294, %v3302
    %3306 = vrot.lane.b32.xlu0 %v3304, 16
    %v3307 = vpop.permute.xlu0 %3306
    %v3309 = vadd.f32 %v3299, %v3307
    %v3310 = vtanh.pop %v3309
    %3312 = vrot.lane.b32.xlu0 %v3310, 32
    %v3313 = vpop.permute.xlu0 %3312
    %v3315 = vmul.f32 %v3294, %v3313
    %3317 = vrot.lane.b32.xlu0 %v3315, 80
    %v3318 = vpop.permute.xlu0 %3317
    %3320 = vst.msk [vmem:[#allocation3 + $0x8] sm:$0xc0] %vm713, %v3318
    %v3321 = vld [vmem:[#allocation3] sm:$0xff]
    %v3322 = vld [vmem:[#allocation3 + $0x8] sm:$0xff]
    %s3323 = scalar_lea.vmem %s2, 48
    %v3324 = vld [vmem:[%s3323] sm:$0xff]
    %v3325 = vld [vmem:[%s3323 + $0x8] sm:$0xff]
    %s3326 = scalar_lea.vmem [#allocation6], 3
    %v3327 = vld [vmem:[%s3326] sm:$0x1]
    %v3329 = vlaneseq
    %v3330 = vshrl.u32 %v3329, 7
    %v3331 = vsub.s32 0, %v3330
    %v3332 = vrot.slane %v3327, %v3331
    %v3335 = vsel %vm181, %v3321, 0
    %v3338 = vsel %vm181, %v3322, 0
    %3340 = vmatprep.subr.mxu0 0.0
    %3341 = vmatpush1.msra.mxu0 0.0
    %3342 = vmatprep.subr.mxu0 0.0
    %3343 = vmatpush1.msra.mxu0 0.0
    %3344 = vmatprep.subr.mxu0 0.0
    %3345 = vmatpush1.msra.mxu0 0.0
    %3346 = vmatprep.subr.mxu0 0.0
    %3347 = vmatpush1.msra.mxu0 0.0
    %3348 = vmatprep.subr.mxu0 0.0
    %3349 = vmatpush1.msra.mxu0 0.0
    %3350 = vmatprep.subr.mxu0 0.0
    %3351 = vmatpush1.msra.mxu0 0.0
    %3352 = vmatprep.subr.mxu0 0.0
    %3353 = vmatpush1.msra.mxu0 0.0
    %3354 = vmatprep.subr.mxu0 0.0
    %3355 = vmatpush1.msra.mxu0 0.0
    %3356 = vmatprep.subr.mxu0 0.0
    %3357 = vmatpush1.msra.mxu0 0.0
    %3358 = vmatprep.subr.mxu0 0.0
    %3359 = vmatpush1.msra.mxu0 0.0
    %3360 = vmatprep.subr.mxu0 0.0
    %3361 = vmatpush1.msra.mxu0 0.0
    %3362 = vmatprep.subr.mxu0 0.0
    %3363 = vmatpush1.msra.mxu0 0.0
    %3364 = vmatprep.subr.mxu0 0.0
    %3365 = vmatpush1.msra.mxu0 0.0
    %3366 = vmatprep.subr.mxu0 0.0
    %3367 = vmatpush1.msra.mxu0 0.0
    %3368 = vmatprep.subr.mxu0 0.0
    %3369 = vmatpush1.msra.mxu0 %v3325
    %3370 = vmatprep.subr.mxu0 0.0
    %3371 = vmatpush1.msra.mxu0 %v3324
    %3372 = vmatprep.subr.mxu0 0.0
    %3373 = vmatpush2.msra.mxu0 0.0
    %3374 = vmatprep.subr.mxu0 0.0
    %3375 = vmatpush2.msra.mxu0 0.0
    %3376 = vmatprep.subr.mxu0 0.0
    %3377 = vmatpush2.msra.mxu0 0.0
    %3378 = vmatprep.subr.mxu0 0.0
    %3379 = vmatpush2.msra.mxu0 0.0
    %3380 = vmatprep.subr.mxu0 0.0
    %3381 = vmatpush2.msra.mxu0 0.0
    %3382 = vmatprep.subr.mxu0 0.0
    %3383 = vmatpush2.msra.mxu0 0.0
    %3384 = vmatprep.subr.mxu0 0.0
    %3385 = vmatpush2.msra.mxu0 0.0
    %3386 = vmatprep.subr.mxu0 0.0
    %3387 = vmatpush2.msra.mxu0 0.0
    %3388 = vmatprep.subr.mxu0 0.0
    %3389 = vmatpush2.msra.mxu0 0.0
    %3390 = vmatprep.subr.mxu0 0.0
    %3391 = vmatpush2.msra.mxu0 0.0
    %3392 = vmatprep.subr.mxu0 0.0
    %3393 = vmatpush2.msra.mxu0 0.0
    %3394 = vmatprep.subr.mxu0 0.0
    %3395 = vmatpush2.msra.mxu0 0.0
    %3396 = vmatprep.subr.mxu0 0.0
    %3397 = vmatpush2.msra.mxu0 0.0
    %3398 = vmatprep.subr.mxu0 0.0
    %3399 = vmatpush2.msra.mxu0 0.0
    %3400 = vmatprep.subr.mxu0 0.0
    %3401 = vmatpush2.msra.mxu0 0.0
    %3402 = vmatprep.subr.mxu0 0.0
    %3403 = vmatpush2.msra.mxu0 0.0
    %3404 = vmatprep.mubr.f32.mxu0 0.0
    %3405 = vmatmul.mubr.f32.gmra.mxu0 %v3335
    %v3406 = vpop.f32.mrf.mxu0
    %v3407 = vadd.f32 %v3332, %v3406
    %v3408 = vpop.f32.mrf.mxu0
    %3409 = vmatprep.mubr.f32.mxu0 0.0
    %3410 = vmatmul.mubr.f32.gmra.mxu0 %v3338
    %v3411 = vpop.f32.mrf.mxu0
    %v3412 = vadd.f32 %v3332, %v3411
    %v3413 = vpop.f32.mrf.mxu0
    %3414 = vdwg.mxu0
    %s3415 = scalar_lea.vmem %s3, 48
    %v3416 = vld [vmem:[%s3415] sm:$0xff]
    %v3417 = vld [vmem:[%s3415 + $0x8] sm:$0xff]
    %3418 = vmatprep.subr.mxu0 0.0
    %3419 = vmatpush1.msra.mxu0 0.0
    %3420 = vmatprep.subr.mxu0 0.0
    %3421 = vmatpush1.msra.mxu0 0.0
    %3422 = vmatprep.subr.mxu0 0.0
    %3423 = vmatpush1.msra.mxu0 0.0
    %3424 = vmatprep.subr.mxu0 0.0
    %3425 = vmatpush1.msra.mxu0 0.0
    %3426 = vmatprep.subr.mxu0 0.0
    %3427 = vmatpush1.msra.mxu0 0.0
    %3428 = vmatprep.subr.mxu0 0.0
    %3429 = vmatpush1.msra.mxu0 0.0
    %3430 = vmatprep.subr.mxu0 0.0
    %3431 = vmatpush1.msra.mxu0 0.0
    %3432 = vmatprep.subr.mxu0 0.0
    %3433 = vmatpush1.msra.mxu0 0.0
    %3434 = vmatprep.subr.mxu0 0.0
    %3435 = vmatpush1.msra.mxu0 0.0
    %3436 = vmatprep.subr.mxu0 0.0
    %3437 = vmatpush1.msra.mxu0 0.0
    %3438 = vmatprep.subr.mxu0 0.0
    %3439 = vmatpush1.msra.mxu0 0.0
    %3440 = vmatprep.subr.mxu0 0.0
    %3441 = vmatpush1.msra.mxu0 0.0
    %3442 = vmatprep.subr.mxu0 0.0
    %3443 = vmatpush1.msra.mxu0 0.0
    %3444 = vmatprep.subr.mxu0 0.0
    %3445 = vmatpush1.msra.mxu0 0.0
    %3446 = vmatprep.subr.mxu0 0.0
    %3447 = vmatpush1.msra.mxu0 %v3417
    %3448 = vmatprep.subr.mxu0 0.0
    %3449 = vmatpush1.msra.mxu0 %v3416
    %3450 = vmatprep.subr.mxu0 0.0
    %3451 = vmatpush2.msra.mxu0 0.0
    %3452 = vmatprep.subr.mxu0 0.0
    %3453 = vmatpush2.msra.mxu0 0.0
    %3454 = vmatprep.subr.mxu0 0.0
    %3455 = vmatpush2.msra.mxu0 0.0
    %3456 = vmatprep.subr.mxu0 0.0
    %3457 = vmatpush2.msra.mxu0 0.0
    %3458 = vmatprep.subr.mxu0 0.0
    %3459 = vmatpush2.msra.mxu0 0.0
    %3460 = vmatprep.subr.mxu0 0.0
    %3461 = vmatpush2.msra.mxu0 0.0
    %3462 = vmatprep.subr.mxu0 0.0
    %3463 = vmatpush2.msra.mxu0 0.0
    %3464 = vmatprep.subr.mxu0 0.0
    %3465 = vmatpush2.msra.mxu0 0.0
    %3466 = vmatprep.subr.mxu0 0.0
    %3467 = vmatpush2.msra.mxu0 0.0
    %3468 = vmatprep.subr.mxu0 0.0
    %3469 = vmatpush2.msra.mxu0 0.0
    %3470 = vmatprep.subr.mxu0 0.0
    %3471 = vmatpush2.msra.mxu0 0.0
    %3472 = vmatprep.subr.mxu0 0.0
    %3473 = vmatpush2.msra.mxu0 0.0
    %3474 = vmatprep.subr.mxu0 0.0
    %3475 = vmatpush2.msra.mxu0 0.0
    %3476 = vmatprep.subr.mxu0 0.0
    %3477 = vmatpush2.msra.mxu0 0.0
    %3478 = vmatprep.subr.mxu0 0.0
    %3479 = vmatpush2.msra.mxu0 0.0
    %3480 = vmatprep.subr.mxu0 0.0
    %3481 = vmatpush2.msra.mxu0 0.0
    %3482 = vmatprep.mubr.f32.mxu0 0.0
    %3483 = vmatmul.mubr.f32.gmra.mxu0 %v279
    %v3484 = vpop.f32.mrf.mxu0
    %v3485 = vadd.f32 0.0, %v3484
    %v3486 = vpop.f32.mrf.mxu0
    %3487 = vdwg.mxu0
    %v3488 = vadd.f32 %v3407, %v3485
    %v3489 = vxor.u32 %v3488, 2147483648
    %v3490 = vmul.f32 %v3489, 1.442695
    %v3491 = vpow.pop %v3490
    %v3492 = vadd.f32 %v3491, 1.0
    %v3493 = vrcp.pop %v3492
    %v3494 = vmul.f32 1.0, %v3493
    %v3495 = vtanh.pop %v3488
    %v3496 = vmul.f32 %v3494, 0.0
    %3498 = vrot.lane.b32.xlu0 %v3495, 96
    %v3499 = vpop.permute.xlu0 %3498
    %v3501 = vmul.f32 %v3494, %v3499
    %3503 = vrot.lane.b32.xlu0 %v3501, 16
    %v3504 = vpop.permute.xlu0 %3503
    %v3506 = vadd.f32 %v3496, %v3504
    %v3507 = vtanh.pop %v3506
    %3509 = vrot.lane.b32.xlu0 %v3507, 32
    %v3510 = vpop.permute.xlu0 %3509
    %v3512 = vmul.f32 %v3494, %v3510
    %3514 = vrot.lane.b32.xlu0 %v3512, 80
    %v3515 = vpop.permute.xlu0 %3514
    %3517 = vst.msk [vmem:[#allocation2] sm:$0x3] %vm380, %v3515
    %v3518 = vsel %vm181, %v3515, 0
    %3520 = vmatprep.subr.mxu0 0.0
    %3521 = vmatpush1.msra.mxu0 0.0
    %3522 = vmatprep.subr.mxu0 0.0
    %3523 = vmatpush1.msra.mxu0 0.0
    %3524 = vmatprep.subr.mxu0 0.0
    %3525 = vmatpush1.msra.mxu0 0.0
    %3526 = vmatprep.subr.mxu0 0.0
    %3527 = vmatpush1.msra.mxu0 0.0
    %3528 = vmatprep.subr.mxu0 0.0
    %3529 = vmatpush1.msra.mxu0 0.0
    %3530 = vmatprep.subr.mxu0 0.0
    %3531 = vmatpush1.msra.mxu0 0.0
    %3532 = vmatprep.subr.mxu0 0.0
    %3533 = vmatpush1.msra.mxu0 0.0
    %3534 = vmatprep.subr.mxu0 0.0
    %3535 = vmatpush1.msra.mxu0 0.0
    %3536 = vmatprep.subr.mxu0 0.0
    %3537 = vmatpush1.msra.mxu0 0.0
    %3538 = vmatprep.subr.mxu0 0.0
    %3539 = vmatpush1.msra.mxu0 0.0
    %3540 = vmatprep.subr.mxu0 0.0
    %3541 = vmatpush1.msra.mxu0 0.0
    %3542 = vmatprep.subr.mxu0 0.0
    %3543 = vmatpush1.msra.mxu0 0.0
    %3544 = vmatprep.subr.mxu0 0.0
    %3545 = vmatpush1.msra.mxu0 0.0
    %3546 = vmatprep.subr.mxu0 0.0
    %3547 = vmatpush1.msra.mxu0 0.0
    %3548 = vmatprep.subr.mxu0 0.0
    %3549 = vmatpush1.msra.mxu0 %v3417
    %3550 = vmatprep.subr.mxu0 0.0
    %3551 = vmatpush1.msra.mxu0 %v3416
    %3552 = vmatprep.subr.mxu0 0.0
    %3553 = vmatpush2.msra.mxu0 0.0
    %3554 = vmatprep.subr.mxu0 0.0
    %3555 = vmatpush2.msra.mxu0 0.0
    %3556 = vmatprep.subr.mxu0 0.0
    %3557 = vmatpush2.msra.mxu0 0.0
    %3558 = vmatprep.subr.mxu0 0.0
    %3559 = vmatpush2.msra.mxu0 0.0
    %3560 = vmatprep.subr.mxu0 0.0
    %3561 = vmatpush2.msra.mxu0 0.0
    %3562 = vmatprep.subr.mxu0 0.0
    %3563 = vmatpush2.msra.mxu0 0.0
    %3564 = vmatprep.subr.mxu0 0.0
    %3565 = vmatpush2.msra.mxu0 0.0
    %3566 = vmatprep.subr.mxu0 0.0
    %3567 = vmatpush2.msra.mxu0 0.0
    %3568 = vmatprep.subr.mxu0 0.0
    %3569 = vmatpush2.msra.mxu0 0.0
    %3570 = vmatprep.subr.mxu0 0.0
    %3571 = vmatpush2.msra.mxu0 0.0
    %3572 = vmatprep.subr.mxu0 0.0
    %3573 = vmatpush2.msra.mxu0 0.0
    %3574 = vmatprep.subr.mxu0 0.0
    %3575 = vmatpush2.msra.mxu0 0.0
    %3576 = vmatprep.subr.mxu0 0.0
    %3577 = vmatpush2.msra.mxu0 0.0
    %3578 = vmatprep.subr.mxu0 0.0
    %3579 = vmatpush2.msra.mxu0 0.0
    %3580 = vmatprep.subr.mxu0 0.0
    %3581 = vmatpush2.msra.mxu0 0.0
    %3582 = vmatprep.subr.mxu0 0.0
    %3583 = vmatpush2.msra.mxu0 0.0
    %3584 = vmatprep.mubr.f32.mxu0 0.0
    %3585 = vmatmul.mubr.f32.gmra.mxu0 %v3518
    %v3586 = vpop.f32.mrf.mxu0
    %v3587 = vadd.f32 0.0, %v3586
    %v3588 = vpop.f32.mrf.mxu0
    %3589 = vdwg.mxu0
    %v3591 = vrot.slane %v3587, 6
    %v3593 = vadd.f32 %v3407, %v3591
    %v3594 = vxor.u32 %v3593, 2147483648
    %v3595 = vmul.f32 %v3594, 1.442695
    %v3596 = vpow.pop %v3595
    %v3597 = vadd.f32 %v3596, 1.0
    %v3598 = vrcp.pop %v3597
    %v3599 = vmul.f32 1.0, %v3598
    %v3600 = vtanh.pop %v3593
    %v3602 = vrot.slane %v3506, 6
    %v3604 = vmul.f32 %v3599, %v3602
    %3606 = vrot.lane.b32.xlu0 %v3600, 96
    %v3607 = vpop.permute.xlu0 %3606
    %v3609 = vmul.f32 %v3599, %v3607
    %3611 = vrot.lane.b32.xlu0 %v3609, 16
    %v3612 = vpop.permute.xlu0 %3611
    %v3614 = vadd.f32 %v3604, %v3612
    %v3615 = vtanh.pop %v3614
    %3617 = vrot.lane.b32.xlu0 %v3615, 32
    %v3618 = vpop.permute.xlu0 %3617
    %v3620 = vmul.f32 %v3599, %v3618
    %3622 = vrot.lane.b32.xlu0 %v3620, 80
    %v3623 = vpop.permute.xlu0 %3622
    %3625 = vst.msk [vmem:[#allocation2] sm:$0xc] %vm489, %v3623
    %v3626 = vrot.slane %v3620, 2
    %3627 = vrot.lane.b32.xlu0 %v3626, 80
    %v3628 = vpop.permute.xlu0 %3627
    %v3629 = vsel %vm181, %v3628, 0
    %3631 = vmatprep.subr.mxu0 0.0
    %3632 = vmatpush1.msra.mxu0 0.0
    %3633 = vmatprep.subr.mxu0 0.0
    %3634 = vmatpush1.msra.mxu0 0.0
    %3635 = vmatprep.subr.mxu0 0.0
    %3636 = vmatpush1.msra.mxu0 0.0
    %3637 = vmatprep.subr.mxu0 0.0
    %3638 = vmatpush1.msra.mxu0 0.0
    %3639 = vmatprep.subr.mxu0 0.0
    %3640 = vmatpush1.msra.mxu0 0.0
    %3641 = vmatprep.subr.mxu0 0.0
    %3642 = vmatpush1.msra.mxu0 0.0
    %3643 = vmatprep.subr.mxu0 0.0
    %3644 = vmatpush1.msra.mxu0 0.0
    %3645 = vmatprep.subr.mxu0 0.0
    %3646 = vmatpush1.msra.mxu0 0.0
    %3647 = vmatprep.subr.mxu0 0.0
    %3648 = vmatpush1.msra.mxu0 0.0
    %3649 = vmatprep.subr.mxu0 0.0
    %3650 = vmatpush1.msra.mxu0 0.0
    %3651 = vmatprep.subr.mxu0 0.0
    %3652 = vmatpush1.msra.mxu0 0.0
    %3653 = vmatprep.subr.mxu0 0.0
    %3654 = vmatpush1.msra.mxu0 0.0
    %3655 = vmatprep.subr.mxu0 0.0
    %3656 = vmatpush1.msra.mxu0 0.0
    %3657 = vmatprep.subr.mxu0 0.0
    %3658 = vmatpush1.msra.mxu0 0.0
    %3659 = vmatprep.subr.mxu0 0.0
    %3660 = vmatpush1.msra.mxu0 %v3417
    %3661 = vmatprep.subr.mxu0 0.0
    %3662 = vmatpush1.msra.mxu0 %v3416
    %3663 = vmatprep.subr.mxu0 0.0
    %3664 = vmatpush2.msra.mxu0 0.0
    %3665 = vmatprep.subr.mxu0 0.0
    %3666 = vmatpush2.msra.mxu0 0.0
    %3667 = vmatprep.subr.mxu0 0.0
    %3668 = vmatpush2.msra.mxu0 0.0
    %3669 = vmatprep.subr.mxu0 0.0
    %3670 = vmatpush2.msra.mxu0 0.0
    %3671 = vmatprep.subr.mxu0 0.0
    %3672 = vmatpush2.msra.mxu0 0.0
    %3673 = vmatprep.subr.mxu0 0.0
    %3674 = vmatpush2.msra.mxu0 0.0
    %3675 = vmatprep.subr.mxu0 0.0
    %3676 = vmatpush2.msra.mxu0 0.0
    %3677 = vmatprep.subr.mxu0 0.0
    %3678 = vmatpush2.msra.mxu0 0.0
    %3679 = vmatprep.subr.mxu0 0.0
    %3680 = vmatpush2.msra.mxu0 0.0
    %3681 = vmatprep.subr.mxu0 0.0
    %3682 = vmatpush2.msra.mxu0 0.0
    %3683 = vmatprep.subr.mxu0 0.0
    %3684 = vmatpush2.msra.mxu0 0.0
    %3685 = vmatprep.subr.mxu0 0.0
    %3686 = vmatpush2.msra.mxu0 0.0
    %3687 = vmatprep.subr.mxu0 0.0
    %3688 = vmatpush2.msra.mxu0 0.0
    %3689 = vmatprep.subr.mxu0 0.0
    %3690 = vmatpush2.msra.mxu0 0.0
    %3691 = vmatprep.subr.mxu0 0.0
    %3692 = vmatpush2.msra.mxu0 0.0
    %3693 = vmatprep.subr.mxu0 0.0
    %3694 = vmatpush2.msra.mxu0 0.0
    %3695 = vmatprep.mubr.f32.mxu0 0.0
    %3696 = vmatmul.mubr.f32.gmra.mxu0 %v3629
    %v3697 = vpop.f32.mrf.mxu0
    %v3698 = vadd.f32 0.0, %v3697
    %v3699 = vpop.f32.mrf.mxu0
    %3700 = vdwg.mxu0
    %v3702 = vrot.slane %v3698, 4
    %v3704 = vadd.f32 %v3407, %v3702
    %v3705 = vxor.u32 %v3704, 2147483648
    %v3706 = vmul.f32 %v3705, 1.442695
    %v3707 = vpow.pop %v3706
    %v3708 = vadd.f32 %v3707, 1.0
    %v3709 = vrcp.pop %v3708
    %v3710 = vmul.f32 1.0, %v3709
    %v3711 = vtanh.pop %v3704
    %v3713 = vrot.slane %v3614, 6
    %v3715 = vmul.f32 %v3710, %v3713
    %3717 = vrot.lane.b32.xlu0 %v3711, 96
    %v3718 = vpop.permute.xlu0 %3717
    %v3720 = vmul.f32 %v3710, %v3718
    %3722 = vrot.lane.b32.xlu0 %v3720, 16
    %v3723 = vpop.permute.xlu0 %3722
    %v3725 = vadd.f32 %v3715, %v3723
    %v3726 = vtanh.pop %v3725
    %3728 = vrot.lane.b32.xlu0 %v3726, 32
    %v3729 = vpop.permute.xlu0 %3728
    %v3731 = vmul.f32 %v3710, %v3729
    %3733 = vrot.lane.b32.xlu0 %v3731, 80
    %v3734 = vpop.permute.xlu0 %3733
    %3736 = vst.msk [vmem:[#allocation2] sm:$0x30] %vm601, %v3734
    %v3737 = vrot.slane %v3731, 4
    %3738 = vrot.lane.b32.xlu0 %v3737, 80
    %v3739 = vpop.permute.xlu0 %3738
    %v3740 = vsel %vm181, %v3739, 0
    %3742 = vmatprep.subr.mxu0 0.0
    %3743 = vmatpush1.msra.mxu0 0.0
    %3744 = vmatprep.subr.mxu0 0.0
    %3745 = vmatpush1.msra.mxu0 0.0
    %3746 = vmatprep.subr.mxu0 0.0
    %3747 = vmatpush1.msra.mxu0 0.0
    %3748 = vmatprep.subr.mxu0 0.0
    %3749 = vmatpush1.msra.mxu0 0.0
    %3750 = vmatprep.subr.mxu0 0.0
    %3751 = vmatpush1.msra.mxu0 0.0
    %3752 = vmatprep.subr.mxu0 0.0
    %3753 = vmatpush1.msra.mxu0 0.0
    %3754 = vmatprep.subr.mxu0 0.0
    %3755 = vmatpush1.msra.mxu0 0.0
    %3756 = vmatprep.subr.mxu0 0.0
    %3757 = vmatpush1.msra.mxu0 0.0
    %3758 = vmatprep.subr.mxu0 0.0
    %3759 = vmatpush1.msra.mxu0 0.0
    %3760 = vmatprep.subr.mxu0 0.0
    %3761 = vmatpush1.msra.mxu0 0.0
    %3762 = vmatprep.subr.mxu0 0.0
    %3763 = vmatpush1.msra.mxu0 0.0
    %3764 = vmatprep.subr.mxu0 0.0
    %3765 = vmatpush1.msra.mxu0 0.0
    %3766 = vmatprep.subr.mxu0 0.0
    %3767 = vmatpush1.msra.mxu0 0.0
    %3768 = vmatprep.subr.mxu0 0.0
    %3769 = vmatpush1.msra.mxu0 0.0
    %3770 = vmatprep.subr.mxu0 0.0
    %3771 = vmatpush1.msra.mxu0 %v3417
    %3772 = vmatprep.subr.mxu0 0.0
    %3773 = vmatpush1.msra.mxu0 %v3416
    %3774 = vmatprep.subr.mxu0 0.0
    %3775 = vmatpush2.msra.mxu0 0.0
    %3776 = vmatprep.subr.mxu0 0.0
    %3777 = vmatpush2.msra.mxu0 0.0
    %3778 = vmatprep.subr.mxu0 0.0
    %3779 = vmatpush2.msra.mxu0 0.0
    %3780 = vmatprep.subr.mxu0 0.0
    %3781 = vmatpush2.msra.mxu0 0.0
    %3782 = vmatprep.subr.mxu0 0.0
    %3783 = vmatpush2.msra.mxu0 0.0
    %3784 = vmatprep.subr.mxu0 0.0
    %3785 = vmatpush2.msra.mxu0 0.0
    %3786 = vmatprep.subr.mxu0 0.0
    %3787 = vmatpush2.msra.mxu0 0.0
    %3788 = vmatprep.subr.mxu0 0.0
    %3789 = vmatpush2.msra.mxu0 0.0
    %3790 = vmatprep.subr.mxu0 0.0
    %3791 = vmatpush2.msra.mxu0 0.0
    %3792 = vmatprep.subr.mxu0 0.0
    %3793 = vmatpush2.msra.mxu0 0.0
    %3794 = vmatprep.subr.mxu0 0.0
    %3795 = vmatpush2.msra.mxu0 0.0
    %3796 = vmatprep.subr.mxu0 0.0
    %3797 = vmatpush2.msra.mxu0 0.0
    %3798 = vmatprep.subr.mxu0 0.0
    %3799 = vmatpush2.msra.mxu0 0.0
    %3800 = vmatprep.subr.mxu0 0.0
    %3801 = vmatpush2.msra.mxu0 0.0
    %3802 = vmatprep.subr.mxu0 0.0
    %3803 = vmatpush2.msra.mxu0 0.0
    %3804 = vmatprep.subr.mxu0 0.0
    %3805 = vmatpush2.msra.mxu0 0.0
    %3806 = vmatprep.mubr.f32.mxu0 0.0
    %3807 = vmatmul.mubr.f32.gmra.mxu0 %v3740
    %v3808 = vpop.f32.mrf.mxu0
    %v3809 = vadd.f32 0.0, %v3808
    %v3810 = vpop.f32.mrf.mxu0
    %3811 = vdwg.mxu0
    %v3813 = vrot.slane %v3809, 2
    %v3815 = vadd.f32 %v3407, %v3813
    %v3816 = vxor.u32 %v3815, 2147483648
    %v3817 = vmul.f32 %v3816, 1.442695
    %v3818 = vpow.pop %v3817
    %v3819 = vadd.f32 %v3818, 1.0
    %v3820 = vrcp.pop %v3819
    %v3821 = vmul.f32 1.0, %v3820
    %v3822 = vtanh.pop %v3815
    %v3824 = vrot.slane %v3725, 6
    %v3826 = vmul.f32 %v3821, %v3824
    %3828 = vrot.lane.b32.xlu0 %v3822, 96
    %v3829 = vpop.permute.xlu0 %3828
    %v3831 = vmul.f32 %v3821, %v3829
    %3833 = vrot.lane.b32.xlu0 %v3831, 16
    %v3834 = vpop.permute.xlu0 %3833
    %v3836 = vadd.f32 %v3826, %v3834
    %v3837 = vtanh.pop %v3836
    %3839 = vrot.lane.b32.xlu0 %v3837, 32
    %v3840 = vpop.permute.xlu0 %3839
    %v3842 = vmul.f32 %v3821, %v3840
    %3844 = vrot.lane.b32.xlu0 %v3842, 80
    %v3845 = vpop.permute.xlu0 %3844
    %3847 = vst.msk [vmem:[#allocation2] sm:$0xc0] %vm713, %v3845
    %v3848 = vrot.slane %v3842, 6
    %3849 = vrot.lane.b32.xlu0 %v3848, 80
    %v3850 = vpop.permute.xlu0 %3849
    %v3851 = vsel %vm181, %v3850, 0
    %3853 = vmatprep.subr.mxu0 0.0
    %3854 = vmatpush1.msra.mxu0 0.0
    %3855 = vmatprep.subr.mxu0 0.0
    %3856 = vmatpush1.msra.mxu0 0.0
    %3857 = vmatprep.subr.mxu0 0.0
    %3858 = vmatpush1.msra.mxu0 0.0
    %3859 = vmatprep.subr.mxu0 0.0
    %3860 = vmatpush1.msra.mxu0 0.0
    %3861 = vmatprep.subr.mxu0 0.0
    %3862 = vmatpush1.msra.mxu0 0.0
    %3863 = vmatprep.subr.mxu0 0.0
    %3864 = vmatpush1.msra.mxu0 0.0
    %3865 = vmatprep.subr.mxu0 0.0
    %3866 = vmatpush1.msra.mxu0 0.0
    %3867 = vmatprep.subr.mxu0 0.0
    %3868 = vmatpush1.msra.mxu0 0.0
    %3869 = vmatprep.subr.mxu0 0.0
    %3870 = vmatpush1.msra.mxu0 0.0
    %3871 = vmatprep.subr.mxu0 0.0
    %3872 = vmatpush1.msra.mxu0 0.0
    %3873 = vmatprep.subr.mxu0 0.0
    %3874 = vmatpush1.msra.mxu0 0.0
    %3875 = vmatprep.subr.mxu0 0.0
    %3876 = vmatpush1.msra.mxu0 0.0
    %3877 = vmatprep.subr.mxu0 0.0
    %3878 = vmatpush1.msra.mxu0 0.0
    %3879 = vmatprep.subr.mxu0 0.0
    %3880 = vmatpush1.msra.mxu0 0.0
    %3881 = vmatprep.subr.mxu0 0.0
    %3882 = vmatpush1.msra.mxu0 %v3417
    %3883 = vmatprep.subr.mxu0 0.0
    %3884 = vmatpush1.msra.mxu0 %v3416
    %3885 = vmatprep.subr.mxu0 0.0
    %3886 = vmatpush2.msra.mxu0 0.0
    %3887 = vmatprep.subr.mxu0 0.0
    %3888 = vmatpush2.msra.mxu0 0.0
    %3889 = vmatprep.subr.mxu0 0.0
    %3890 = vmatpush2.msra.mxu0 0.0
    %3891 = vmatprep.subr.mxu0 0.0
    %3892 = vmatpush2.msra.mxu0 0.0
    %3893 = vmatprep.subr.mxu0 0.0
    %3894 = vmatpush2.msra.mxu0 0.0
    %3895 = vmatprep.subr.mxu0 0.0
    %3896 = vmatpush2.msra.mxu0 0.0
    %3897 = vmatprep.subr.mxu0 0.0
    %3898 = vmatpush2.msra.mxu0 0.0
    %3899 = vmatprep.subr.mxu0 0.0
    %3900 = vmatpush2.msra.mxu0 0.0
    %3901 = vmatprep.subr.mxu0 0.0
    %3902 = vmatpush2.msra.mxu0 0.0
    %3903 = vmatprep.subr.mxu0 0.0
    %3904 = vmatpush2.msra.mxu0 0.0
    %3905 = vmatprep.subr.mxu0 0.0
    %3906 = vmatpush2.msra.mxu0 0.0
    %3907 = vmatprep.subr.mxu0 0.0
    %3908 = vmatpush2.msra.mxu0 0.0
    %3909 = vmatprep.subr.mxu0 0.0
    %3910 = vmatpush2.msra.mxu0 0.0
    %3911 = vmatprep.subr.mxu0 0.0
    %3912 = vmatpush2.msra.mxu0 0.0
    %3913 = vmatprep.subr.mxu0 0.0
    %3914 = vmatpush2.msra.mxu0 0.0
    %3915 = vmatprep.subr.mxu0 0.0
    %3916 = vmatpush2.msra.mxu0 0.0
    %3917 = vmatprep.mubr.f32.mxu0 0.0
    %3918 = vmatmul.mubr.f32.gmra.mxu0 %v3851
    %v3919 = vpop.f32.mrf.mxu0
    %v3920 = vadd.f32 0.0, %v3919
    %v3921 = vpop.f32.mrf.mxu0
    %3922 = vdwg.mxu0
    %v3923 = vadd.f32 %v3412, %v3920
    %v3924 = vxor.u32 %v3923, 2147483648
    %v3925 = vmul.f32 %v3924, 1.442695
    %v3926 = vpow.pop %v3925
    %v3927 = vadd.f32 %v3926, 1.0
    %v3928 = vrcp.pop %v3927
    %v3929 = vmul.f32 1.0, %v3928
    %v3930 = vtanh.pop %v3923
    %v3932 = vrot.slane %v3836, 6
    %v3934 = vmul.f32 %v3929, %v3932
    %3936 = vrot.lane.b32.xlu0 %v3930, 96
    %v3937 = vpop.permute.xlu0 %3936
    %v3939 = vmul.f32 %v3929, %v3937
    %3941 = vrot.lane.b32.xlu0 %v3939, 16
    %v3942 = vpop.permute.xlu0 %3941
    %v3944 = vadd.f32 %v3934, %v3942
    %v3945 = vtanh.pop %v3944
    %3947 = vrot.lane.b32.xlu0 %v3945, 32
    %v3948 = vpop.permute.xlu0 %3947
    %v3950 = vmul.f32 %v3929, %v3948
    %3952 = vrot.lane.b32.xlu0 %v3950, 80
    %v3953 = vpop.permute.xlu0 %3952
    %3955 = vst.msk [vmem:[#allocation2 + $0x8] sm:$0x3] %vm380, %v3953
    %v3956 = vsel %vm181, %v3953, 0
    %3958 = vmatprep.subr.mxu0 0.0
    %3959 = vmatpush1.msra.mxu0 0.0
    %3960 = vmatprep.subr.mxu0 0.0
    %3961 = vmatpush1.msra.mxu0 0.0
    %3962 = vmatprep.subr.mxu0 0.0
    %3963 = vmatpush1.msra.mxu0 0.0
    %3964 = vmatprep.subr.mxu0 0.0
    %3965 = vmatpush1.msra.mxu0 0.0
    %3966 = vmatprep.subr.mxu0 0.0
    %3967 = vmatpush1.msra.mxu0 0.0
    %3968 = vmatprep.subr.mxu0 0.0
    %3969 = vmatpush1.msra.mxu0 0.0
    %3970 = vmatprep.subr.mxu0 0.0
    %3971 = vmatpush1.msra.mxu0 0.0
    %3972 = vmatprep.subr.mxu0 0.0
    %3973 = vmatpush1.msra.mxu0 0.0
    %3974 = vmatprep.subr.mxu0 0.0
    %3975 = vmatpush1.msra.mxu0 0.0
    %3976 = vmatprep.subr.mxu0 0.0
    %3977 = vmatpush1.msra.mxu0 0.0
    %3978 = vmatprep.subr.mxu0 0.0
    %3979 = vmatpush1.msra.mxu0 0.0
    %3980 = vmatprep.subr.mxu0 0.0
    %3981 = vmatpush1.msra.mxu0 0.0
    %3982 = vmatprep.subr.mxu0 0.0
    %3983 = vmatpush1.msra.mxu0 0.0
    %3984 = vmatprep.subr.mxu0 0.0
    %3985 = vmatpush1.msra.mxu0 0.0
    %3986 = vmatprep.subr.mxu0 0.0
    %3987 = vmatpush1.msra.mxu0 %v3417
    %3988 = vmatprep.subr.mxu0 0.0
    %3989 = vmatpush1.msra.mxu0 %v3416
    %3990 = vmatprep.subr.mxu0 0.0
    %3991 = vmatpush2.msra.mxu0 0.0
    %3992 = vmatprep.subr.mxu0 0.0
    %3993 = vmatpush2.msra.mxu0 0.0
    %3994 = vmatprep.subr.mxu0 0.0
    %3995 = vmatpush2.msra.mxu0 0.0
    %3996 = vmatprep.subr.mxu0 0.0
    %3997 = vmatpush2.msra.mxu0 0.0
    %3998 = vmatprep.subr.mxu0 0.0
    %3999 = vmatpush2.msra.mxu0 0.0
    %4000 = vmatprep.subr.mxu0 0.0
    %4001 = vmatpush2.msra.mxu0 0.0
    %4002 = vmatprep.subr.mxu0 0.0
    %4003 = vmatpush2.msra.mxu0 0.0
    %4004 = vmatprep.subr.mxu0 0.0
    %4005 = vmatpush2.msra.mxu0 0.0
    %4006 = vmatprep.subr.mxu0 0.0
    %4007 = vmatpush2.msra.mxu0 0.0
    %4008 = vmatprep.subr.mxu0 0.0
    %4009 = vmatpush2.msra.mxu0 0.0
    %4010 = vmatprep.subr.mxu0 0.0
    %4011 = vmatpush2.msra.mxu0 0.0
    %4012 = vmatprep.subr.mxu0 0.0
    %4013 = vmatpush2.msra.mxu0 0.0
    %4014 = vmatprep.subr.mxu0 0.0
    %4015 = vmatpush2.msra.mxu0 0.0
    %4016 = vmatprep.subr.mxu0 0.0
    %4017 = vmatpush2.msra.mxu0 0.0
    %4018 = vmatprep.subr.mxu0 0.0
    %4019 = vmatpush2.msra.mxu0 0.0
    %4020 = vmatprep.subr.mxu0 0.0
    %4021 = vmatpush2.msra.mxu0 0.0
    %4022 = vmatprep.mubr.f32.mxu0 0.0
    %4023 = vmatmul.mubr.f32.gmra.mxu0 %v3956
    %v4024 = vpop.f32.mrf.mxu0
    %v4025 = vadd.f32 0.0, %v4024
    %v4026 = vpop.f32.mrf.mxu0
    %4027 = vdwg.mxu0
    %v4029 = vrot.slane %v4025, 6
    %v4031 = vadd.f32 %v3412, %v4029
    %v4032 = vxor.u32 %v4031, 2147483648
    %v4033 = vmul.f32 %v4032, 1.442695
    %v4034 = vpow.pop %v4033
    %v4035 = vadd.f32 %v4034, 1.0
    %v4036 = vrcp.pop %v4035
    %v4037 = vmul.f32 1.0, %v4036
    %v4038 = vtanh.pop %v4031
    %v4040 = vrot.slane %v3944, 6
    %v4042 = vmul.f32 %v4037, %v4040
    %4044 = vrot.lane.b32.xlu0 %v4038, 96
    %v4045 = vpop.permute.xlu0 %4044
    %v4047 = vmul.f32 %v4037, %v4045
    %4049 = vrot.lane.b32.xlu0 %v4047, 16
    %v4050 = vpop.permute.xlu0 %4049
    %v4052 = vadd.f32 %v4042, %v4050
    %v4053 = vtanh.pop %v4052
    %4055 = vrot.lane.b32.xlu0 %v4053, 32
    %v4056 = vpop.permute.xlu0 %4055
    %v4058 = vmul.f32 %v4037, %v4056
    %4060 = vrot.lane.b32.xlu0 %v4058, 80
    %v4061 = vpop.permute.xlu0 %4060
    %4063 = vst.msk [vmem:[#allocation2 + $0x8] sm:$0xc] %vm489, %v4061
    %v4064 = vrot.slane %v4058, 2
    %4065 = vrot.lane.b32.xlu0 %v4064, 80
    %v4066 = vpop.permute.xlu0 %4065
    %v4067 = vsel %vm181, %v4066, 0
    %4069 = vmatprep.subr.mxu0 0.0
    %4070 = vmatpush1.msra.mxu0 0.0
    %4071 = vmatprep.subr.mxu0 0.0
    %4072 = vmatpush1.msra.mxu0 0.0
    %4073 = vmatprep.subr.mxu0 0.0
    %4074 = vmatpush1.msra.mxu0 0.0
    %4075 = vmatprep.subr.mxu0 0.0
    %4076 = vmatpush1.msra.mxu0 0.0
    %4077 = vmatprep.subr.mxu0 0.0
    %4078 = vmatpush1.msra.mxu0 0.0
    %4079 = vmatprep.subr.mxu0 0.0
    %4080 = vmatpush1.msra.mxu0 0.0
    %4081 = vmatprep.subr.mxu0 0.0
    %4082 = vmatpush1.msra.mxu0 0.0
    %4083 = vmatprep.subr.mxu0 0.0
    %4084 = vmatpush1.msra.mxu0 0.0
    %4085 = vmatprep.subr.mxu0 0.0
    %4086 = vmatpush1.msra.mxu0 0.0
    %4087 = vmatprep.subr.mxu0 0.0
    %4088 = vmatpush1.msra.mxu0 0.0
    %4089 = vmatprep.subr.mxu0 0.0
    %4090 = vmatpush1.msra.mxu0 0.0
    %4091 = vmatprep.subr.mxu0 0.0
    %4092 = vmatpush1.msra.mxu0 0.0
    %4093 = vmatprep.subr.mxu0 0.0
    %4094 = vmatpush1.msra.mxu0 0.0
    %4095 = vmatprep.subr.mxu0 0.0
    %4096 = vmatpush1.msra.mxu0 0.0
    %4097 = vmatprep.subr.mxu0 0.0
    %4098 = vmatpush1.msra.mxu0 %v3417
    %4099 = vmatprep.subr.mxu0 0.0
    %4100 = vmatpush1.msra.mxu0 %v3416
    %4101 = vmatprep.subr.mxu0 0.0
    %4102 = vmatpush2.msra.mxu0 0.0
    %4103 = vmatprep.subr.mxu0 0.0
    %4104 = vmatpush2.msra.mxu0 0.0
    %4105 = vmatprep.subr.mxu0 0.0
    %4106 = vmatpush2.msra.mxu0 0.0
    %4107 = vmatprep.subr.mxu0 0.0
    %4108 = vmatpush2.msra.mxu0 0.0
    %4109 = vmatprep.subr.mxu0 0.0
    %4110 = vmatpush2.msra.mxu0 0.0
    %4111 = vmatprep.subr.mxu0 0.0
    %4112 = vmatpush2.msra.mxu0 0.0
    %4113 = vmatprep.subr.mxu0 0.0
    %4114 = vmatpush2.msra.mxu0 0.0
    %4115 = vmatprep.subr.mxu0 0.0
    %4116 = vmatpush2.msra.mxu0 0.0
    %4117 = vmatprep.subr.mxu0 0.0
    %4118 = vmatpush2.msra.mxu0 0.0
    %4119 = vmatprep.subr.mxu0 0.0
    %4120 = vmatpush2.msra.mxu0 0.0
    %4121 = vmatprep.subr.mxu0 0.0
    %4122 = vmatpush2.msra.mxu0 0.0
    %4123 = vmatprep.subr.mxu0 0.0
    %4124 = vmatpush2.msra.mxu0 0.0
    %4125 = vmatprep.subr.mxu0 0.0
    %4126 = vmatpush2.msra.mxu0 0.0
    %4127 = vmatprep.subr.mxu0 0.0
    %4128 = vmatpush2.msra.mxu0 0.0
    %4129 = vmatprep.subr.mxu0 0.0
    %4130 = vmatpush2.msra.mxu0 0.0
    %4131 = vmatprep.subr.mxu0 0.0
    %4132 = vmatpush2.msra.mxu0 0.0
    %4133 = vmatprep.mubr.f32.mxu0 0.0
    %4134 = vmatmul.mubr.f32.gmra.mxu0 %v4067
    %v4135 = vpop.f32.mrf.mxu0
    %v4136 = vadd.f32 0.0, %v4135
    %v4137 = vpop.f32.mrf.mxu0
    %4138 = vdwg.mxu0
    %v4140 = vrot.slane %v4136, 4
    %v4142 = vadd.f32 %v3412, %v4140
    %v4143 = vxor.u32 %v4142, 2147483648
    %v4144 = vmul.f32 %v4143, 1.442695
    %v4145 = vpow.pop %v4144
    %v4146 = vadd.f32 %v4145, 1.0
    %v4147 = vrcp.pop %v4146
    %v4148 = vmul.f32 1.0, %v4147
    %v4149 = vtanh.pop %v4142
    %v4151 = vrot.slane %v4052, 6
    %v4153 = vmul.f32 %v4148, %v4151
    %4155 = vrot.lane.b32.xlu0 %v4149, 96
    %v4156 = vpop.permute.xlu0 %4155
    %v4158 = vmul.f32 %v4148, %v4156
    %4160 = vrot.lane.b32.xlu0 %v4158, 16
    %v4161 = vpop.permute.xlu0 %4160
    %v4163 = vadd.f32 %v4153, %v4161
    %v4164 = vtanh.pop %v4163
    %4166 = vrot.lane.b32.xlu0 %v4164, 32
    %v4167 = vpop.permute.xlu0 %4166
    %v4169 = vmul.f32 %v4148, %v4167
    %4171 = vrot.lane.b32.xlu0 %v4169, 80
    %v4172 = vpop.permute.xlu0 %4171
    %4174 = vst.msk [vmem:[#allocation2 + $0x8] sm:$0x30] %vm601, %v4172
    %v4175 = vrot.slane %v4169, 4
    %4176 = vrot.lane.b32.xlu0 %v4175, 80
    %v4177 = vpop.permute.xlu0 %4176
    %v4178 = vsel %vm181, %v4177, 0
    %4180 = vmatprep.subr.mxu0 0.0
    %4181 = vmatpush1.msra.mxu0 0.0
    %4182 = vmatprep.subr.mxu0 0.0
    %4183 = vmatpush1.msra.mxu0 0.0
    %4184 = vmatprep.subr.mxu0 0.0
    %4185 = vmatpush1.msra.mxu0 0.0
    %4186 = vmatprep.subr.mxu0 0.0
    %4187 = vmatpush1.msra.mxu0 0.0
    %4188 = vmatprep.subr.mxu0 0.0
    %4189 = vmatpush1.msra.mxu0 0.0
    %4190 = vmatprep.subr.mxu0 0.0
    %4191 = vmatpush1.msra.mxu0 0.0
    %4192 = vmatprep.subr.mxu0 0.0
    %4193 = vmatpush1.msra.mxu0 0.0
    %4194 = vmatprep.subr.mxu0 0.0
    %4195 = vmatpush1.msra.mxu0 0.0
    %4196 = vmatprep.subr.mxu0 0.0
    %4197 = vmatpush1.msra.mxu0 0.0
    %4198 = vmatprep.subr.mxu0 0.0
    %4199 = vmatpush1.msra.mxu0 0.0
    %4200 = vmatprep.subr.mxu0 0.0
    %4201 = vmatpush1.msra.mxu0 0.0
    %4202 = vmatprep.subr.mxu0 0.0
    %4203 = vmatpush1.msra.mxu0 0.0
    %4204 = vmatprep.subr.mxu0 0.0
    %4205 = vmatpush1.msra.mxu0 0.0
    %4206 = vmatprep.subr.mxu0 0.0
    %4207 = vmatpush1.msra.mxu0 0.0
    %4208 = vmatprep.subr.mxu0 0.0
    %4209 = vmatpush1.msra.mxu0 %v3417
    %4210 = vmatprep.subr.mxu0 0.0
    %4211 = vmatpush1.msra.mxu0 %v3416
    %4212 = vmatprep.subr.mxu0 0.0
    %4213 = vmatpush2.msra.mxu0 0.0
    %4214 = vmatprep.subr.mxu0 0.0
    %4215 = vmatpush2.msra.mxu0 0.0
    %4216 = vmatprep.subr.mxu0 0.0
    %4217 = vmatpush2.msra.mxu0 0.0
    %4218 = vmatprep.subr.mxu0 0.0
    %4219 = vmatpush2.msra.mxu0 0.0
    %4220 = vmatprep.subr.mxu0 0.0
    %4221 = vmatpush2.msra.mxu0 0.0
    %4222 = vmatprep.subr.mxu0 0.0
    %4223 = vmatpush2.msra.mxu0 0.0
    %4224 = vmatprep.subr.mxu0 0.0
    %4225 = vmatpush2.msra.mxu0 0.0
    %4226 = vmatprep.subr.mxu0 0.0
    %4227 = vmatpush2.msra.mxu0 0.0
    %4228 = vmatprep.subr.mxu0 0.0
    %4229 = vmatpush2.msra.mxu0 0.0
    %4230 = vmatprep.subr.mxu0 0.0
    %4231 = vmatpush2.msra.mxu0 0.0
    %4232 = vmatprep.subr.mxu0 0.0
    %4233 = vmatpush2.msra.mxu0 0.0
    %4234 = vmatprep.subr.mxu0 0.0
    %4235 = vmatpush2.msra.mxu0 0.0
    %4236 = vmatprep.subr.mxu0 0.0
    %4237 = vmatpush2.msra.mxu0 0.0
    %4238 = vmatprep.subr.mxu0 0.0
    %4239 = vmatpush2.msra.mxu0 0.0
    %4240 = vmatprep.subr.mxu0 0.0
    %4241 = vmatpush2.msra.mxu0 0.0
    %4242 = vmatprep.subr.mxu0 0.0
    %4243 = vmatpush2.msra.mxu0 0.0
    %4244 = vmatprep.mubr.f32.mxu0 0.0
    %4245 = vmatmul.mubr.f32.gmra.mxu0 %v4178
    %v4246 = vpop.f32.mrf.mxu0
    %v4247 = vadd.f32 0.0, %v4246
    %v4248 = vpop.f32.mrf.mxu0
    %4249 = vdwg.mxu0
    %v4251 = vrot.slane %v4247, 2
    %v4253 = vadd.f32 %v3412, %v4251
    %v4254 = vxor.u32 %v4253, 2147483648
    %v4255 = vmul.f32 %v4254, 1.442695
    %v4256 = vpow.pop %v4255
    %v4257 = vadd.f32 %v4256, 1.0
    %v4258 = vrcp.pop %v4257
    %v4259 = vmul.f32 1.0, %v4258
    %v4260 = vtanh.pop %v4253
    %v4262 = vrot.slane %v4163, 6
    %v4264 = vmul.f32 %v4259, %v4262
    %4266 = vrot.lane.b32.xlu0 %v4260, 96
    %v4267 = vpop.permute.xlu0 %4266
    %v4269 = vmul.f32 %v4259, %v4267
    %4271 = vrot.lane.b32.xlu0 %v4269, 16
    %v4272 = vpop.permute.xlu0 %4271
    %v4274 = vadd.f32 %v4264, %v4272
    %v4275 = vtanh.pop %v4274
    %4277 = vrot.lane.b32.xlu0 %v4275, 32
    %v4278 = vpop.permute.xlu0 %4277
    %v4280 = vmul.f32 %v4259, %v4278
    %4282 = vrot.lane.b32.xlu0 %v4280, 80
    %v4283 = vpop.permute.xlu0 %4282
    %4285 = vst.msk [vmem:[#allocation2 + $0x8] sm:$0xc0] %vm713, %v4283
    %v4286 = vld [vmem:[#allocation2] sm:$0xff]
    %v4287 = vld [vmem:[#allocation2 + $0x8] sm:$0xff]
    %v4288 = vmul.f32 %v4286, %v4286
    %v4289 = vmul.f32 %v4287, %v4287
    %v4290 = vsel %vm181, %v4288, 0.0
    %4291 = vadd.xlane.f32.xlu0 %v4290
    %v4292 = vpop.xlane.xlu0 %4291
    %v4293 = vsel %vm181, %v4289, 0.0
    %4294 = vadd.xlane.f32.xlu0 %v4293
    %v4295 = vpop.xlane.xlu0 %4294
    %v4296 = vrsqrt.pop %v4292
    %v4297 = vmul.f32 %v4292, %v4296
    %vm4298 = vcmp.eq.f32.partialorder %v4292, inf
    %v4299 = vsel %vm4298, %v4292, %v4297
    %vm4300 = vcmp.eq.f32.partialorder %v4292, 0.0
    %v4301 = vand.u32 %v4292, 2147483648
    %v4302 = vsel %vm4300, %v4301, %v4299
    %v4303 = vrsqrt.pop %v4295
    %v4304 = vmul.f32 %v4295, %v4303
    %vm4305 = vcmp.eq.f32.partialorder %v4295, inf
    %v4306 = vsel %vm4305, %v4295, %v4304
    %vm4307 = vcmp.eq.f32.partialorder %v4295, 0.0
    %v4308 = vand.u32 %v4295, 2147483648
    %v4309 = vsel %vm4307, %v4308, %v4306
    %v4310 = vmax.f32 %v4302, 1e-12
    %v4311 = vmax.f32 %v4309, 1e-12
    %v4312 = vrcp.pop %v4310
    %v4313 = vmul.f32 %v4286, %v4312
    %v4314 = vrcp.pop %v4311
    %v4315 = vmul.f32 %v4287, %v4314
    %v4316 = vadd.f32 %v4313, 0.0
    %v4318 = vrot.slane %v4313, 2
    %v4320 = vadd.f32 %v4316, %v4318
    %v4321 = vrot.slane %v4313, 4
    %v4323 = vadd.f32 %v4320, %v4321
    %v4324 = vrot.slane %v4313, 6
    %v4326 = vadd.f32 %v4323, %v4324
    %v4327 = vadd.f32 %v4326, %v4315
    %v4329 = vrot.slane %v4315, 2
    %v4331 = vadd.f32 %v4327, %v4329
    %v4332 = vrot.slane %v4315, 4
    %v4334 = vadd.f32 %v4331, %v4332
    %v4335 = vrot.slane %v4315, 6
    %v4337 = vadd.f32 %v4334, %v4335
    %v4338 = vmul.f32 %v4337, 0.125
    %v4339 = vmul.f32 %v4338, %v4338
    %v4340 = vsel %vm380, %v4339, 0.0
    %4341 = vadd.xlane.f32.xlu0 %v4340
    %v4342 = vpop.xlane.xlu0 %4341
    %v4343 = vrsqrt.pop %v4342
    %v4344 = vmul.f32 %v4342, %v4343
    %vm4345 = vcmp.eq.f32.partialorder %v4342, inf
    %v4346 = vsel %vm4345, %v4342, %v4344
    %vm4347 = vcmp.eq.f32.partialorder %v4342, 0.0
    %v4348 = vand.u32 %v4342, 2147483648
    %v4349 = vsel %vm4347, %v4348, %v4346
    %v4350 = vmax.f32 %v4349, 1e-12
    %v4351 = vrcp.pop %v4350
    %v4352 = vmul.f32 %v4338, %v4351
    %v4353 = vld [vmem:[%s7] sm:$0xff]
    %v4354 = vld [vmem:[%s7 + $0x8] sm:$0xff]
    %v4355 = vld [vmem:[%s8] sm:$0x1]
    %v4357 = vlaneseq
    %v4358 = vshrl.u32 %v4357, 7
    %v4359 = vsub.s32 0, %v4358
    %v4360 = vrot.slane %v4355, %v4359
    %v4363 = vsel %vm181, %v4352, 0
    %4365 = vmatprep.subr.mxu0 0.0
    %4366 = vmatpush1.msra.mxu0 0.0
    %4367 = vmatprep.subr.mxu0 0.0
    %4368 = vmatpush1.msra.mxu0 0.0
    %4369 = vmatprep.subr.mxu0 0.0
    %4370 = vmatpush1.msra.mxu0 0.0
    %4371 = vmatprep.subr.mxu0 0.0
    %4372 = vmatpush1.msra.mxu0 0.0
    %4373 = vmatprep.subr.mxu0 0.0
    %4374 = vmatpush1.msra.mxu0 0.0
    %4375 = vmatprep.subr.mxu0 0.0
    %4376 = vmatpush1.msra.mxu0 0.0
    %4377 = vmatprep.subr.mxu0 0.0
    %4378 = vmatpush1.msra.mxu0 0.0
    %4379 = vmatprep.subr.mxu0 0.0
    %4380 = vmatpush1.msra.mxu0 0.0
    %4381 = vmatprep.subr.mxu0 0.0
    %4382 = vmatpush1.msra.mxu0 0.0
    %4383 = vmatprep.subr.mxu0 0.0
    %4384 = vmatpush1.msra.mxu0 0.0
    %4385 = vmatprep.subr.mxu0 0.0
    %4386 = vmatpush1.msra.mxu0 0.0
    %4387 = vmatprep.subr.mxu0 0.0
    %4388 = vmatpush1.msra.mxu0 0.0
    %4389 = vmatprep.subr.mxu0 0.0
    %4390 = vmatpush1.msra.mxu0 0.0
    %4391 = vmatprep.subr.mxu0 0.0
    %4392 = vmatpush1.msra.mxu0 0.0
    %4393 = vmatprep.subr.mxu0 0.0
    %4394 = vmatpush1.msra.mxu0 %v4354
    %4395 = vmatprep.subr.mxu0 0.0
    %4396 = vmatpush1.msra.mxu0 %v4353
    %4397 = vmatprep.subr.mxu0 0.0
    %4398 = vmatpush2.msra.mxu0 0.0
    %4399 = vmatprep.subr.mxu0 0.0
    %4400 = vmatpush2.msra.mxu0 0.0
    %4401 = vmatprep.subr.mxu0 0.0
    %4402 = vmatpush2.msra.mxu0 0.0
    %4403 = vmatprep.subr.mxu0 0.0
    %4404 = vmatpush2.msra.mxu0 0.0
    %4405 = vmatprep.subr.mxu0 0.0
    %4406 = vmatpush2.msra.mxu0 0.0
    %4407 = vmatprep.subr.mxu0 0.0
    %4408 = vmatpush2.msra.mxu0 0.0
    %4409 = vmatprep.subr.mxu0 0.0
    %4410 = vmatpush2.msra.mxu0 0.0
    %4411 = vmatprep.subr.mxu0 0.0
    %4412 = vmatpush2.msra.mxu0 0.0
    %4413 = vmatprep.subr.mxu0 0.0
    %4414 = vmatpush2.msra.mxu0 0.0
    %4415 = vmatprep.subr.mxu0 0.0
    %4416 = vmatpush2.msra.mxu0 0.0
    %4417 = vmatprep.subr.mxu0 0.0
    %4418 = vmatpush2.msra.mxu0 0.0
    %4419 = vmatprep.subr.mxu0 0.0
    %4420 = vmatpush2.msra.mxu0 0.0
    %4421 = vmatprep.subr.mxu0 0.0
    %4422 = vmatpush2.msra.mxu0 0.0
    %4423 = vmatprep.subr.mxu0 0.0
    %4424 = vmatpush2.msra.mxu0 0.0
    %4425 = vmatprep.subr.mxu0 0.0
    %4426 = vmatpush2.msra.mxu0 0.0
    %4427 = vmatprep.subr.mxu0 0.0
    %4428 = vmatpush2.msra.mxu0 0.0
    %4429 = vmatprep.mubr.f32.mxu0 0.0
    %4430 = vmatmul.mubr.f32.gmra.mxu0 %v4363
    %v4431 = vpop.f32.mrf.mxu0
    %v4432 = vadd.f32 %v4360, %v4431
    %v4433 = vpop.f32.mrf.mxu0
    %4434 = vdwg.mxu0
    %v4435 = vld [vmem:[#allocation8] sm:$0xff]
    %v4436 = vld [vmem:[%s10] sm:$0x1]
    %v4438 = vlaneseq
    %v4439 = vshrl.u32 %v4438, 7
    %v4440 = vsub.s32 0, %v4439
    %v4441 = vrot.slane %v4436, %v4440
    %vm4443 = vcmask 64512
    %v4445 = vsel %vm4443, %v4432, 0
    %4447 = vmatprep.subr.mxu0 0.0
    %4448 = vmatpush1.msra.mxu0 0.0
    %4449 = vmatprep.subr.mxu0 0.0
    %4450 = vmatpush1.msra.mxu0 0.0
    %4451 = vmatprep.subr.mxu0 0.0
    %4452 = vmatpush1.msra.mxu0 0.0
    %4453 = vmatprep.subr.mxu0 0.0
    %4454 = vmatpush1.msra.mxu0 0.0
    %4455 = vmatprep.subr.mxu0 0.0
    %4456 = vmatpush1.msra.mxu0 0.0
    %4457 = vmatprep.subr.mxu0 0.0
    %4458 = vmatpush1.msra.mxu0 0.0
    %4459 = vmatprep.subr.mxu0 0.0
    %4460 = vmatpush1.msra.mxu0 0.0
    %4461 = vmatprep.subr.mxu0 0.0
    %4462 = vmatpush1.msra.mxu0 0.0
    %4463 = vmatprep.subr.mxu0 0.0
    %4464 = vmatpush1.msra.mxu0 0.0
    %4465 = vmatprep.subr.mxu0 0.0
    %4466 = vmatpush1.msra.mxu0 0.0
    %4467 = vmatprep.subr.mxu0 0.0
    %4468 = vmatpush1.msra.mxu0 0.0
    %4469 = vmatprep.subr.mxu0 0.0
    %4470 = vmatpush1.msra.mxu0 0.0
    %4471 = vmatprep.subr.mxu0 0.0
    %4472 = vmatpush1.msra.mxu0 0.0
    %4473 = vmatprep.subr.mxu0 0.0
    %4474 = vmatpush1.msra.mxu0 0.0
    %4475 = vmatprep.subr.mxu0 0.0
    %4476 = vmatpush1.msra.mxu0 0.0
    %4477 = vmatprep.subr.mxu0 0.0
    %4478 = vmatpush1.msra.mxu0 %v4435
    %4479 = vmatprep.subr.mxu0 0.0
    %4480 = vmatpush2.msra.mxu0 0.0
    %4481 = vmatprep.subr.mxu0 0.0
    %4482 = vmatpush2.msra.mxu0 0.0
    %4483 = vmatprep.subr.mxu0 0.0
    %4484 = vmatpush2.msra.mxu0 0.0
    %4485 = vmatprep.subr.mxu0 0.0
    %4486 = vmatpush2.msra.mxu0 0.0
    %4487 = vmatprep.subr.mxu0 0.0
    %4488 = vmatpush2.msra.mxu0 0.0
    %4489 = vmatprep.subr.mxu0 0.0
    %4490 = vmatpush2.msra.mxu0 0.0
    %4491 = vmatprep.subr.mxu0 0.0
    %4492 = vmatpush2.msra.mxu0 0.0
    %4493 = vmatprep.subr.mxu0 0.0
    %4494 = vmatpush2.msra.mxu0 0.0
    %4495 = vmatprep.subr.mxu0 0.0
    %4496 = vmatpush2.msra.mxu0 0.0
    %4497 = vmatprep.subr.mxu0 0.0
    %4498 = vmatpush2.msra.mxu0 0.0
    %4499 = vmatprep.subr.mxu0 0.0
    %4500 = vmatpush2.msra.mxu0 0.0
    %4501 = vmatprep.subr.mxu0 0.0
    %4502 = vmatpush2.msra.mxu0 0.0
    %4503 = vmatprep.subr.mxu0 0.0
    %4504 = vmatpush2.msra.mxu0 0.0
    %4505 = vmatprep.subr.mxu0 0.0
    %4506 = vmatpush2.msra.mxu0 0.0
    %4507 = vmatprep.subr.mxu0 0.0
    %4508 = vmatpush2.msra.mxu0 0.0
    %4509 = vmatprep.subr.mxu0 0.0
    %4510 = vmatpush2.msra.mxu0 0.0
    %4511 = vmatprep.mubr.f32.mxu0 0.0
    %4512 = vmatmul.mubr.f32.gmra.mxu0 %v4445
    %v4513 = vpop.f32.mrf.mxu0
    %v4514 = vadd.f32 %v4441, %v4513
    %v4515 = vpop.f32.mrf.mxu0
    %4516 = vdwg.mxu0
    %v4517 = vld [vmem:[%s11] sm:$0xff]
    %v4518 = vld [vmem:[#allocation5] sm:$0x1]
    %v4520 = vlaneseq
    %v4521 = vshrl.u32 %v4520, 7
    %v4522 = vsub.s32 0, %v4521
    %v4523 = vrot.slane %v4518, %v4522
    %v4526 = vsel %vm4443, %v4514, 0
    %4528 = vmatprep.subr.mxu0 0.0
    %4529 = vmatpush1.msra.mxu0 0.0
    %4530 = vmatprep.subr.mxu0 0.0
    %4531 = vmatpush1.msra.mxu0 0.0
    %4532 = vmatprep.subr.mxu0 0.0
    %4533 = vmatpush1.msra.mxu0 0.0
    %4534 = vmatprep.subr.mxu0 0.0
    %4535 = vmatpush1.msra.mxu0 0.0
    %4536 = vmatprep.subr.mxu0 0.0
    %4537 = vmatpush1.msra.mxu0 0.0
    %4538 = vmatprep.subr.mxu0 0.0
    %4539 = vmatpush1.msra.mxu0 0.0
    %4540 = vmatprep.subr.mxu0 0.0
    %4541 = vmatpush1.msra.mxu0 0.0
    %4542 = vmatprep.subr.mxu0 0.0
    %4543 = vmatpush1.msra.mxu0 0.0
    %4544 = vmatprep.subr.mxu0 0.0
    %4545 = vmatpush1.msra.mxu0 0.0
    %4546 = vmatprep.subr.mxu0 0.0
    %4547 = vmatpush1.msra.mxu0 0.0
    %4548 = vmatprep.subr.mxu0 0.0
    %4549 = vmatpush1.msra.mxu0 0.0
    %4550 = vmatprep.subr.mxu0 0.0
    %4551 = vmatpush1.msra.mxu0 0.0
    %4552 = vmatprep.subr.mxu0 0.0
    %4553 = vmatpush1.msra.mxu0 0.0
    %4554 = vmatprep.subr.mxu0 0.0
    %4555 = vmatpush1.msra.mxu0 0.0
    %4556 = vmatprep.subr.mxu0 0.0
    %4557 = vmatpush1.msra.mxu0 0.0
    %4558 = vmatprep.subr.mxu0 0.0
    %4559 = vmatpush1.msra.mxu0 %v4517
    %4560 = vmatprep.subr.mxu0 0.0
    %4561 = vmatpush2.msra.mxu0 0.0
    %4562 = vmatprep.subr.mxu0 0.0
    %4563 = vmatpush2.msra.mxu0 0.0
    %4564 = vmatprep.subr.mxu0 0.0
    %4565 = vmatpush2.msra.mxu0 0.0
    %4566 = vmatprep.subr.mxu0 0.0
    %4567 = vmatpush2.msra.mxu0 0.0
    %4568 = vmatprep.subr.mxu0 0.0
    %4569 = vmatpush2.msra.mxu0 0.0
    %4570 = vmatprep.subr.mxu0 0.0
    %4571 = vmatpush2.msra.mxu0 0.0
    %4572 = vmatprep.subr.mxu0 0.0
    %4573 = vmatpush2.msra.mxu0 0.0
    %4574 = vmatprep.subr.mxu0 0.0
    %4575 = vmatpush2.msra.mxu0 0.0
    %4576 = vmatprep.subr.mxu0 0.0
    %4577 = vmatpush2.msra.mxu0 0.0
    %4578 = vmatprep.subr.mxu0 0.0
    %4579 = vmatpush2.msra.mxu0 0.0
    %4580 = vmatprep.subr.mxu0 0.0
    %4581 = vmatpush2.msra.mxu0 0.0
    %4582 = vmatprep.subr.mxu0 0.0
    %4583 = vmatpush2.msra.mxu0 0.0
    %4584 = vmatprep.subr.mxu0 0.0
    %4585 = vmatpush2.msra.mxu0 0.0
    %4586 = vmatprep.subr.mxu0 0.0
    %4587 = vmatpush2.msra.mxu0 0.0
    %4588 = vmatprep.subr.mxu0 0.0
    %4589 = vmatpush2.msra.mxu0 0.0
    %4590 = vmatprep.subr.mxu0 0.0
    %4591 = vmatpush2.msra.mxu0 0.0
    %4592 = vmatprep.mubr.f32.mxu0 0.0
    %4593 = vmatmul.mubr.f32.gmra.mxu0 %v4526
    %v4594 = vpop.f32.mrf.mxu0
    %v4595 = vadd.f32 %v4523, %v4594
    %v4596 = vpop.f32.mrf.mxu0
    %4597 = vdwg.mxu0
    %v4598 = vxor.u32 %v4595, 2147483648
    %v4599 = vmul.f32 %v4598, 1.442695
    %v4600 = vpow.pop %v4599
    %v4601 = vadd.f32 %v4600, 1.0
    %v4602 = vrcp.pop %v4601
    %v4603 = vmul.f32 1.0, %v4602
    %vm4604 = vcmask 1024
    %4605 = vst.msk [vmem:[%s14] sm:$0x3] %vm4604, %v2272
    %4606 = vst.msk [vmem:[%s15] sm:$0x3] %vm4604, %v4603
    %v4607 = vsub.f32 %v2272, %v4603
    %4608 = vst.msk [vmem:[%s13] sm:$0x3] %vm4604, %v4607
    // Predicated region
    $region62: #{tpu_custom_call.1} parent=1 // pred_check
      _
    $region63: #{tpu_custom_call.1} parent=1 // pred_check_branch
      %4610 = sbr.rel (0) target = $region65
    $region64: #{tpu_custom_call.1} parent=1 // pred_region
      _
    $region65: #{tpu_custom_call.1} parent=1 // pred_fallthru
      _
    // Predicated region
    $region66: #{tpu_custom_call.1} parent=1 // pred_check
      _
    $region67: #{tpu_custom_call.1} parent=1 // pred_check_branch
      %4612 = sbr.rel (0) target = $region69
    $region68: #{tpu_custom_call.1} parent=1 // pred_region
      _
    $region69: #{tpu_custom_call.1} parent=1 // pred_fallthru
      _
    // Predicated region
    $region70: #{tpu_custom_call.1} parent=1 // pred_check
      _
    $region71: #{tpu_custom_call.1} parent=1 // pred_check_branch
      %4614 = sbr.rel (0) target = $region73
    $region72: #{tpu_custom_call.1} parent=1 // pred_region
      _
    $region73: #{tpu_custom_call.1} parent=1 // pred_fallthru
      _
    // Predicated region
    $region74: #{tpu_custom_call.1} parent=1 // pred_check
      _
    $region75: #{tpu_custom_call.1} parent=1 // pred_check_branch
      %4616 = sbr.rel (0) target = $region77
    $region76: #{tpu_custom_call.1} parent=1 // pred_region
      _
    $region77: #{tpu_custom_call.1} parent=1 // pred_fallthru
      _
    // Predicated region
    $region78: #{tpu_custom_call.1} parent=1 // pred_check
      _
    $region79: #{tpu_custom_call.1} parent=1 // pred_check_branch
      %4618 = sbr.rel (0) target = $region81
    $region80: #{tpu_custom_call.1} parent=1 // pred_region
      _
    $region81: #{tpu_custom_call.1} parent=1 // pred_fallthru
      _
    // Predicated region
    $region82: #{tpu_custom_call.1} parent=1 // pred_check
      _
    $region83: #{tpu_custom_call.1} parent=1 // pred_check_branch
      %4620 = sbr.rel (0) target = $region85
    $region84: #{tpu_custom_call.1} parent=1 // pred_region
      _
    $region85: #{tpu_custom_call.1} parent=1 // pred_fallthru
      _
    %4621 = vsyncpa [#allocation7], 1
    %4622 = vsyncpa [#allocation9], 1

</llo_original>
